<compile_context>
chip_gen: v6e
topology: v6e:2x2x1
jax: 0.10.0
libtpu: 0.0.40
codegen_flags: <defaults>
</compile_context>

<pallas_src>
import functools

import jax
import jax.numpy as jnp
from jax.experimental import pallas as pl
from jax.experimental.pallas import tpu as pltpu

LN_EPS = 1e-5   # nn.LayerNorm default
BN_EPS = 1e-5   # nn.BatchNorm2d default
SEG = 5


def _round_up(x, m):
    return (x + m - 1) // m * m


def _hardswish(x):
    return x * jnp.clip(x + 3.0, 0.0, 6.0) * (1.0 / 6.0)


def _fold_bn(gamma, beta, mean, var):
    scale = gamma / jnp.sqrt(var + BN_EPS)
    return scale, beta - mean * scale


# ---------------------------------------------------------------------------
# Kernel 1 (global): groups 0..3 fused -> one matmul + bias + hardswish.
# ---------------------------------------------------------------------------
def _make_global_kernel(Wp, Np_pad, Crow):
    def kernel(x_ref, wc_ref, b_ref, o_ref, slab_ref):
        x = x_ref[0]                                   # (Crow, Np_pad), lane-dense
        # Stack the 49 shifted copies (7x7 tap grid, pad=3) into the slab.
        # Roll-wraparound safety: for a valid output index p <= (H-1)*Wp + (W-1) and
        # any tap shift d <= 6*Wp + 6, p + d <= Hp*Wp - 1 < Np_pad, so the circular
        # wraparound of pltpu.roll never lands inside the valid H x W window.
        for t in range(49):
            ky, kx = divmod(t, 7)
            d = ky * Wp + kx
            piece = x if d == 0 else pltpu.roll(x, shift=Np_pad - d, axis=1)
            slab_ref[t * Crow:(t + 1) * Crow, :] = piece
        y = jnp.dot(wc_ref[...], slab_ref[...],
                    preferred_element_type=jnp.float32)    # (Cout, Np_pad) on the MXU
        o_ref[0] = _hardswish(y + b_ref[...])
    return kernel


def _global_branch(xg, wc, bias_col, Wp, Np_pad):
    B, Crow, _ = xg.shape
    Cout = wc.shape[0]
    return pl.pallas_call(
        _make_global_kernel(Wp, Np_pad, Crow),
        out_shape=jax.ShapeDtypeStruct((B, Cout, Np_pad), jnp.float32),
        grid=(B,),
        in_specs=[
            pl.BlockSpec((1, Crow, Np_pad), lambda i: (i, 0, 0)),
            pl.BlockSpec((Cout, 49 * Crow), lambda i: (0, 0)),   # VMEM-resident weight
            pl.BlockSpec((Cout, 1), lambda i: (0, 0)),           # folded BN bias column
        ],
        out_specs=pl.BlockSpec((1, Cout, Np_pad), lambda i: (i, 0, 0)),
        scratch_shapes=[pltpu.VMEM((49 * Crow, Np_pad), jnp.float32)],
        compiler_params=pltpu.CompilerParams(dimension_semantics=("parallel",)),
    )(xg, wc, bias_col)


# ---------------------------------------------------------------------------
# Kernel 2 (local, Agg0): sepconv k=3 -> LayerNorm(seg_dim) -> hardswish.
# ---------------------------------------------------------------------------
def _make_local_kernel(Wp, Np_pad, Crow, seg_dim):
    inv_c = 1.0 / seg_dim

    def kernel(x_ref, wc_ref, g_ref, b_ref, o_ref, slab_ref):
        x = x_ref[0]                                   # (Crow, Np_pad)
        for t in range(9):
            ky, kx = divmod(t, 3)
            d = ky * Wp + kx
            piece = x if d == 0 else pltpu.roll(x, shift=Np_pad - d, axis=1)
            slab_ref[t * Crow:(t + 1) * Crow, :] = piece
        y = jnp.dot(wc_ref[...], slab_ref[...],
                    preferred_element_type=jnp.float32)    # (seg_dim, Np_pad)
        # LayerNorm over the seg_dim channels (cross-sublane reduce).
        mu = jnp.sum(y, axis=0, keepdims=True) * inv_c
        diff = y - mu
        var = jnp.sum(diff * diff, axis=0, keepdims=True) * inv_c
        yn = diff * jax.lax.rsqrt(var + LN_EPS)
        o_ref[0] = _hardswish(yn * g_ref[...] + b_ref[...])
    return kernel


def _local_branch(xl, wc, gamma_col, beta_col, Wp, Np_pad, seg_dim):
    Bl, Crow, _ = xl.shape
    return pl.pallas_call(
        _make_local_kernel(Wp, Np_pad, Crow, seg_dim),
        out_shape=jax.ShapeDtypeStruct((Bl, seg_dim, Np_pad), jnp.float32),
        grid=(Bl,),
        in_specs=[
            pl.BlockSpec((1, Crow, Np_pad), lambda i: (i, 0, 0)),
            pl.BlockSpec((seg_dim, 9 * Crow), lambda i: (0, 0)),
            pl.BlockSpec((seg_dim, 1), lambda i: (0, 0)),
            pl.BlockSpec((seg_dim, 1), lambda i: (0, 0)),
        ],
        out_specs=pl.BlockSpec((1, seg_dim, Np_pad), lambda i: (i, 0, 0)),
        scratch_shapes=[pltpu.VMEM((9 * Crow, Np_pad), jnp.float32)],
        compiler_params=pltpu.CompilerParams(dimension_semantics=("parallel",)),
    )(xl, wc, gamma_col, beta_col)


# ---------------------------------------------------------------------------
# Combined-weight builders (wrapper-side, tiny).
# ---------------------------------------------------------------------------
def _build_global_weight(params, scales, seg_dim, Crow_g):
    """Wc[co, t*Crow_g + ci] on the shared 7x7 tap grid, BN scale folded in."""
    Cout = 4 * seg_dim
    w = jnp.zeros((Cout, 7, 7, Crow_g), jnp.float32)
    # group 0: no conv -> identity at the centre tap (ky=kx=3), BN scale on the diag.
    diag0 = jnp.zeros((seg_dim, Crow_g), jnp.float32)
    diag0 = diag0.at[jnp.arange(seg_dim), jnp.arange(seg_dim)].set(
        scales[0].astype(jnp.float32))
    w = w.at[:seg_dim, 3, 3, :].set(diag0)
    # groups 1..3: sepconv k=3/5/7, BN scale folded into the pointwise weight.
    for g, K in ((1, 3), (2, 5), (3, 7)):
        wdw = params[f"agg{g}_dw"].astype(jnp.float32)        # (seg_dim, K, K)
        wpw = params[f"agg{g}_pw"].astype(jnp.float32)        # (seg_dim out, seg_dim in)
        off = 3 - (K - 1) // 2
        blk = (scales[g].astype(jnp.float32)[:, None, None, None]
               * wpw[:, :, None, None] * wdw[None, :, :, :])  # (co, ci, K, K)
        blk = jnp.transpose(blk, (0, 2, 3, 1))                # (co, ky, kx, ci)
        w = w.at[g * seg_dim:(g + 1) * seg_dim, off:off + K, off:off + K,
                 g * seg_dim:(g + 1) * seg_dim].set(blk)
    return w.reshape(Cout, 49 * Crow_g)


def _build_local_weight(w_dw, w_pw, seg_dim, Crow_l):
    Cin = 3 * seg_dim
    w = jnp.zeros((seg_dim, 3, 3, Crow_l), jnp.float32)
    blk = (w_pw.astype(jnp.float32)[:, :, None, None]
           * w_dw.astype(jnp.float32)[None, :, :, :])         # (co, ci, 3, 3)
    blk = jnp.transpose(blk, (0, 2, 3, 1))                    # (co, ky, kx, ci)
    w = w.at[:, :, :, :Cin].set(blk)
    return w.reshape(seg_dim, 9 * Crow_l)


# ---------------------------------------------------------------------------
# Full Aggregator forward.
# ---------------------------------------------------------------------------
@functools.partial(jax.jit, static_argnames=("size", "num_head"))
def aggregator_forward(x, size, num_head, params):
    """x: (B, N, C) with N = H*W, C = 5*seg_dim, B % 3 == 0."""
    H, W = size
    B, N, C = x.shape
    assert N == H * W and B % 3 == 0 and C % SEG == 0
    seg_dim = C // SEG
    Bl = B // 3
    Cg = 4 * seg_dim
    assert Cg % num_head == 0

    xc = jnp.transpose(x, (0, 2, 1)).astype(jnp.float32)       # (B, C, N) channel-major

    scales, biases = [], []
    for i in range(4):
        s, b = _fold_bn(params[f"norm{i}_g"].astype(jnp.float32),
                        params[f"norm{i}_b"].astype(jnp.float32),
                        params[f"norm{i}_m"].astype(jnp.float32),
                        params[f"norm{i}_v"].astype(jnp.float32))
        scales.append(s)
        biases.append(b)

    # ---------------- global branches (groups 0..3) ----------------
    Crow_g = _round_up(Cg, 8)
    Hp, Wp = H + 6, W + 6
    Np_g = Hp * Wp
    Np_pad_g = _round_up(Np_g, 128)
    # roll-wraparound safety (see kernel comment)
    assert (H - 1 + 6) * Wp + (W - 1 + 6) < Np_pad_g

    xg = xc[:, :Cg, :].reshape(B, Cg, H, W)
    if Crow_g > Cg:
        xg = jnp.pad(xg, ((0, 0), (0, Crow_g - Cg), (0, 0), (0, 0)))
    xg = jnp.pad(xg, ((0, 0), (0, 0), (3, 3), (3, 3))).reshape(B, Crow_g, Np_g)
    xg = jnp.pad(xg, ((0, 0), (0, 0), (0, Np_pad_g - Np_g)))   # lane-dense

    wc_g = _build_global_weight(params, scales, seg_dim, Crow_g)
    bias_g = jnp.concatenate(biases).reshape(Cg, 1).astype(jnp.float32)

    yg = _global_branch(xg, wc_g, bias_g, Wp, Np_pad_g)        # (B, Cg, Np_pad_g)
    yg = yg[:, :, :Np_g].reshape(B, Cg, Hp, Wp)[:, :, :H, :W].reshape(B, Cg, N)
    out = yg.reshape(3, Bl, num_head, Cg // num_head, N).transpose(0, 1, 2, 4, 3)

    # ---------------- local branch (Agg0 on regrouped group 4) ----------------
    Cl = 3 * seg_dim
    Crow_l = _round_up(Cl, 8)
    Hpl, Wpl = H + 2, W + 2
    Np_l = Hpl * Wpl
    Np_pad_l = _round_up(Np_l, 128)
    assert (H - 1 + 2) * Wpl + (W - 1 + 2) < Np_pad_l

    x4 = xc[:, Cg:, :].reshape(B, seg_dim, H, W)
    xl = x4.reshape(3, Bl, seg_dim, H, W).transpose(1, 0, 2, 3, 4).reshape(Bl, Cl, H, W)
    if Crow_l > Cl:
        xl = jnp.pad(xl, ((0, 0), (0, Crow_l - Cl), (0, 0), (0, 0)))
    xl = jnp.pad(xl, ((0, 0), (0, 0), (1, 1), (1, 1))).reshape(Bl, Crow_l, Np_l)
    xl = jnp.pad(xl, ((0, 0), (0, 0), (0, Np_pad_l - Np_l)))

    wc_l = _build_local_weight(params["agg0_dw"], params["agg0_pw"], seg_dim, Crow_l)
    gamma = params["agg0_ln_g"].reshape(seg_dim, 1).astype(jnp.float32)
    beta = params["agg0_ln_b"].reshape(seg_dim, 1).astype(jnp.float32)

    yl = _local_branch(xl, wc_l, gamma, beta, Wpl, Np_pad_l, seg_dim)  # (Bl, seg, Np_pad_l)
    yl = yl[:, :, :Np_l].reshape(Bl, seg_dim, Hpl, Wpl)[:, :, :H, :W].reshape(Bl, seg_dim, N)
    x_local = jnp.transpose(yl, (0, 2, 1))                     # (Bl, N, seg_dim)

    return out, x_local


# ---------------------------------------------------------------------------
# Pure-JAX reference (mirrors the PyTorch module), for the correctness check.
# ---------------------------------------------------------------------------
def _sepconv_ref(x, w_dw, w_pw, K):
    Cin = x.shape[1]
    p = (K - 1) // 2
    dw = jax.lax.conv_general_dilated(
        x, w_dw[:, None, :, :], window_strides=(1, 1),
        padding=[(p, p), (p, p)], feature_group_count=Cin,
        dimension_numbers=("NCHW", "OIHW", "NCHW"), precision="highest")
    return jnp.einsum("bchw,dc->bdhw", dw, w_pw, precision="highest")


def _bn_ref(x, g, b, m, v):
    inv = 1.0 / jnp.sqrt(v + BN_EPS)
    return (x - m[None, :, None, None]) * inv[None, :, None, None] \
        * g[None, :, None, None] + b[None, :, None, None]


def aggregator_reference(x, size, num_head, params):
    H, W = size
    B, N, C = x.shape
    seg_dim = C // SEG
    Bl = B // 3
    xi = jnp.transpose(x, (0, 2, 1)).reshape(B, C, H, W)
    xs = [xi[:, i * seg_dim:(i + 1) * seg_dim] for i in range(SEG)]

    xl = xs[4].reshape(3, Bl, seg_dim, H, W).transpose(1, 0, 2, 3, 4).reshape(Bl, 3 * seg_dim, H, W)
    y = _sepconv_ref(xl, params["agg0_dw"], params["agg0_pw"], 3)
    y = y.reshape(Bl, seg_dim, H * W).transpose(0, 2, 1)
    mean = y.mean(-1, keepdims=True)
    var = ((y - mean) ** 2).mean(-1, keepdims=True)
    y = (y - mean) / jnp.sqrt(var + LN_EPS) * params["agg0_ln_g"] + params["agg0_ln_b"]
    x_local = _hardswish(y)

    x0 = _hardswish(_bn_ref(xs[0], params["norm0_g"], params["norm0_b"],
                            params["norm0_m"], params["norm0_v"]))
    x1 = _hardswish(_bn_ref(_sepconv_ref(xs[1], params["agg1_dw"], params["agg1_pw"], 3),
                            params["norm1_g"], params["norm1_b"], params["norm1_m"], params["norm1_v"]))
    x2 = _hardswish(_bn_ref(_sepconv_ref(xs[2], params["agg2_dw"], params["agg2_pw"], 5),
                            params["norm2_g"], params["norm2_b"], params["norm2_m"], params["norm2_v"]))
    x3 = _hardswish(_bn_ref(_sepconv_ref(xs[3], params["agg3_dw"], params["agg3_pw"], 7),
                            params["norm3_g"], params["norm3_b"], params["norm3_m"], params["norm3_v"]))
    xcat = jnp.concatenate([x0, x1, x2, x3], axis=1)
    Cp = 4 * seg_dim
    out = xcat.reshape(3, Bl, num_head, Cp // num_head, H * W).transpose(0, 1, 2, 4, 3)
    return out, x_local


if __name__ == "__main__":
    dim = 20                    # Aggregator(dim); seg=5 -> seg_dim = 4
    seg_dim = dim // SEG
    B, H, W = 6, 16, 16         # B must be divisible by 3
    N = H * W
    num_head = 4                # must divide 4 * seg_dim = 16

    key = jax.random.PRNGKey(0)
    ks = iter(jax.random.split(key, 32))

    x = jax.random.normal(next(ks), (B, N, dim), jnp.float32)

    params = {
        # Agg0: SeparableConv2d(3*seg_dim -> seg_dim, k=3) + LayerNorm(seg_dim)
        "agg0_dw": 0.1 * jax.random.normal(next(ks), (3 * seg_dim, 3, 3), jnp.float32),
        "agg0_pw": 0.1 * jax.random.normal(next(ks), (seg_dim, 3 * seg_dim), jnp.float32),
        "agg0_ln_g": 1.0 + 0.05 * jax.random.normal(next(ks), (seg_dim,), jnp.float32),
        "agg0_ln_b": 0.05 * jax.random.normal(next(ks), (seg_dim,), jnp.float32),
    }
    for i, kk in zip((1, 2, 3), (3, 5, 7)):
        params[f"agg{i}_dw"] = 0.1 * jax.random.normal(next(ks), (seg_dim, kk, kk), jnp.float32)
        params[f"agg{i}_pw"] = 0.1 * jax.random.normal(next(ks), (seg_dim, seg_dim), jnp.float32)
    for i in range(4):
        params[f"norm{i}_g"] = 1.0 + 0.05 * jax.random.normal(next(ks), (seg_dim,), jnp.float32)
        params[f"norm{i}_b"] = 0.05 * jax.random.normal(next(ks), (seg_dim,), jnp.float32)
        params[f"norm{i}_m"] = 0.1 * jax.random.normal(next(ks), (seg_dim,), jnp.float32)
        params[f"norm{i}_v"] = 1.0 + 0.1 * jax.random.uniform(next(ks), (seg_dim,), jnp.float32)

    out, x_local = aggregator_forward(x, size=(H, W), num_head=num_head, params=params)
    out = jax.block_until_ready(out)
    x_local = jax.block_until_ready(x_local)

    ref_out, ref_local = aggregator_reference(x, (H, W), num_head, params)

    assert out.shape == (3, B // 3, num_head, N, (4 * seg_dim) // num_head)
    assert x_local.shape == (B // 3, N, seg_dim)
    assert jnp.allclose(out, ref_out, atol=2e-3, rtol=2e-3), \
        float(jnp.max(jnp.abs(out - ref_out)))
    assert jnp.allclose(x_local, ref_local, atol=2e-3, rtol=2e-3), \
        float(jnp.max(jnp.abs(x_local - ref_local)))

    print("KERNEL_OK")
</pallas_src>

<mosaic_0001>
module attributes {stable_mosaic.version = 11 : i64} {
  func.func @kernel(%arg0: i32, %arg1: memref<1x16x512xf32, #tpu.memory_space<vmem>>, %arg2: memref<16x784xf32, #tpu.memory_space<vmem>>, %arg3: memref<16x1xf32, #tpu.memory_space<vmem>>, %arg4: memref<1x16x512xf32, #tpu.memory_space<vmem>>, %arg5: memref<784x512xf32, #tpu.memory_space<vmem>>) attributes {dimension_semantics = [#tpu.dimension_semantics<parallel>], iteration_bounds = array<i64: 6>, scalar_prefetch = 0 : i64, scratch_operands = 1 : i64, tpu.core_type = #tpu.core_type<tc>, window_params = [{transform_indices = @transform_0, window_bounds = array<i64: 1, 16, 512>}, {pipeline_mode = #tpu.pipeline_mode<synchronous>, transform_indices = @transform_1, window_bounds = array<i64: 16, 784>}, {pipeline_mode = #tpu.pipeline_mode<synchronous>, transform_indices = @transform_2, window_bounds = array<i64: 16, 1>}, {transform_indices = @transform_3, window_bounds = array<i64: 1, 16, 512>}]} {
    %c0 = arith.constant 0 : index
    %c0_0 = arith.constant 0 : index
    %c0_1 = arith.constant 0 : index
    %0 = vector.load %arg1[%c0, %c0_0, %c0_1] : memref<1x16x512xf32, #tpu.memory_space<vmem>>, vector<1x16x512xf32>
    %1 = vector.shape_cast %0 : vector<1x16x512xf32> to vector<16x512xf32>
    %c0_2 = arith.constant 0 : index
    %c0_3 = arith.constant 0 : index
    %2 = vector.load %arg5[%c0_2, %c0_3] : memref<784x512xf32, #tpu.memory_space<vmem>>, vector<16x512xf32>
    tpu.vector_store %arg5[%c0_2, %c0_3], %1 {strides = array<i32>} : memref<784x512xf32, #tpu.memory_space<vmem>>, vector<16x512xf32>,
    %c511_i32 = arith.constant 511 : i32
    %3 = tpu.dynamic_rotate %1 by %c511_i32 dim 1 : vector<16x512xf32>, i32 -> vector<16x512xf32>
    %c16 = arith.constant 16 : index
    %c0_4 = arith.constant 0 : index
    %4 = vector.load %arg5[%c16, %c0_4] : memref<784x512xf32, #tpu.memory_space<vmem>>, vector<16x512xf32>
    tpu.vector_store %arg5[%c16, %c0_4], %3 {strides = array<i32>} : memref<784x512xf32, #tpu.memory_space<vmem>>, vector<16x512xf32>,
    %c510_i32 = arith.constant 510 : i32
    %5 = tpu.dynamic_rotate %1 by %c510_i32 dim 1 : vector<16x512xf32>, i32 -> vector<16x512xf32>
    %c32 = arith.constant 32 : index
    %c0_5 = arith.constant 0 : index
    %6 = vector.load %arg5[%c32, %c0_5] : memref<784x512xf32, #tpu.memory_space<vmem>>, vector<16x512xf32>
    tpu.vector_store %arg5[%c32, %c0_5], %5 {strides = array<i32>} : memref<784x512xf32, #tpu.memory_space<vmem>>, vector<16x512xf32>,
    %c509_i32 = arith.constant 509 : i32
    %7 = tpu.dynamic_rotate %1 by %c509_i32 dim 1 : vector<16x512xf32>, i32 -> vector<16x512xf32>
    %c48 = arith.constant 48 : index
    %c0_6 = arith.constant 0 : index
    %8 = vector.load %arg5[%c48, %c0_6] : memref<784x512xf32, #tpu.memory_space<vmem>>, vector<16x512xf32>
    tpu.vector_store %arg5[%c48, %c0_6], %7 {strides = array<i32>} : memref<784x512xf32, #tpu.memory_space<vmem>>, vector<16x512xf32>,
    %c508_i32 = arith.constant 508 : i32
    %9 = tpu.dynamic_rotate %1 by %c508_i32 dim 1 : vector<16x512xf32>, i32 -> vector<16x512xf32>
    %c64 = arith.constant 64 : index
    %c0_7 = arith.constant 0 : index
    %10 = vector.load %arg5[%c64, %c0_7] : memref<784x512xf32, #tpu.memory_space<vmem>>, vector<16x512xf32>
    tpu.vector_store %arg5[%c64, %c0_7], %9 {strides = array<i32>} : memref<784x512xf32, #tpu.memory_space<vmem>>, vector<16x512xf32>,
    %c507_i32 = arith.constant 507 : i32
    %11 = tpu.dynamic_rotate %1 by %c507_i32 dim 1 : vector<16x512xf32>, i32 -> vector<16x512xf32>
    %c80 = arith.constant 80 : index
    %c0_8 = arith.constant 0 : index
    %12 = vector.load %arg5[%c80, %c0_8] : memref<784x512xf32, #tpu.memory_space<vmem>>, vector<16x512xf32>
    tpu.vector_store %arg5[%c80, %c0_8], %11 {strides = array<i32>} : memref<784x512xf32, #tpu.memory_space<vmem>>, vector<16x512xf32>,
    %c506_i32 = arith.constant 506 : i32
    %13 = tpu.dynamic_rotate %1 by %c506_i32 dim 1 : vector<16x512xf32>, i32 -> vector<16x512xf32>
    %c96 = arith.constant 96 : index
    %c0_9 = arith.constant 0 : index
    %14 = vector.load %arg5[%c96, %c0_9] : memref<784x512xf32, #tpu.memory_space<vmem>>, vector<16x512xf32>
    tpu.vector_store %arg5[%c96, %c0_9], %13 {strides = array<i32>} : memref<784x512xf32, #tpu.memory_space<vmem>>, vector<16x512xf32>,
    %c490_i32 = arith.constant 490 : i32
    %15 = tpu.dynamic_rotate %1 by %c490_i32 dim 1 : vector<16x512xf32>, i32 -> vector<16x512xf32>
    %c112 = arith.constant 112 : index
    %c0_10 = arith.constant 0 : index
    %16 = vector.load %arg5[%c112, %c0_10] : memref<784x512xf32, #tpu.memory_space<vmem>>, vector<16x512xf32>
    tpu.vector_store %arg5[%c112, %c0_10], %15 {strides = array<i32>} : memref<784x512xf32, #tpu.memory_space<vmem>>, vector<16x512xf32>,
    %c489_i32 = arith.constant 489 : i32
    %17 = tpu.dynamic_rotate %1 by %c489_i32 dim 1 : vector<16x512xf32>, i32 -> vector<16x512xf32>
    %c128 = arith.constant 128 : index
    %c0_11 = arith.constant 0 : index
    %18 = vector.load %arg5[%c128, %c0_11] : memref<784x512xf32, #tpu.memory_space<vmem>>, vector<16x512xf32>
    tpu.vector_store %arg5[%c128, %c0_11], %17 {strides = array<i32>} : memref<784x512xf32, #tpu.memory_space<vmem>>, vector<16x512xf32>,
    %c488_i32 = arith.constant 488 : i32
    %19 = tpu.dynamic_rotate %1 by %c488_i32 dim 1 : vector<16x512xf32>, i32 -> vector<16x512xf32>
    %c144 = arith.constant 144 : index
    %c0_12 = arith.constant 0 : index
    %20 = vector.load %arg5[%c144, %c0_12] : memref<784x512xf32, #tpu.memory_space<vmem>>, vector<16x512xf32>
    tpu.vector_store %arg5[%c144, %c0_12], %19 {strides = array<i32>} : memref<784x512xf32, #tpu.memory_space<vmem>>, vector<16x512xf32>,
    %c487_i32 = arith.constant 487 : i32
    %21 = tpu.dynamic_rotate %1 by %c487_i32 dim 1 : vector<16x512xf32>, i32 -> vector<16x512xf32>
    %c160 = arith.constant 160 : index
    %c0_13 = arith.constant 0 : index
    %22 = vector.load %arg5[%c160, %c0_13] : memref<784x512xf32, #tpu.memory_space<vmem>>, vector<16x512xf32>
    tpu.vector_store %arg5[%c160, %c0_13], %21 {strides = array<i32>} : memref<784x512xf32, #tpu.memory_space<vmem>>, vector<16x512xf32>,
    %c486_i32 = arith.constant 486 : i32
    %23 = tpu.dynamic_rotate %1 by %c486_i32 dim 1 : vector<16x512xf32>, i32 -> vector<16x512xf32>
    %c176 = arith.constant 176 : index
    %c0_14 = arith.constant 0 : index
    %24 = vector.load %arg5[%c176, %c0_14] : memref<784x512xf32, #tpu.memory_space<vmem>>, vector<16x512xf32>
    tpu.vector_store %arg5[%c176, %c0_14], %23 {strides = array<i32>} : memref<784x512xf32, #tpu.memory_space<vmem>>, vector<16x512xf32>,
    %c485_i32 = arith.constant 485 : i32
    %25 = tpu.dynamic_rotate %1 by %c485_i32 dim 1 : vector<16x512xf32>, i32 -> vector<16x512xf32>
    %c192 = arith.constant 192 : index
    %c0_15 = arith.constant 0 : index
    %26 = vector.load %arg5[%c192, %c0_15] : memref<784x512xf32, #tpu.memory_space<vmem>>, vector<16x512xf32>
    tpu.vector_store %arg5[%c192, %c0_15], %25 {strides = array<i32>} : memref<784x512xf32, #tpu.memory_space<vmem>>, vector<16x512xf32>,
    %c484_i32 = arith.constant 484 : i32
    %27 = tpu.dynamic_rotate %1 by %c484_i32 dim 1 : vector<16x512xf32>, i32 -> vector<16x512xf32>
    %c208 = arith.constant 208 : index
    %c0_16 = arith.constant 0 : index
    %28 = vector.load %arg5[%c208, %c0_16] : memref<784x512xf32, #tpu.memory_space<vmem>>, vector<16x512xf32>
    tpu.vector_store %arg5[%c208, %c0_16], %27 {strides = array<i32>} : memref<784x512xf32, #tpu.memory_space<vmem>>, vector<16x512xf32>,
    %c468_i32 = arith.constant 468 : i32
    %29 = tpu.dynamic_rotate %1 by %c468_i32 dim 1 : vector<16x512xf32>, i32 -> vector<16x512xf32>
    %c224 = arith.constant 224 : index
    %c0_17 = arith.constant 0 : index
    %30 = vector.load %arg5[%c224, %c0_17] : memref<784x512xf32, #tpu.memory_space<vmem>>, vector<16x512xf32>
    tpu.vector_store %arg5[%c224, %c0_17], %29 {strides = array<i32>} : memref<784x512xf32, #tpu.memory_space<vmem>>, vector<16x512xf32>,
    %c467_i32 = arith.constant 467 : i32
    %31 = tpu.dynamic_rotate %1 by %c467_i32 dim 1 : vector<16x512xf32>, i32 -> vector<16x512xf32>
    %c240 = arith.constant 240 : index
    %c0_18 = arith.constant 0 : index
    %32 = vector.load %arg5[%c240, %c0_18] : memref<784x512xf32, #tpu.memory_space<vmem>>, vector<16x512xf32>
    tpu.vector_store %arg5[%c240, %c0_18], %31 {strides = array<i32>} : memref<784x512xf32, #tpu.memory_space<vmem>>, vector<16x512xf32>,
    %c466_i32 = arith.constant 466 : i32
    %33 = tpu.dynamic_rotate %1 by %c466_i32 dim 1 : vector<16x512xf32>, i32 -> vector<16x512xf32>
    %c256 = arith.constant 256 : index
    %c0_19 = arith.constant 0 : index
    %34 = vector.load %arg5[%c256, %c0_19] : memref<784x512xf32, #tpu.memory_space<vmem>>, vector<16x512xf32>
    tpu.vector_store %arg5[%c256, %c0_19], %33 {strides = array<i32>} : memref<784x512xf32, #tpu.memory_space<vmem>>, vector<16x512xf32>,
    %c465_i32 = arith.constant 465 : i32
    %35 = tpu.dynamic_rotate %1 by %c465_i32 dim 1 : vector<16x512xf32>, i32 -> vector<16x512xf32>
    %c272 = arith.constant 272 : index
    %c0_20 = arith.constant 0 : index
    %36 = vector.load %arg5[%c272, %c0_20] : memref<784x512xf32, #tpu.memory_space<vmem>>, vector<16x512xf32>
    tpu.vector_store %arg5[%c272, %c0_20], %35 {strides = array<i32>} : memref<784x512xf32, #tpu.memory_space<vmem>>, vector<16x512xf32>,
    %c464_i32 = arith.constant 464 : i32
    %37 = tpu.dynamic_rotate %1 by %c464_i32 dim 1 : vector<16x512xf32>, i32 -> vector<16x512xf32>
    %c288 = arith.constant 288 : index
    %c0_21 = arith.constant 0 : index
    %38 = vector.load %arg5[%c288, %c0_21] : memref<784x512xf32, #tpu.memory_space<vmem>>, vector<16x512xf32>
    tpu.vector_store %arg5[%c288, %c0_21], %37 {strides = array<i32>} : memref<784x512xf32, #tpu.memory_space<vmem>>, vector<16x512xf32>,
    %c463_i32 = arith.constant 463 : i32
    %39 = tpu.dynamic_rotate %1 by %c463_i32 dim 1 : vector<16x512xf32>, i32 -> vector<16x512xf32>
    %c304 = arith.constant 304 : index
    %c0_22 = arith.constant 0 : index
    %40 = vector.load %arg5[%c304, %c0_22] : memref<784x512xf32, #tpu.memory_space<vmem>>, vector<16x512xf32>
    tpu.vector_store %arg5[%c304, %c0_22], %39 {strides = array<i32>} : memref<784x512xf32, #tpu.memory_space<vmem>>, vector<16x512xf32>,
    %c462_i32 = arith.constant 462 : i32
    %41 = tpu.dynamic_rotate %1 by %c462_i32 dim 1 : vector<16x512xf32>, i32 -> vector<16x512xf32>
    %c320 = arith.constant 320 : index
    %c0_23 = arith.constant 0 : index
    %42 = vector.load %arg5[%c320, %c0_23] : memref<784x512xf32, #tpu.memory_space<vmem>>, vector<16x512xf32>
    tpu.vector_store %arg5[%c320, %c0_23], %41 {strides = array<i32>} : memref<784x512xf32, #tpu.memory_space<vmem>>, vector<16x512xf32>,
    %c446_i32 = arith.constant 446 : i32
    %43 = tpu.dynamic_rotate %1 by %c446_i32 dim 1 : vector<16x512xf32>, i32 -> vector<16x512xf32>
    %c336 = arith.constant 336 : index
    %c0_24 = arith.constant 0 : index
    %44 = vector.load %arg5[%c336, %c0_24] : memref<784x512xf32, #tpu.memory_space<vmem>>, vector<16x512xf32>
    tpu.vector_store %arg5[%c336, %c0_24], %43 {strides = array<i32>} : memref<784x512xf32, #tpu.memory_space<vmem>>, vector<16x512xf32>,
    %c445_i32 = arith.constant 445 : i32
    %45 = tpu.dynamic_rotate %1 by %c445_i32 dim 1 : vector<16x512xf32>, i32 -> vector<16x512xf32>
    %c352 = arith.constant 352 : index
    %c0_25 = arith.constant 0 : index
    %46 = vector.load %arg5[%c352, %c0_25] : memref<784x512xf32, #tpu.memory_space<vmem>>, vector<16x512xf32>
    tpu.vector_store %arg5[%c352, %c0_25], %45 {strides = array<i32>} : memref<784x512xf32, #tpu.memory_space<vmem>>, vector<16x512xf32>,
    %c444_i32 = arith.constant 444 : i32
    %47 = tpu.dynamic_rotate %1 by %c444_i32 dim 1 : vector<16x512xf32>, i32 -> vector<16x512xf32>
    %c368 = arith.constant 368 : index
    %c0_26 = arith.constant 0 : index
    %48 = vector.load %arg5[%c368, %c0_26] : memref<784x512xf32, #tpu.memory_space<vmem>>, vector<16x512xf32>
    tpu.vector_store %arg5[%c368, %c0_26], %47 {strides = array<i32>} : memref<784x512xf32, #tpu.memory_space<vmem>>, vector<16x512xf32>,
    %c443_i32 = arith.constant 443 : i32
    %49 = tpu.dynamic_rotate %1 by %c443_i32 dim 1 : vector<16x512xf32>, i32 -> vector<16x512xf32>
    %c384 = arith.constant 384 : index
    %c0_27 = arith.constant 0 : index
    %50 = vector.load %arg5[%c384, %c0_27] : memref<784x512xf32, #tpu.memory_space<vmem>>, vector<16x512xf32>
    tpu.vector_store %arg5[%c384, %c0_27], %49 {strides = array<i32>} : memref<784x512xf32, #tpu.memory_space<vmem>>, vector<16x512xf32>,
    %c442_i32 = arith.constant 442 : i32
    %51 = tpu.dynamic_rotate %1 by %c442_i32 dim 1 : vector<16x512xf32>, i32 -> vector<16x512xf32>
    %c400 = arith.constant 400 : index
    %c0_28 = arith.constant 0 : index
    %52 = vector.load %arg5[%c400, %c0_28] : memref<784x512xf32, #tpu.memory_space<vmem>>, vector<16x512xf32>
    tpu.vector_store %arg5[%c400, %c0_28], %51 {strides = array<i32>} : memref<784x512xf32, #tpu.memory_space<vmem>>, vector<16x512xf32>,
    %c441_i32 = arith.constant 441 : i32
    %53 = tpu.dynamic_rotate %1 by %c441_i32 dim 1 : vector<16x512xf32>, i32 -> vector<16x512xf32>
    %c416 = arith.constant 416 : index
    %c0_29 = arith.constant 0 : index
    %54 = vector.load %arg5[%c416, %c0_29] : memref<784x512xf32, #tpu.memory_space<vmem>>, vector<16x512xf32>
    tpu.vector_store %arg5[%c416, %c0_29], %53 {strides = array<i32>} : memref<784x512xf32, #tpu.memory_space<vmem>>, vector<16x512xf32>,
    %c440_i32 = arith.constant 440 : i32
    %55 = tpu.dynamic_rotate %1 by %c440_i32 dim 1 : vector<16x512xf32>, i32 -> vector<16x512xf32>
    %c432 = arith.constant 432 : index
    %c0_30 = arith.constant 0 : index
    %56 = vector.load %arg5[%c432, %c0_30] : memref<784x512xf32, #tpu.memory_space<vmem>>, vector<16x512xf32>
    tpu.vector_store %arg5[%c432, %c0_30], %55 {strides = array<i32>} : memref<784x512xf32, #tpu.memory_space<vmem>>, vector<16x512xf32>,
    %c424_i32 = arith.constant 424 : i32
    %57 = tpu.dynamic_rotate %1 by %c424_i32 dim 1 : vector<16x512xf32>, i32 -> vector<16x512xf32>
    %c448 = arith.constant 448 : index
    %c0_31 = arith.constant 0 : index
    %58 = vector.load %arg5[%c448, %c0_31] : memref<784x512xf32, #tpu.memory_space<vmem>>, vector<16x512xf32>
    tpu.vector_store %arg5[%c448, %c0_31], %57 {strides = array<i32>} : memref<784x512xf32, #tpu.memory_space<vmem>>, vector<16x512xf32>,
    %c423_i32 = arith.constant 423 : i32
    %59 = tpu.dynamic_rotate %1 by %c423_i32 dim 1 : vector<16x512xf32>, i32 -> vector<16x512xf32>
    %c464 = arith.constant 464 : index
    %c0_32 = arith.constant 0 : index
    %60 = vector.load %arg5[%c464, %c0_32] : memref<784x512xf32, #tpu.memory_space<vmem>>, vector<16x512xf32>
    tpu.vector_store %arg5[%c464, %c0_32], %59 {strides = array<i32>} : memref<784x512xf32, #tpu.memory_space<vmem>>, vector<16x512xf32>,
    %c422_i32 = arith.constant 422 : i32
    %61 = tpu.dynamic_rotate %1 by %c422_i32 dim 1 : vector<16x512xf32>, i32 -> vector<16x512xf32>
    %c480 = arith.constant 480 : index
    %c0_33 = arith.constant 0 : index
    %62 = vector.load %arg5[%c480, %c0_33] : memref<784x512xf32, #tpu.memory_space<vmem>>, vector<16x512xf32>
    tpu.vector_store %arg5[%c480, %c0_33], %61 {strides = array<i32>} : memref<784x512xf32, #tpu.memory_space<vmem>>, vector<16x512xf32>,
    %c421_i32 = arith.constant 421 : i32
    %63 = tpu.dynamic_rotate %1 by %c421_i32 dim 1 : vector<16x512xf32>, i32 -> vector<16x512xf32>
    %c496 = arith.constant 496 : index
    %c0_34 = arith.constant 0 : index
    %64 = vector.load %arg5[%c496, %c0_34] : memref<784x512xf32, #tpu.memory_space<vmem>>, vector<16x512xf32>
    tpu.vector_store %arg5[%c496, %c0_34], %63 {strides = array<i32>} : memref<784x512xf32, #tpu.memory_space<vmem>>, vector<16x512xf32>,
    %c420_i32 = arith.constant 420 : i32
    %65 = tpu.dynamic_rotate %1 by %c420_i32 dim 1 : vector<16x512xf32>, i32 -> vector<16x512xf32>
    %c512 = arith.constant 512 : index
    %c0_35 = arith.constant 0 : index
    %66 = vector.load %arg5[%c512, %c0_35] : memref<784x512xf32, #tpu.memory_space<vmem>>, vector<16x512xf32>
    tpu.vector_store %arg5[%c512, %c0_35], %65 {strides = array<i32>} : memref<784x512xf32, #tpu.memory_space<vmem>>, vector<16x512xf32>,
    %c419_i32 = arith.constant 419 : i32
    %67 = tpu.dynamic_rotate %1 by %c419_i32 dim 1 : vector<16x512xf32>, i32 -> vector<16x512xf32>
    %c528 = arith.constant 528 : index
    %c0_36 = arith.constant 0 : index
    %68 = vector.load %arg5[%c528, %c0_36] : memref<784x512xf32, #tpu.memory_space<vmem>>, vector<16x512xf32>
    tpu.vector_store %arg5[%c528, %c0_36], %67 {strides = array<i32>} : memref<784x512xf32, #tpu.memory_space<vmem>>, vector<16x512xf32>,
    %c418_i32 = arith.constant 418 : i32
    %69 = tpu.dynamic_rotate %1 by %c418_i32 dim 1 : vector<16x512xf32>, i32 -> vector<16x512xf32>
    %c544 = arith.constant 544 : index
    %c0_37 = arith.constant 0 : index
    %70 = vector.load %arg5[%c544, %c0_37] : memref<784x512xf32, #tpu.memory_space<vmem>>, vector<16x512xf32>
    tpu.vector_store %arg5[%c544, %c0_37], %69 {strides = array<i32>} : memref<784x512xf32, #tpu.memory_space<vmem>>, vector<16x512xf32>,
    %c402_i32 = arith.constant 402 : i32
    %71 = tpu.dynamic_rotate %1 by %c402_i32 dim 1 : vector<16x512xf32>, i32 -> vector<16x512xf32>
    %c560 = arith.constant 560 : index
    %c0_38 = arith.constant 0 : index
    %72 = vector.load %arg5[%c560, %c0_38] : memref<784x512xf32, #tpu.memory_space<vmem>>, vector<16x512xf32>
    tpu.vector_store %arg5[%c560, %c0_38], %71 {strides = array<i32>} : memref<784x512xf32, #tpu.memory_space<vmem>>, vector<16x512xf32>,
    %c401_i32 = arith.constant 401 : i32
    %73 = tpu.dynamic_rotate %1 by %c401_i32 dim 1 : vector<16x512xf32>, i32 -> vector<16x512xf32>
    %c576 = arith.constant 576 : index
    %c0_39 = arith.constant 0 : index
    %74 = vector.load %arg5[%c576, %c0_39] : memref<784x512xf32, #tpu.memory_space<vmem>>, vector<16x512xf32>
    tpu.vector_store %arg5[%c576, %c0_39], %73 {strides = array<i32>} : memref<784x512xf32, #tpu.memory_space<vmem>>, vector<16x512xf32>,
    %c400_i32 = arith.constant 400 : i32
    %75 = tpu.dynamic_rotate %1 by %c400_i32 dim 1 : vector<16x512xf32>, i32 -> vector<16x512xf32>
    %c592 = arith.constant 592 : index
    %c0_40 = arith.constant 0 : index
    %76 = vector.load %arg5[%c592, %c0_40] : memref<784x512xf32, #tpu.memory_space<vmem>>, vector<16x512xf32>
    tpu.vector_store %arg5[%c592, %c0_40], %75 {strides = array<i32>} : memref<784x512xf32, #tpu.memory_space<vmem>>, vector<16x512xf32>,
    %c399_i32 = arith.constant 399 : i32
    %77 = tpu.dynamic_rotate %1 by %c399_i32 dim 1 : vector<16x512xf32>, i32 -> vector<16x512xf32>
    %c608 = arith.constant 608 : index
    %c0_41 = arith.constant 0 : index
    %78 = vector.load %arg5[%c608, %c0_41] : memref<784x512xf32, #tpu.memory_space<vmem>>, vector<16x512xf32>
    tpu.vector_store %arg5[%c608, %c0_41], %77 {strides = array<i32>} : memref<784x512xf32, #tpu.memory_space<vmem>>, vector<16x512xf32>,
    %c398_i32 = arith.constant 398 : i32
    %79 = tpu.dynamic_rotate %1 by %c398_i32 dim 1 : vector<16x512xf32>, i32 -> vector<16x512xf32>
    %c624 = arith.constant 624 : index
    %c0_42 = arith.constant 0 : index
    %80 = vector.load %arg5[%c624, %c0_42] : memref<784x512xf32, #tpu.memory_space<vmem>>, vector<16x512xf32>
    tpu.vector_store %arg5[%c624, %c0_42], %79 {strides = array<i32>} : memref<784x512xf32, #tpu.memory_space<vmem>>, vector<16x512xf32>,
    %c397_i32 = arith.constant 397 : i32
    %81 = tpu.dynamic_rotate %1 by %c397_i32 dim 1 : vector<16x512xf32>, i32 -> vector<16x512xf32>
    %c640 = arith.constant 640 : index
    %c0_43 = arith.constant 0 : index
    %82 = vector.load %arg5[%c640, %c0_43] : memref<784x512xf32, #tpu.memory_space<vmem>>, vector<16x512xf32>
    tpu.vector_store %arg5[%c640, %c0_43], %81 {strides = array<i32>} : memref<784x512xf32, #tpu.memory_space<vmem>>, vector<16x512xf32>,
    %c396_i32 = arith.constant 396 : i32
    %83 = tpu.dynamic_rotate %1 by %c396_i32 dim 1 : vector<16x512xf32>, i32 -> vector<16x512xf32>
    %c656 = arith.constant 656 : index
    %c0_44 = arith.constant 0 : index
    %84 = vector.load %arg5[%c656, %c0_44] : memref<784x512xf32, #tpu.memory_space<vmem>>, vector<16x512xf32>
    tpu.vector_store %arg5[%c656, %c0_44], %83 {strides = array<i32>} : memref<784x512xf32, #tpu.memory_space<vmem>>, vector<16x512xf32>,
    %c380_i32 = arith.constant 380 : i32
    %85 = tpu.dynamic_rotate %1 by %c380_i32 dim 1 : vector<16x512xf32>, i32 -> vector<16x512xf32>
    %c672 = arith.constant 672 : index
    %c0_45 = arith.constant 0 : index
    %86 = vector.load %arg5[%c672, %c0_45] : memref<784x512xf32, #tpu.memory_space<vmem>>, vector<16x512xf32>
    tpu.vector_store %arg5[%c672, %c0_45], %85 {strides = array<i32>} : memref<784x512xf32, #tpu.memory_space<vmem>>, vector<16x512xf32>,
    %c379_i32 = arith.constant 379 : i32
    %87 = tpu.dynamic_rotate %1 by %c379_i32 dim 1 : vector<16x512xf32>, i32 -> vector<16x512xf32>
    %c688 = arith.constant 688 : index
    %c0_46 = arith.constant 0 : index
    %88 = vector.load %arg5[%c688, %c0_46] : memref<784x512xf32, #tpu.memory_space<vmem>>, vector<16x512xf32>
    tpu.vector_store %arg5[%c688, %c0_46], %87 {strides = array<i32>} : memref<784x512xf32, #tpu.memory_space<vmem>>, vector<16x512xf32>,
    %c378_i32 = arith.constant 378 : i32
    %89 = tpu.dynamic_rotate %1 by %c378_i32 dim 1 : vector<16x512xf32>, i32 -> vector<16x512xf32>
    %c704 = arith.constant 704 : index
    %c0_47 = arith.constant 0 : index
    %90 = vector.load %arg5[%c704, %c0_47] : memref<784x512xf32, #tpu.memory_space<vmem>>, vector<16x512xf32>
    tpu.vector_store %arg5[%c704, %c0_47], %89 {strides = array<i32>} : memref<784x512xf32, #tpu.memory_space<vmem>>, vector<16x512xf32>,
    %c377_i32 = arith.constant 377 : i32
    %91 = tpu.dynamic_rotate %1 by %c377_i32 dim 1 : vector<16x512xf32>, i32 -> vector<16x512xf32>
    %c720 = arith.constant 720 : index
    %c0_48 = arith.constant 0 : index
    %92 = vector.load %arg5[%c720, %c0_48] : memref<784x512xf32, #tpu.memory_space<vmem>>, vector<16x512xf32>
    tpu.vector_store %arg5[%c720, %c0_48], %91 {strides = array<i32>} : memref<784x512xf32, #tpu.memory_space<vmem>>, vector<16x512xf32>,
    %c376_i32 = arith.constant 376 : i32
    %93 = tpu.dynamic_rotate %1 by %c376_i32 dim 1 : vector<16x512xf32>, i32 -> vector<16x512xf32>
    %c736 = arith.constant 736 : index
    %c0_49 = arith.constant 0 : index
    %94 = vector.load %arg5[%c736, %c0_49] : memref<784x512xf32, #tpu.memory_space<vmem>>, vector<16x512xf32>
    tpu.vector_store %arg5[%c736, %c0_49], %93 {strides = array<i32>} : memref<784x512xf32, #tpu.memory_space<vmem>>, vector<16x512xf32>,
    %c375_i32 = arith.constant 375 : i32
    %95 = tpu.dynamic_rotate %1 by %c375_i32 dim 1 : vector<16x512xf32>, i32 -> vector<16x512xf32>
    %c752 = arith.constant 752 : index
    %c0_50 = arith.constant 0 : index
    %96 = vector.load %arg5[%c752, %c0_50] : memref<784x512xf32, #tpu.memory_space<vmem>>, vector<16x512xf32>
    tpu.vector_store %arg5[%c752, %c0_50], %95 {strides = array<i32>} : memref<784x512xf32, #tpu.memory_space<vmem>>, vector<16x512xf32>,
    %c374_i32 = arith.constant 374 : i32
    %97 = tpu.dynamic_rotate %1 by %c374_i32 dim 1 : vector<16x512xf32>, i32 -> vector<16x512xf32>
    %c768 = arith.constant 768 : index
    %c0_51 = arith.constant 0 : index
    %98 = vector.load %arg5[%c768, %c0_51] : memref<784x512xf32, #tpu.memory_space<vmem>>, vector<16x512xf32>
    tpu.vector_store %arg5[%c768, %c0_51], %97 {strides = array<i32>} : memref<784x512xf32, #tpu.memory_space<vmem>>, vector<16x512xf32>,
    %c0_52 = arith.constant 0 : index
    %c0_53 = arith.constant 0 : index
    %99 = vector.load %arg2[%c0_52, %c0_53] : memref<16x784xf32, #tpu.memory_space<vmem>>, vector<16x784xf32>
    %c0_54 = arith.constant 0 : index
    %c0_55 = arith.constant 0 : index
    %100 = vector.load %arg5[%c0_54, %c0_55] : memref<784x512xf32, #tpu.memory_space<vmem>>, vector<784x512xf32>
    %cst = arith.constant dense<0.000000e+00> : vector<16x512xf32>
    %101 = tpu.matmul %99, %100, %cst {dimension_numbers = #tpu.dot_dimension_numbers<[1], [0], [0], [1], [0, 0, 1, 1], [], []>} : vector<16x784xf32>, vector<784x512xf32>, vector<16x512xf32> -> vector<16x512xf32>
    %c0_56 = arith.constant 0 : index
    %c0_57 = arith.constant 0 : index
    %102 = vector.load %arg3[%c0_56, %c0_57] : memref<16x1xf32, #tpu.memory_space<vmem>>, vector<16x1xf32>
    %103 = vector.broadcast %102 : vector<16x1xf32> to vector<16x512xf32>
    %104 = arith.addf %101, %103 : vector<16x512xf32>
    %cst_58 = arith.constant 3.000000e+00 : f32
    %105 = vector.broadcast %cst_58 : f32 to vector<16x512xf32>
    %106 = arith.addf %104, %105 : vector<16x512xf32>
    %cst_59 = arith.constant 0.000000e+00 : f32
    %cst_60 = arith.constant 6.000000e+00 : f32
    %107 = vector.broadcast %cst_59 : f32 to vector<16x512xf32>
    %108 = arith.maximumf %107, %106 : vector<16x512xf32>
    %109 = vector.broadcast %cst_60 : f32 to vector<16x512xf32>
    %110 = arith.minimumf %109, %108 : vector<16x512xf32>
    %111 = arith.mulf %104, %110 : vector<16x512xf32>
    %cst_61 = arith.constant 0.166666672 : f32
    %112 = vector.broadcast %cst_61 : f32 to vector<16x512xf32>
    %113 = arith.mulf %111, %112 : vector<16x512xf32>
    %c0_62 = arith.constant 0 : index
    %c0_63 = arith.constant 0 : index
    %c0_64 = arith.constant 0 : index
    %114 = vector.load %arg4[%c0_62, %c0_63, %c0_64] : memref<1x16x512xf32, #tpu.memory_space<vmem>>, vector<1x16x512xf32>
    %115 = vector.shape_cast %114 : vector<1x16x512xf32> to vector<16x512xf32>
    %116 = vector.shape_cast %113 : vector<16x512xf32> to vector<1x16x512xf32>
    tpu.vector_store %arg4[%c0_62, %c0_63, %c0_64], %116 {strides = array<i32>} : memref<1x16x512xf32, #tpu.memory_space<vmem>>, vector<1x16x512xf32>,
    return
  }
  func.func @transform_0(%arg0: i32) -> (i32, i32, i32) {
    %c0_i32 = arith.constant 0 : i32
    %c0_i32_0 = arith.constant 0 : i32
    %c0_i32_1 = arith.constant 0 : i32
    return %arg0, %c0_i32, %c0_i32_0 : i32, i32, i32
  }
  func.func @transform_1(%arg0: i32) -> (i32, i32) {
    %c0_i32 = arith.constant 0 : i32
    %c0_i32_0 = arith.constant 0 : i32
    %c0_i32_1 = arith.constant 0 : i32
    return %c0_i32, %c0_i32_0 : i32, i32
  }
  func.func @transform_2(%arg0: i32) -> (i32, i32) {
    %c0_i32 = arith.constant 0 : i32
    %c0_i32_0 = arith.constant 0 : i32
    %c0_i32_1 = arith.constant 0 : i32
    return %c0_i32, %c0_i32_0 : i32, i32
  }
  func.func @transform_3(%arg0: i32) -> (i32, i32, i32) {
    %c0_i32 = arith.constant 0 : i32
    %c0_i32_0 = arith.constant 0 : i32
    %c0_i32_1 = arith.constant 0 : i32
    return %arg0, %c0_i32, %c0_i32_0 : i32, i32, i32
  }
}

module attributes {stable_mosaic.version = 11 : i64} {
  func.func @kernel(%arg0: i32, %arg1: memref<1x16x384xf32, #tpu.memory_space<vmem>>, %arg2: memref<4x144xf32, #tpu.memory_space<vmem>>, %arg3: memref<4x1xf32, #tpu.memory_space<vmem>>, %arg4: memref<4x1xf32, #tpu.memory_space<vmem>>, %arg5: memref<1x4x384xf32, #tpu.memory_space<vmem>>, %arg6: memref<144x384xf32, #tpu.memory_space<vmem>>) attributes {dimension_semantics = [#tpu.dimension_semantics<parallel>], iteration_bounds = array<i64: 2>, scalar_prefetch = 0 : i64, scratch_operands = 1 : i64, tpu.core_type = #tpu.core_type<tc>, window_params = [{transform_indices = @transform_0, window_bounds = array<i64: 1, 16, 384>}, {pipeline_mode = #tpu.pipeline_mode<synchronous>, transform_indices = @transform_1, window_bounds = array<i64: 4, 144>}, {pipeline_mode = #tpu.pipeline_mode<synchronous>, transform_indices = @transform_2, window_bounds = array<i64: 4, 1>}, {pipeline_mode = #tpu.pipeline_mode<synchronous>, transform_indices = @transform_3, window_bounds = array<i64: 4, 1>}, {transform_indices = @transform_4, window_bounds = array<i64: 1, 4, 384>}]} {
    %c0 = arith.constant 0 : index
    %c0_0 = arith.constant 0 : index
    %c0_1 = arith.constant 0 : index
    %0 = vector.load %arg1[%c0, %c0_0, %c0_1] : memref<1x16x384xf32, #tpu.memory_space<vmem>>, vector<1x16x384xf32>
    %1 = vector.shape_cast %0 : vector<1x16x384xf32> to vector<16x384xf32>
    %c0_2 = arith.constant 0 : index
    %c0_3 = arith.constant 0 : index
    %2 = vector.load %arg6[%c0_2, %c0_3] : memref<144x384xf32, #tpu.memory_space<vmem>>, vector<16x384xf32>
    tpu.vector_store %arg6[%c0_2, %c0_3], %1 {strides = array<i32>} : memref<144x384xf32, #tpu.memory_space<vmem>>, vector<16x384xf32>,
    %c383_i32 = arith.constant 383 : i32
    %3 = tpu.dynamic_rotate %1 by %c383_i32 dim 1 : vector<16x384xf32>, i32 -> vector<16x384xf32>
    %c16 = arith.constant 16 : index
    %c0_4 = arith.constant 0 : index
    %4 = vector.load %arg6[%c16, %c0_4] : memref<144x384xf32, #tpu.memory_space<vmem>>, vector<16x384xf32>
    tpu.vector_store %arg6[%c16, %c0_4], %3 {strides = array<i32>} : memref<144x384xf32, #tpu.memory_space<vmem>>, vector<16x384xf32>,
    %c382_i32 = arith.constant 382 : i32
    %5 = tpu.dynamic_rotate %1 by %c382_i32 dim 1 : vector<16x384xf32>, i32 -> vector<16x384xf32>
    %c32 = arith.constant 32 : index
    %c0_5 = arith.constant 0 : index
    %6 = vector.load %arg6[%c32, %c0_5] : memref<144x384xf32, #tpu.memory_space<vmem>>, vector<16x384xf32>
    tpu.vector_store %arg6[%c32, %c0_5], %5 {strides = array<i32>} : memref<144x384xf32, #tpu.memory_space<vmem>>, vector<16x384xf32>,
    %c366_i32 = arith.constant 366 : i32
    %7 = tpu.dynamic_rotate %1 by %c366_i32 dim 1 : vector<16x384xf32>, i32 -> vector<16x384xf32>
    %c48 = arith.constant 48 : index
    %c0_6 = arith.constant 0 : index
    %8 = vector.load %arg6[%c48, %c0_6] : memref<144x384xf32, #tpu.memory_space<vmem>>, vector<16x384xf32>
    tpu.vector_store %arg6[%c48, %c0_6], %7 {strides = array<i32>} : memref<144x384xf32, #tpu.memory_space<vmem>>, vector<16x384xf32>,
    %c365_i32 = arith.constant 365 : i32
    %9 = tpu.dynamic_rotate %1 by %c365_i32 dim 1 : vector<16x384xf32>, i32 -> vector<16x384xf32>
    %c64 = arith.constant 64 : index
    %c0_7 = arith.constant 0 : index
    %10 = vector.load %arg6[%c64, %c0_7] : memref<144x384xf32, #tpu.memory_space<vmem>>, vector<16x384xf32>
    tpu.vector_store %arg6[%c64, %c0_7], %9 {strides = array<i32>} : memref<144x384xf32, #tpu.memory_space<vmem>>, vector<16x384xf32>,
    %c364_i32 = arith.constant 364 : i32
    %11 = tpu.dynamic_rotate %1 by %c364_i32 dim 1 : vector<16x384xf32>, i32 -> vector<16x384xf32>
    %c80 = arith.constant 80 : index
    %c0_8 = arith.constant 0 : index
    %12 = vector.load %arg6[%c80, %c0_8] : memref<144x384xf32, #tpu.memory_space<vmem>>, vector<16x384xf32>
    tpu.vector_store %arg6[%c80, %c0_8], %11 {strides = array<i32>} : memref<144x384xf32, #tpu.memory_space<vmem>>, vector<16x384xf32>,
    %c348_i32 = arith.constant 348 : i32
    %13 = tpu.dynamic_rotate %1 by %c348_i32 dim 1 : vector<16x384xf32>, i32 -> vector<16x384xf32>
    %c96 = arith.constant 96 : index
    %c0_9 = arith.constant 0 : index
    %14 = vector.load %arg6[%c96, %c0_9] : memref<144x384xf32, #tpu.memory_space<vmem>>, vector<16x384xf32>
    tpu.vector_store %arg6[%c96, %c0_9], %13 {strides = array<i32>} : memref<144x384xf32, #tpu.memory_space<vmem>>, vector<16x384xf32>,
    %c347_i32 = arith.constant 347 : i32
    %15 = tpu.dynamic_rotate %1 by %c347_i32 dim 1 : vector<16x384xf32>, i32 -> vector<16x384xf32>
    %c112 = arith.constant 112 : index
    %c0_10 = arith.constant 0 : index
    %16 = vector.load %arg6[%c112, %c0_10] : memref<144x384xf32, #tpu.memory_space<vmem>>, vector<16x384xf32>
    tpu.vector_store %arg6[%c112, %c0_10], %15 {strides = array<i32>} : memref<144x384xf32, #tpu.memory_space<vmem>>, vector<16x384xf32>,
    %c346_i32 = arith.constant 346 : i32
    %17 = tpu.dynamic_rotate %1 by %c346_i32 dim 1 : vector<16x384xf32>, i32 -> vector<16x384xf32>
    %c128 = arith.constant 128 : index
    %c0_11 = arith.constant 0 : index
    %18 = vector.load %arg6[%c128, %c0_11] : memref<144x384xf32, #tpu.memory_space<vmem>>, vector<16x384xf32>
    tpu.vector_store %arg6[%c128, %c0_11], %17 {strides = array<i32>} : memref<144x384xf32, #tpu.memory_space<vmem>>, vector<16x384xf32>,
    %c0_12 = arith.constant 0 : index
    %c0_13 = arith.constant 0 : index
    %19 = vector.load %arg2[%c0_12, %c0_13] : memref<4x144xf32, #tpu.memory_space<vmem>>, vector<4x144xf32>
    %c0_14 = arith.constant 0 : index
    %c0_15 = arith.constant 0 : index
    %20 = vector.load %arg6[%c0_14, %c0_15] : memref<144x384xf32, #tpu.memory_space<vmem>>, vector<144x384xf32>
    %cst = arith.constant dense<0.000000e+00> : vector<4x384xf32>
    %21 = tpu.matmul %19, %20, %cst {dimension_numbers = #tpu.dot_dimension_numbers<[1], [0], [0], [1], [0, 0, 1, 1], [], []>} : vector<4x144xf32>, vector<144x384xf32>, vector<4x384xf32> -> vector<4x384xf32>
    %cst_16 = arith.constant dense<0.000000e+00> : vector<384xf32>
    %22 = vector.multi_reduction <add>, %21, %cst_16 [0] : vector<4x384xf32> to vector<384xf32>
    %23 = vector.shape_cast %22 : vector<384xf32> to vector<1x384xf32>
    %cst_17 = arith.constant 2.500000e-01 : f32
    %24 = vector.broadcast %cst_17 : f32 to vector<1x384xf32>
    %25 = arith.mulf %23, %24 : vector<1x384xf32>
    %26 = vector.broadcast %25 : vector<1x384xf32> to vector<4x384xf32>
    %27 = arith.subf %21, %26 : vector<4x384xf32>
    %28 = arith.mulf %27, %27 : vector<4x384xf32>
    %cst_18 = arith.constant dense<0.000000e+00> : vector<384xf32>
    %29 = vector.multi_reduction <add>, %28, %cst_18 [0] : vector<4x384xf32> to vector<384xf32>
    %30 = vector.shape_cast %29 : vector<384xf32> to vector<1x384xf32>
    %cst_19 = arith.constant 2.500000e-01 : f32
    %31 = vector.broadcast %cst_19 : f32 to vector<1x384xf32>
    %32 = arith.mulf %30, %31 : vector<1x384xf32>
    %cst_20 = arith.constant 9.99999974E-6 : f32
    %33 = vector.broadcast %cst_20 : f32 to vector<1x384xf32>
    %34 = arith.addf %32, %33 : vector<1x384xf32>
    %35 = math.rsqrt %34 : vector<1x384xf32>
    %36 = vector.broadcast %35 : vector<1x384xf32> to vector<4x384xf32>
    %37 = arith.mulf %27, %36 : vector<4x384xf32>
    %c0_21 = arith.constant 0 : index
    %c0_22 = arith.constant 0 : index
    %38 = vector.load %arg3[%c0_21, %c0_22] : memref<4x1xf32, #tpu.memory_space<vmem>>, vector<4x1xf32>
    %39 = vector.broadcast %38 : vector<4x1xf32> to vector<4x384xf32>
    %40 = arith.mulf %37, %39 : vector<4x384xf32>
    %c0_23 = arith.constant 0 : index
    %c0_24 = arith.constant 0 : index
    %41 = vector.load %arg4[%c0_23, %c0_24] : memref<4x1xf32, #tpu.memory_space<vmem>>, vector<4x1xf32>
    %42 = vector.broadcast %41 : vector<4x1xf32> to vector<4x384xf32>
    %43 = arith.addf %40, %42 : vector<4x384xf32>
    %cst_25 = arith.constant 3.000000e+00 : f32
    %44 = vector.broadcast %cst_25 : f32 to vector<4x384xf32>
    %45 = arith.addf %43, %44 : vector<4x384xf32>
    %cst_26 = arith.constant 0.000000e+00 : f32
    %cst_27 = arith.constant 6.000000e+00 : f32
    %46 = vector.broadcast %cst_26 : f32 to vector<4x384xf32>
    %47 = arith.maximumf %46, %45 : vector<4x384xf32>
    %48 = vector.broadcast %cst_27 : f32 to vector<4x384xf32>
    %49 = arith.minimumf %48, %47 : vector<4x384xf32>
    %50 = arith.mulf %43, %49 : vector<4x384xf32>
    %cst_28 = arith.constant 0.166666672 : f32
    %51 = vector.broadcast %cst_28 : f32 to vector<4x384xf32>
    %52 = arith.mulf %50, %51 : vector<4x384xf32>
    %c0_29 = arith.constant 0 : index
    %c0_30 = arith.constant 0 : index
    %c0_31 = arith.constant 0 : index
    %53 = vector.load %arg5[%c0_29, %c0_30, %c0_31] : memref<1x4x384xf32, #tpu.memory_space<vmem>>, vector<1x4x384xf32>
    %54 = vector.shape_cast %53 : vector<1x4x384xf32> to vector<4x384xf32>
    %55 = vector.shape_cast %52 : vector<4x384xf32> to vector<1x4x384xf32>
    tpu.vector_store %arg5[%c0_29, %c0_30, %c0_31], %55 {strides = array<i32>} : memref<1x4x384xf32, #tpu.memory_space<vmem>>, vector<1x4x384xf32>,
    return
  }
  func.func @transform_0(%arg0: i32) -> (i32, i32, i32) {
    %c0_i32 = arith.constant 0 : i32
    %c0_i32_0 = arith.constant 0 : i32
    %c0_i32_1 = arith.constant 0 : i32
    return %arg0, %c0_i32, %c0_i32_0 : i32, i32, i32
  }
  func.func @transform_1(%arg0: i32) -> (i32, i32) {
    %c0_i32 = arith.constant 0 : i32
    %c0_i32_0 = arith.constant 0 : i32
    %c0_i32_1 = arith.constant 0 : i32
    return %c0_i32, %c0_i32_0 : i32, i32
  }
  func.func @transform_2(%arg0: i32) -> (i32, i32) {
    %c0_i32 = arith.constant 0 : i32
    %c0_i32_0 = arith.constant 0 : i32
    %c0_i32_1 = arith.constant 0 : i32
    return %c0_i32, %c0_i32_0 : i32, i32
  }
  func.func @transform_3(%arg0: i32) -> (i32, i32) {
    %c0_i32 = arith.constant 0 : i32
    %c0_i32_0 = arith.constant 0 : i32
    %c0_i32_1 = arith.constant 0 : i32
    return %c0_i32, %c0_i32_0 : i32, i32
  }
  func.func @transform_4(%arg0: i32) -> (i32, i32, i32) {
    %c0_i32 = arith.constant 0 : i32
    %c0_i32_0 = arith.constant 0 : i32
    %c0_i32_1 = arith.constant 0 : i32
    return %arg0, %c0_i32, %c0_i32_0 : i32, i32, i32
  }
}

</mosaic_0001>

<llo_original>
// kernel: aggregator_forward.2
$region0: #{aggregator_forward.2}
  #allocation0 [shape = 'u32[]', space=smem, size = 0x4, offset = 0x4, fixed_abs, tag = 'smem constant byte address 0x4 - core index']
  #allocation1 [shape = 'u32[144,128]{1,0:T(1,128)}', space=vmem, size = 0x12000, scoped, tag = 'internal scratch']
  #allocation2 [shape = 'f32[784,512]{1,0:T(8,128)}', space=vmem, size = 0x188000, scoped, tag = 'scratch operand']
  %s0 = inlined_call_operand.vmem [shape: f32[6,16,512], index: 0, kind: input, shape index: {}]
  %s1 = inlined_call_operand.vmem [shape: f32[16,784], index: 1, kind: input, shape index: {}]
  %s2 = inlined_call_operand.vmem [shape: f32[16,1], index: 2, kind: input, shape index: {}]
  %s3 = inlined_call_operand.vmem [shape: f32[6,16,512], index: 3, kind: output, shape index: {}]
  %s4 = sld [smem:[#allocation0]]
  $region45: #{aggregator_forward.2} parent=0
    _
  %s6 = ssub.s32 1, %s4
  %s7 = scalar_select 0, %s6, %s4
  loop: start=0, step=1, limit=8
  $region2: #{aggregator_forward.2} parent=0 // loop_pre_header
    _
  $region3: #{aggregator_forward.2} parent=0 // loop_header
    %s9 = sphi 0, %s13
    %p10 = scmp.ge.s32.totalorder %s9, 8
    %s19 = sphi 0, %s21
    %s22 = sphi 0, %s19
    %s23 = sphi 0, %s22
    %s39 = sphi 0, %s23
    %s43 = sphi 0, %s43
    %s45 = sphi 0, %s43
    %s46 = sphi 0, %s45
    %s60 = sphi 0, %s46
    %s64 = sphi 0, %s64
    %s66 = sphi 0, %s64
    %s67 = sphi 0, %s66
    %s81 = sphi 0, %s67
    %s87 = sphi 0, %s89
    %s90 = sphi 0, %s87
    %s91 = sphi 0, %s90
    %s107 = sphi 0, %s91
  $region4: #{aggregator_forward.2} parent=0 // loop_header_branch
    %12 = sbr.rel (%p10) target = $region8
  $region5: #{aggregator_forward.2} parent=0 // loop_body
    %s14 = ssub.s32 %s9, 1
    %s15 = ssub.s32 %s9, 2
    %s16 = sadd.s32 %s9, 1
    %s17 = ssub.s32 %s9, %s16
    %p18 = scmp.eq.s32.totalorder %s17, 0
    %s20 = sadd.s32 %s19, 1
    %s21 = scalar_select %p18, %s19, %s20
    %p24 = pneg %p18
    %p25 = scmp.eq.s32.totalorder %s9, 5
    %p26 = por %p24, %p25
    %p27 = scmp.ne.s32.totalorder %s19, %s22
    %p28 = scmp.eq.s32.totalorder %s9, 0
    %p29 = por %p27, %p28
    %p30 = scmp.ne.s32.totalorder %s19, %s22
    %p31 = scmp.eq.s32.totalorder %s14, 5
    %p32 = por %p30, %p31
    %p33 = scmp.ne.s32.totalorder %s22, %s23
    %p34 = scmp.eq.s32.totalorder %s14, 0
    %p35 = por %p33, %p34
    %p36 = scmp.ne.s32.totalorder %s22, %s23
    %p37 = scmp.eq.s32.totalorder %s15, 5
    %p38 = por %p36, %p37
    %p40 = scmp.ne.s32.totalorder %s23, %s39
    %p41 = scmp.eq.s32.totalorder %s15, 0
    %p42 = por %p40, %p41
    %s44 = sadd.s32 %s43, 1
    %p47 = scmp.eq.s32.totalorder %s9, 5
    %p48 = scmp.ne.s32.totalorder %s43, %s45
    %p49 = scmp.eq.s32.totalorder %s9, 0
    %p50 = por %p48, %p49
    %p51 = scmp.ne.s32.totalorder %s43, %s45
    %p52 = scmp.eq.s32.totalorder %s14, 5
    %p53 = por %p51, %p52
    %p54 = scmp.ne.s32.totalorder %s45, %s46
    %p55 = scmp.eq.s32.totalorder %s14, 0
    %p56 = por %p54, %p55
    %p57 = scmp.ne.s32.totalorder %s45, %s46
    %p58 = scmp.eq.s32.totalorder %s15, 5
    %p59 = por %p57, %p58
    %p61 = scmp.ne.s32.totalorder %s46, %s60
    %p62 = scmp.eq.s32.totalorder %s15, 0
    %p63 = por %p61, %p62
    %s65 = sadd.s32 %s64, 1
    %p68 = scmp.eq.s32.totalorder %s9, 5
    %p69 = scmp.ne.s32.totalorder %s64, %s66
    %p70 = scmp.eq.s32.totalorder %s9, 0
    %p71 = por %p69, %p70
    %p72 = scmp.ne.s32.totalorder %s64, %s66
    %p73 = scmp.eq.s32.totalorder %s14, 5
    %p74 = por %p72, %p73
    %p75 = scmp.ne.s32.totalorder %s66, %s67
    %p76 = scmp.eq.s32.totalorder %s14, 0
    %p77 = por %p75, %p76
    %p78 = scmp.ne.s32.totalorder %s66, %s67
    %p79 = scmp.eq.s32.totalorder %s15, 5
    %p80 = por %p78, %p79
    %p82 = scmp.ne.s32.totalorder %s67, %s81
    %p83 = scmp.eq.s32.totalorder %s15, 0
    %p84 = por %p82, %p83
    %s85 = ssub.s32 %s9, %s16
    %p86 = scmp.eq.s32.totalorder %s85, 0
    %s88 = sadd.s32 %s87, 1
    %s89 = scalar_select %p86, %s87, %s88
    %p92 = pneg %p86
    %p93 = scmp.eq.s32.totalorder %s9, 5
    %p94 = por %p92, %p93
    %p95 = scmp.ne.s32.totalorder %s87, %s90
    %p96 = scmp.eq.s32.totalorder %s9, 0
    %p97 = por %p95, %p96
    %p98 = scmp.ne.s32.totalorder %s87, %s90
    %p99 = scmp.eq.s32.totalorder %s14, 5
    %p100 = por %p98, %p99
    %p101 = scmp.ne.s32.totalorder %s90, %s91
    %p102 = scmp.eq.s32.totalorder %s14, 0
    %p103 = por %p101, %p102
    %p104 = scmp.ne.s32.totalorder %s90, %s91
    %p105 = scmp.eq.s32.totalorder %s15, 5
    %p106 = por %p104, %p105
    %p108 = scmp.ne.s32.totalorder %s91, %s107
    %p109 = scmp.eq.s32.totalorder %s15, 0
    %p110 = por %p108, %p109
    %p111 = scmp.le.s32.totalorder 1, %s9
    %p112 = scmp.lt.s32.totalorder %s9, 7
    %p113 = pnand %p111, %p112
    %p114 = pneg %p113
    // Predicated region
    $region9: #{aggregator_forward.2} parent=5 // pred_check
      _
    $region10: #{aggregator_forward.2} parent=5 // pred_check_branch
      %116 = sbr.rel (%p113) target = $region12
    $region11: #{aggregator_forward.2} parent=5 // pred_region
      %s117 = ssub.s32 %s9, 1
      // Predicated region
      $region13: #{aggregator_forward.2} parent=11 // pred_check
        %p118 = pneg %p56
      $region14: #{aggregator_forward.2} parent=11 // pred_check_branch
        %120 = sbr.rel (%p118) target = $region16
      $region15: #{aggregator_forward.2} parent=11 // pred_region
        _
      $region16: #{aggregator_forward.2} parent=11 // pred_fallthru
        _
      // Predicated region
      $region17: #{aggregator_forward.2} parent=11 // pred_check
        %p121 = pneg %p77
      $region18: #{aggregator_forward.2} parent=11 // pred_check_branch
        %123 = sbr.rel (%p121) target = $region20
      $region19: #{aggregator_forward.2} parent=11 // pred_region
        _
      $region20: #{aggregator_forward.2} parent=11 // pred_fallthru
        _
    $region12: #{aggregator_forward.2} parent=5 // pred_fallthru
      _
    %p124 = scmp.lt.s32.totalorder %s9, 6
    // Predicated region
    $region21: #{aggregator_forward.2} parent=5 // pred_check
      %p125 = pneg %p124
    $region22: #{aggregator_forward.2} parent=5 // pred_check_branch
      %127 = sbr.rel (%p125) target = $region24
    $region23: #{aggregator_forward.2} parent=5 // pred_region
      // Predicated region
      $region25: #{aggregator_forward.2} parent=23 // pred_check
        %p128 = pneg %p29
      $region26: #{aggregator_forward.2} parent=23 // pred_check_branch
        %130 = sbr.rel (%p128) target = $region28
      $region27: #{aggregator_forward.2} parent=23 // pred_region
        %p131 = scmp.lt.s32.totalorder %s9, 5
        %s132 = scalar_select %p131, %s9, 5
        %s133 = smul.addr %s132, 8
        %s134 = smul.addr %s133, 8
        %s135 = scalar_lea.vmem %s0, %s134
      $region28: #{aggregator_forward.2} parent=23 // pred_fallthru
        _
    $region24: #{aggregator_forward.2} parent=5 // pred_fallthru
      _
    %p136 = scmp.le.s32.totalorder 1, %s9
    %p137 = scmp.lt.s32.totalorder %s9, 7
    %p138 = pnand %p136, %p137
    %p139 = pneg %p138
    // Predicated region
    $region29: #{aggregator_forward.2} parent=5 // pred_check
      _
    $region30: #{aggregator_forward.2} parent=5 // pred_check_branch
      %141 = sbr.rel (%p138) target = $region32
    $region31: #{aggregator_forward.2} parent=5 // pred_region
      %s142 = ssub.s32 %s9, 1
      %p143 = scmp.lt.s32.totalorder %s14, 5
      %s144 = scalar_select %p143, %s14, 5
      %s145 = smul.addr %s144, 8
      %s146 = smul.addr %s145, 8
      %s147 = scalar_lea.vmem %s0, %s146
      %p148 = pneg %p35
      %p149 = pneg %p32
      %p150 = pneg %p56
      %p151 = pneg %p53
      %p152 = pneg %p77
      %p153 = pneg %p74
      %p154 = pneg %p103
      %p155 = pneg %p100
      %p156 = scmp.lt.s32.totalorder %s14, 5
      %s157 = scalar_select %p156, %s14, 5
      %s158 = smul.addr %s157, 8
      %s159 = smul.addr %s158, 8
      %s160 = scalar_lea.vmem %s3, %s159
      %p161 = scmp.lt.s32.totalorder %s14, 5
      %s162 = scalar_select %p161, %s14, 5
      %s163 = smul.addr %s162, 8
      %s164 = smul.addr %s163, 8
      %s165 = scalar_lea.vmem %s0, %s164
      %p166 = scmp.lt.s32.totalorder %s14, 5
      %s167 = scalar_select %p166, %s14, 5
      %s168 = smul.addr %s167, 8
      %s169 = smul.addr %s168, 8
      %s170 = scalar_lea.vmem %s3, %s169
      %v171 = vld [vmem:[%s165] sm:$0xff]
      %v172 = vld [vmem:[%s165 + $0x8] sm:$0xff]
      %v173 = vld [vmem:[%s165 + $0x10] sm:$0xff]
      %v174 = vld [vmem:[%s165 + $0x18] sm:$0xff]
      %v175 = vld [vmem:[%s165 + $0x20] sm:$0xff]
      %v176 = vld [vmem:[%s165 + $0x28] sm:$0xff]
      %v177 = vld [vmem:[%s165 + $0x30] sm:$0xff]
      %v178 = vld [vmem:[%s165 + $0x38] sm:$0xff]
      %179 = vst [vmem:[#allocation2] sm:$0xff] %v171
      %180 = vst [vmem:[#allocation2 + $0x8] sm:$0xff] %v172
      %181 = vst [vmem:[#allocation2 + $0x10] sm:$0xff] %v173
      %182 = vst [vmem:[#allocation2 + $0x18] sm:$0xff] %v174
      %183 = vst [vmem:[#allocation2 + $0x20] sm:$0xff] %v175
      %184 = vst [vmem:[#allocation2 + $0x28] sm:$0xff] %v176
      %185 = vst [vmem:[#allocation2 + $0x30] sm:$0xff] %v177
      %186 = vst [vmem:[#allocation2 + $0x38] sm:$0xff] %v178
      %187 = vrot.lane.b32.xlu0 %v171, 127
      %v188 = vpop.permute.xlu0 %187
      %189 = vrot.lane.b32.xlu0 %v175, 127
      %v190 = vpop.permute.xlu0 %189
      %191 = vrot.lane.b32.xlu0 %v172, 127
      %v192 = vpop.permute.xlu0 %191
      %193 = vrot.lane.b32.xlu0 %v176, 127
      %v194 = vpop.permute.xlu0 %193
      %195 = vrot.lane.b32.xlu0 %v173, 127
      %v196 = vpop.permute.xlu0 %195
      %197 = vrot.lane.b32.xlu0 %v177, 127
      %v198 = vpop.permute.xlu0 %197
      %199 = vrot.lane.b32.xlu0 %v174, 127
      %v200 = vpop.permute.xlu0 %199
      %201 = vrot.lane.b32.xlu0 %v178, 127
      %v202 = vpop.permute.xlu0 %201
      %v203 = vlaneseq
      %v204 = vand.u32 %v203, 127
      %vm205 = vcmp.lt.s32.totalorder %v204, 127
      %v206 = vsel %vm205, %v196, %v200
      %v207 = vsel %vm205, %v198, %v202
      %v208 = vsel %vm205, %v192, %v196
      %v209 = vsel %vm205, %v194, %v198
      %v210 = vsel %vm205, %v188, %v192
      %v211 = vsel %vm205, %v190, %v194
      %v212 = vsel %vm205, %v200, %v188
      %v213 = vsel %vm205, %v202, %v190
      %214 = vst [vmem:[#allocation2 + $0x40] sm:$0xff] %v210
      %215 = vst [vmem:[#allocation2 + $0x48] sm:$0xff] %v208
      %216 = vst [vmem:[#allocation2 + $0x50] sm:$0xff] %v206
      %217 = vst [vmem:[#allocation2 + $0x58] sm:$0xff] %v212
      %218 = vst [vmem:[#allocation2 + $0x60] sm:$0xff] %v211
      %219 = vst [vmem:[#allocation2 + $0x68] sm:$0xff] %v209
      %220 = vst [vmem:[#allocation2 + $0x70] sm:$0xff] %v207
      %221 = vst [vmem:[#allocation2 + $0x78] sm:$0xff] %v213
      %222 = vrot.lane.b32.xlu0 %v171, 126
      %v223 = vpop.permute.xlu0 %222
      %224 = vrot.lane.b32.xlu0 %v175, 126
      %v225 = vpop.permute.xlu0 %224
      %226 = vrot.lane.b32.xlu0 %v172, 126
      %v227 = vpop.permute.xlu0 %226
      %228 = vrot.lane.b32.xlu0 %v176, 126
      %v229 = vpop.permute.xlu0 %228
      %230 = vrot.lane.b32.xlu0 %v173, 126
      %v231 = vpop.permute.xlu0 %230
      %232 = vrot.lane.b32.xlu0 %v177, 126
      %v233 = vpop.permute.xlu0 %232
      %234 = vrot.lane.b32.xlu0 %v174, 126
      %v235 = vpop.permute.xlu0 %234
      %236 = vrot.lane.b32.xlu0 %v178, 126
      %v237 = vpop.permute.xlu0 %236
      %vm238 = vcmp.lt.s32.totalorder %v204, 126
      %v239 = vsel %vm238, %v231, %v235
      %v240 = vsel %vm238, %v233, %v237
      %v241 = vsel %vm238, %v227, %v231
      %v242 = vsel %vm238, %v229, %v233
      %v243 = vsel %vm238, %v223, %v227
      %v244 = vsel %vm238, %v225, %v229
      %v245 = vsel %vm238, %v235, %v223
      %v246 = vsel %vm238, %v237, %v225
      %247 = vst [vmem:[#allocation2 + $0x80] sm:$0xff] %v243
      %248 = vst [vmem:[#allocation2 + $0x88] sm:$0xff] %v241
      %249 = vst [vmem:[#allocation2 + $0x90] sm:$0xff] %v239
      %250 = vst [vmem:[#allocation2 + $0x98] sm:$0xff] %v245
      %251 = vst [vmem:[#allocation2 + $0xa0] sm:$0xff] %v244
      %252 = vst [vmem:[#allocation2 + $0xa8] sm:$0xff] %v242
      %253 = vst [vmem:[#allocation2 + $0xb0] sm:$0xff] %v240
      %254 = vst [vmem:[#allocation2 + $0xb8] sm:$0xff] %v246
      %255 = vrot.lane.b32.xlu0 %v171, 125
      %v256 = vpop.permute.xlu0 %255
      %257 = vrot.lane.b32.xlu0 %v175, 125
      %v258 = vpop.permute.xlu0 %257
      %259 = vrot.lane.b32.xlu0 %v172, 125
      %v260 = vpop.permute.xlu0 %259
      %261 = vrot.lane.b32.xlu0 %v176, 125
      %v262 = vpop.permute.xlu0 %261
      %263 = vrot.lane.b32.xlu0 %v173, 125
      %v264 = vpop.permute.xlu0 %263
      %265 = vrot.lane.b32.xlu0 %v177, 125
      %v266 = vpop.permute.xlu0 %265
      %267 = vrot.lane.b32.xlu0 %v174, 125
      %v268 = vpop.permute.xlu0 %267
      %269 = vrot.lane.b32.xlu0 %v178, 125
      %v270 = vpop.permute.xlu0 %269
      %vm271 = vcmp.lt.s32.totalorder %v204, 125
      %v272 = vsel %vm271, %v264, %v268
      %v273 = vsel %vm271, %v266, %v270
      %v274 = vsel %vm271, %v260, %v264
      %v275 = vsel %vm271, %v262, %v266
      %v276 = vsel %vm271, %v256, %v260
      %v277 = vsel %vm271, %v258, %v262
      %v278 = vsel %vm271, %v268, %v256
      %v279 = vsel %vm271, %v270, %v258
      %280 = vst [vmem:[#allocation2 + $0xc0] sm:$0xff] %v276
      %281 = vst [vmem:[#allocation2 + $0xc8] sm:$0xff] %v274
      %282 = vst [vmem:[#allocation2 + $0xd0] sm:$0xff] %v272
      %283 = vst [vmem:[#allocation2 + $0xd8] sm:$0xff] %v278
      %284 = vst [vmem:[#allocation2 + $0xe0] sm:$0xff] %v277
      %285 = vst [vmem:[#allocation2 + $0xe8] sm:$0xff] %v275
      %286 = vst [vmem:[#allocation2 + $0xf0] sm:$0xff] %v273
      %287 = vst [vmem:[#allocation2 + $0xf8] sm:$0xff] %v279
      %288 = vrot.lane.b32.xlu0 %v171, 124
      %v289 = vpop.permute.xlu0 %288
      %290 = vrot.lane.b32.xlu0 %v175, 124
      %v291 = vpop.permute.xlu0 %290
      %292 = vrot.lane.b32.xlu0 %v172, 124
      %v293 = vpop.permute.xlu0 %292
      %294 = vrot.lane.b32.xlu0 %v176, 124
      %v295 = vpop.permute.xlu0 %294
      %296 = vrot.lane.b32.xlu0 %v173, 124
      %v297 = vpop.permute.xlu0 %296
      %298 = vrot.lane.b32.xlu0 %v177, 124
      %v299 = vpop.permute.xlu0 %298
      %300 = vrot.lane.b32.xlu0 %v174, 124
      %v301 = vpop.permute.xlu0 %300
      %302 = vrot.lane.b32.xlu0 %v178, 124
      %v303 = vpop.permute.xlu0 %302
      %vm304 = vcmp.lt.s32.totalorder %v204, 124
      %v305 = vsel %vm304, %v297, %v301
      %v306 = vsel %vm304, %v299, %v303
      %v307 = vsel %vm304, %v293, %v297
      %v308 = vsel %vm304, %v295, %v299
      %v309 = vsel %vm304, %v289, %v293
      %v310 = vsel %vm304, %v291, %v295
      %v311 = vsel %vm304, %v301, %v289
      %v312 = vsel %vm304, %v303, %v291
      %313 = vst [vmem:[#allocation2 + $0x100] sm:$0xff] %v309
      %314 = vst [vmem:[#allocation2 + $0x108] sm:$0xff] %v307
      %315 = vst [vmem:[#allocation2 + $0x110] sm:$0xff] %v305
      %316 = vst [vmem:[#allocation2 + $0x118] sm:$0xff] %v311
      %317 = vst [vmem:[#allocation2 + $0x120] sm:$0xff] %v310
      %318 = vst [vmem:[#allocation2 + $0x128] sm:$0xff] %v308
      %319 = vst [vmem:[#allocation2 + $0x130] sm:$0xff] %v306
      %320 = vst [vmem:[#allocation2 + $0x138] sm:$0xff] %v312
      %321 = vrot.lane.b32.xlu0 %v171, 123
      %v322 = vpop.permute.xlu0 %321
      %323 = vrot.lane.b32.xlu0 %v175, 123
      %v324 = vpop.permute.xlu0 %323
      %325 = vrot.lane.b32.xlu0 %v172, 123
      %v326 = vpop.permute.xlu0 %325
      %327 = vrot.lane.b32.xlu0 %v176, 123
      %v328 = vpop.permute.xlu0 %327
      %329 = vrot.lane.b32.xlu0 %v173, 123
      %v330 = vpop.permute.xlu0 %329
      %331 = vrot.lane.b32.xlu0 %v177, 123
      %v332 = vpop.permute.xlu0 %331
      %333 = vrot.lane.b32.xlu0 %v174, 123
      %v334 = vpop.permute.xlu0 %333
      %335 = vrot.lane.b32.xlu0 %v178, 123
      %v336 = vpop.permute.xlu0 %335
      %vm337 = vcmp.lt.s32.totalorder %v204, 123
      %v338 = vsel %vm337, %v330, %v334
      %v339 = vsel %vm337, %v332, %v336
      %v340 = vsel %vm337, %v326, %v330
      %v341 = vsel %vm337, %v328, %v332
      %v342 = vsel %vm337, %v322, %v326
      %v343 = vsel %vm337, %v324, %v328
      %v344 = vsel %vm337, %v334, %v322
      %v345 = vsel %vm337, %v336, %v324
      %346 = vst [vmem:[#allocation2 + $0x140] sm:$0xff] %v342
      %347 = vst [vmem:[#allocation2 + $0x148] sm:$0xff] %v340
      %348 = vst [vmem:[#allocation2 + $0x150] sm:$0xff] %v338
      %349 = vst [vmem:[#allocation2 + $0x158] sm:$0xff] %v344
      %350 = vst [vmem:[#allocation2 + $0x160] sm:$0xff] %v343
      %351 = vst [vmem:[#allocation2 + $0x168] sm:$0xff] %v341
      %352 = vst [vmem:[#allocation2 + $0x170] sm:$0xff] %v339
      %353 = vst [vmem:[#allocation2 + $0x178] sm:$0xff] %v345
      %354 = vrot.lane.b32.xlu0 %v171, 122
      %v355 = vpop.permute.xlu0 %354
      %356 = vrot.lane.b32.xlu0 %v175, 122
      %v357 = vpop.permute.xlu0 %356
      %358 = vrot.lane.b32.xlu0 %v172, 122
      %v359 = vpop.permute.xlu0 %358
      %360 = vrot.lane.b32.xlu0 %v176, 122
      %v361 = vpop.permute.xlu0 %360
      %362 = vrot.lane.b32.xlu0 %v173, 122
      %v363 = vpop.permute.xlu0 %362
      %364 = vrot.lane.b32.xlu0 %v177, 122
      %v365 = vpop.permute.xlu0 %364
      %366 = vrot.lane.b32.xlu0 %v174, 122
      %v367 = vpop.permute.xlu0 %366
      %368 = vrot.lane.b32.xlu0 %v178, 122
      %v369 = vpop.permute.xlu0 %368
      %vm370 = vcmp.lt.s32.totalorder %v204, 122
      %v371 = vsel %vm370, %v363, %v367
      %v372 = vsel %vm370, %v365, %v369
      %v373 = vsel %vm370, %v359, %v363
      %v374 = vsel %vm370, %v361, %v365
      %v375 = vsel %vm370, %v355, %v359
      %v376 = vsel %vm370, %v357, %v361
      %v377 = vsel %vm370, %v367, %v355
      %v378 = vsel %vm370, %v369, %v357
      %379 = vst [vmem:[#allocation2 + $0x180] sm:$0xff] %v375
      %380 = vst [vmem:[#allocation2 + $0x188] sm:$0xff] %v373
      %381 = vst [vmem:[#allocation2 + $0x190] sm:$0xff] %v371
      %382 = vst [vmem:[#allocation2 + $0x198] sm:$0xff] %v377
      %383 = vst [vmem:[#allocation2 + $0x1a0] sm:$0xff] %v376
      %384 = vst [vmem:[#allocation2 + $0x1a8] sm:$0xff] %v374
      %385 = vst [vmem:[#allocation2 + $0x1b0] sm:$0xff] %v372
      %386 = vst [vmem:[#allocation2 + $0x1b8] sm:$0xff] %v378
      %387 = vrot.lane.b32.xlu0 %v171, 106
      %v388 = vpop.permute.xlu0 %387
      %389 = vrot.lane.b32.xlu0 %v175, 106
      %v390 = vpop.permute.xlu0 %389
      %391 = vrot.lane.b32.xlu0 %v172, 106
      %v392 = vpop.permute.xlu0 %391
      %393 = vrot.lane.b32.xlu0 %v176, 106
      %v394 = vpop.permute.xlu0 %393
      %395 = vrot.lane.b32.xlu0 %v173, 106
      %v396 = vpop.permute.xlu0 %395
      %397 = vrot.lane.b32.xlu0 %v177, 106
      %v398 = vpop.permute.xlu0 %397
      %399 = vrot.lane.b32.xlu0 %v174, 106
      %v400 = vpop.permute.xlu0 %399
      %401 = vrot.lane.b32.xlu0 %v178, 106
      %v402 = vpop.permute.xlu0 %401
      %vm403 = vcmp.lt.s32.totalorder %v204, 106
      %v404 = vsel %vm403, %v396, %v400
      %v405 = vsel %vm403, %v398, %v402
      %v406 = vsel %vm403, %v392, %v396
      %v407 = vsel %vm403, %v394, %v398
      %v408 = vsel %vm403, %v388, %v392
      %v409 = vsel %vm403, %v390, %v394
      %v410 = vsel %vm403, %v400, %v388
      %v411 = vsel %vm403, %v402, %v390
      %412 = vst [vmem:[#allocation2 + $0x1c0] sm:$0xff] %v408
      %413 = vst [vmem:[#allocation2 + $0x1c8] sm:$0xff] %v406
      %414 = vst [vmem:[#allocation2 + $0x1d0] sm:$0xff] %v404
      %415 = vst [vmem:[#allocation2 + $0x1d8] sm:$0xff] %v410
      %416 = vst [vmem:[#allocation2 + $0x1e0] sm:$0xff] %v409
      %417 = vst [vmem:[#allocation2 + $0x1e8] sm:$0xff] %v407
      %418 = vst [vmem:[#allocation2 + $0x1f0] sm:$0xff] %v405
      %419 = vst [vmem:[#allocation2 + $0x1f8] sm:$0xff] %v411
      %420 = vrot.lane.b32.xlu0 %v171, 105
      %v421 = vpop.permute.xlu0 %420
      %422 = vrot.lane.b32.xlu0 %v175, 105
      %v423 = vpop.permute.xlu0 %422
      %424 = vrot.lane.b32.xlu0 %v172, 105
      %v425 = vpop.permute.xlu0 %424
      %426 = vrot.lane.b32.xlu0 %v176, 105
      %v427 = vpop.permute.xlu0 %426
      %428 = vrot.lane.b32.xlu0 %v173, 105
      %v429 = vpop.permute.xlu0 %428
      %430 = vrot.lane.b32.xlu0 %v177, 105
      %v431 = vpop.permute.xlu0 %430
      %432 = vrot.lane.b32.xlu0 %v174, 105
      %v433 = vpop.permute.xlu0 %432
      %434 = vrot.lane.b32.xlu0 %v178, 105
      %v435 = vpop.permute.xlu0 %434
      %vm436 = vcmp.lt.s32.totalorder %v204, 105
      %v437 = vsel %vm436, %v429, %v433
      %v438 = vsel %vm436, %v431, %v435
      %v439 = vsel %vm436, %v425, %v429
      %v440 = vsel %vm436, %v427, %v431
      %v441 = vsel %vm436, %v421, %v425
      %v442 = vsel %vm436, %v423, %v427
      %v443 = vsel %vm436, %v433, %v421
      %v444 = vsel %vm436, %v435, %v423
      %445 = vst [vmem:[#allocation2 + $0x200] sm:$0xff] %v441
      %446 = vst [vmem:[#allocation2 + $0x208] sm:$0xff] %v439
      %447 = vst [vmem:[#allocation2 + $0x210] sm:$0xff] %v437
      %448 = vst [vmem:[#allocation2 + $0x218] sm:$0xff] %v443
      %449 = vst [vmem:[#allocation2 + $0x220] sm:$0xff] %v442
      %450 = vst [vmem:[#allocation2 + $0x228] sm:$0xff] %v440
      %451 = vst [vmem:[#allocation2 + $0x230] sm:$0xff] %v438
      %452 = vst [vmem:[#allocation2 + $0x238] sm:$0xff] %v444
      %453 = vrot.lane.b32.xlu0 %v171, 104
      %v454 = vpop.permute.xlu0 %453
      %455 = vrot.lane.b32.xlu0 %v175, 104
      %v456 = vpop.permute.xlu0 %455
      %457 = vrot.lane.b32.xlu0 %v172, 104
      %v458 = vpop.permute.xlu0 %457
      %459 = vrot.lane.b32.xlu0 %v176, 104
      %v460 = vpop.permute.xlu0 %459
      %461 = vrot.lane.b32.xlu0 %v173, 104
      %v462 = vpop.permute.xlu0 %461
      %463 = vrot.lane.b32.xlu0 %v177, 104
      %v464 = vpop.permute.xlu0 %463
      %465 = vrot.lane.b32.xlu0 %v174, 104
      %v466 = vpop.permute.xlu0 %465
      %467 = vrot.lane.b32.xlu0 %v178, 104
      %v468 = vpop.permute.xlu0 %467
      %vm469 = vcmp.lt.s32.totalorder %v204, 104
      %v470 = vsel %vm469, %v462, %v466
      %v471 = vsel %vm469, %v464, %v468
      %v472 = vsel %vm469, %v458, %v462
      %v473 = vsel %vm469, %v460, %v464
      %v474 = vsel %vm469, %v454, %v458
      %v475 = vsel %vm469, %v456, %v460
      %v476 = vsel %vm469, %v466, %v454
      %v477 = vsel %vm469, %v468, %v456
      %478 = vst [vmem:[#allocation2 + $0x240] sm:$0xff] %v474
      %479 = vst [vmem:[#allocation2 + $0x248] sm:$0xff] %v472
      %480 = vst [vmem:[#allocation2 + $0x250] sm:$0xff] %v470
      %481 = vst [vmem:[#allocation2 + $0x258] sm:$0xff] %v476
      %482 = vst [vmem:[#allocation2 + $0x260] sm:$0xff] %v475
      %483 = vst [vmem:[#allocation2 + $0x268] sm:$0xff] %v473
      %484 = vst [vmem:[#allocation2 + $0x270] sm:$0xff] %v471
      %485 = vst [vmem:[#allocation2 + $0x278] sm:$0xff] %v477
      %486 = vrot.lane.b32.xlu0 %v171, 103
      %v487 = vpop.permute.xlu0 %486
      %488 = vrot.lane.b32.xlu0 %v175, 103
      %v489 = vpop.permute.xlu0 %488
      %490 = vrot.lane.b32.xlu0 %v172, 103
      %v491 = vpop.permute.xlu0 %490
      %492 = vrot.lane.b32.xlu0 %v176, 103
      %v493 = vpop.permute.xlu0 %492
      %494 = vrot.lane.b32.xlu0 %v173, 103
      %v495 = vpop.permute.xlu0 %494
      %496 = vrot.lane.b32.xlu0 %v177, 103
      %v497 = vpop.permute.xlu0 %496
      %498 = vrot.lane.b32.xlu0 %v174, 103
      %v499 = vpop.permute.xlu0 %498
      %500 = vrot.lane.b32.xlu0 %v178, 103
      %v501 = vpop.permute.xlu0 %500
      %vm502 = vcmp.lt.s32.totalorder %v204, 103
      %v503 = vsel %vm502, %v495, %v499
      %v504 = vsel %vm502, %v497, %v501
      %v505 = vsel %vm502, %v491, %v495
      %v506 = vsel %vm502, %v493, %v497
      %v507 = vsel %vm502, %v487, %v491
      %v508 = vsel %vm502, %v489, %v493
      %v509 = vsel %vm502, %v499, %v487
      %v510 = vsel %vm502, %v501, %v489
      %511 = vst [vmem:[#allocation2 + $0x280] sm:$0xff] %v507
      %512 = vst [vmem:[#allocation2 + $0x288] sm:$0xff] %v505
      %513 = vst [vmem:[#allocation2 + $0x290] sm:$0xff] %v503
      %514 = vst [vmem:[#allocation2 + $0x298] sm:$0xff] %v509
      %515 = vst [vmem:[#allocation2 + $0x2a0] sm:$0xff] %v508
      %516 = vst [vmem:[#allocation2 + $0x2a8] sm:$0xff] %v506
      %517 = vst [vmem:[#allocation2 + $0x2b0] sm:$0xff] %v504
      %518 = vst [vmem:[#allocation2 + $0x2b8] sm:$0xff] %v510
      %519 = vrot.lane.b32.xlu0 %v171, 102
      %v520 = vpop.permute.xlu0 %519
      %521 = vrot.lane.b32.xlu0 %v175, 102
      %v522 = vpop.permute.xlu0 %521
      %523 = vrot.lane.b32.xlu0 %v172, 102
      %v524 = vpop.permute.xlu0 %523
      %525 = vrot.lane.b32.xlu0 %v176, 102
      %v526 = vpop.permute.xlu0 %525
      %527 = vrot.lane.b32.xlu0 %v173, 102
      %v528 = vpop.permute.xlu0 %527
      %529 = vrot.lane.b32.xlu0 %v177, 102
      %v530 = vpop.permute.xlu0 %529
      %531 = vrot.lane.b32.xlu0 %v174, 102
      %v532 = vpop.permute.xlu0 %531
      %533 = vrot.lane.b32.xlu0 %v178, 102
      %v534 = vpop.permute.xlu0 %533
      %vm535 = vcmp.lt.s32.totalorder %v204, 102
      %v536 = vsel %vm535, %v528, %v532
      %v537 = vsel %vm535, %v530, %v534
      %v538 = vsel %vm535, %v524, %v528
      %v539 = vsel %vm535, %v526, %v530
      %v540 = vsel %vm535, %v520, %v524
      %v541 = vsel %vm535, %v522, %v526
      %v542 = vsel %vm535, %v532, %v520
      %v543 = vsel %vm535, %v534, %v522
      %544 = vst [vmem:[#allocation2 + $0x2c0] sm:$0xff] %v540
      %545 = vst [vmem:[#allocation2 + $0x2c8] sm:$0xff] %v538
      %546 = vst [vmem:[#allocation2 + $0x2d0] sm:$0xff] %v536
      %547 = vst [vmem:[#allocation2 + $0x2d8] sm:$0xff] %v542
      %548 = vst [vmem:[#allocation2 + $0x2e0] sm:$0xff] %v541
      %549 = vst [vmem:[#allocation2 + $0x2e8] sm:$0xff] %v539
      %550 = vst [vmem:[#allocation2 + $0x2f0] sm:$0xff] %v537
      %551 = vst [vmem:[#allocation2 + $0x2f8] sm:$0xff] %v543
      %552 = vrot.lane.b32.xlu0 %v171, 101
      %v553 = vpop.permute.xlu0 %552
      %554 = vrot.lane.b32.xlu0 %v175, 101
      %v555 = vpop.permute.xlu0 %554
      %556 = vrot.lane.b32.xlu0 %v172, 101
      %v557 = vpop.permute.xlu0 %556
      %558 = vrot.lane.b32.xlu0 %v176, 101
      %v559 = vpop.permute.xlu0 %558
      %560 = vrot.lane.b32.xlu0 %v173, 101
      %v561 = vpop.permute.xlu0 %560
      %562 = vrot.lane.b32.xlu0 %v177, 101
      %v563 = vpop.permute.xlu0 %562
      %564 = vrot.lane.b32.xlu0 %v174, 101
      %v565 = vpop.permute.xlu0 %564
      %566 = vrot.lane.b32.xlu0 %v178, 101
      %v567 = vpop.permute.xlu0 %566
      %vm568 = vcmp.lt.s32.totalorder %v204, 101
      %v569 = vsel %vm568, %v561, %v565
      %v570 = vsel %vm568, %v563, %v567
      %v571 = vsel %vm568, %v557, %v561
      %v572 = vsel %vm568, %v559, %v563
      %v573 = vsel %vm568, %v553, %v557
      %v574 = vsel %vm568, %v555, %v559
      %v575 = vsel %vm568, %v565, %v553
      %v576 = vsel %vm568, %v567, %v555
      %577 = vst [vmem:[#allocation2 + $0x300] sm:$0xff] %v573
      %578 = vst [vmem:[#allocation2 + $0x308] sm:$0xff] %v571
      %579 = vst [vmem:[#allocation2 + $0x310] sm:$0xff] %v569
      %580 = vst [vmem:[#allocation2 + $0x318] sm:$0xff] %v575
      %581 = vst [vmem:[#allocation2 + $0x320] sm:$0xff] %v574
      %582 = vst [vmem:[#allocation2 + $0x328] sm:$0xff] %v572
      %583 = vst [vmem:[#allocation2 + $0x330] sm:$0xff] %v570
      %584 = vst [vmem:[#allocation2 + $0x338] sm:$0xff] %v576
      %585 = vrot.lane.b32.xlu0 %v171, 100
      %v586 = vpop.permute.xlu0 %585
      %587 = vrot.lane.b32.xlu0 %v175, 100
      %v588 = vpop.permute.xlu0 %587
      %589 = vrot.lane.b32.xlu0 %v172, 100
      %v590 = vpop.permute.xlu0 %589
      %591 = vrot.lane.b32.xlu0 %v176, 100
      %v592 = vpop.permute.xlu0 %591
      %593 = vrot.lane.b32.xlu0 %v173, 100
      %v594 = vpop.permute.xlu0 %593
      %595 = vrot.lane.b32.xlu0 %v177, 100
      %v596 = vpop.permute.xlu0 %595
      %597 = vrot.lane.b32.xlu0 %v174, 100
      %v598 = vpop.permute.xlu0 %597
      %599 = vrot.lane.b32.xlu0 %v178, 100
      %v600 = vpop.permute.xlu0 %599
      %vm601 = vcmp.lt.s32.totalorder %v204, 100
      %v602 = vsel %vm601, %v594, %v598
      %v603 = vsel %vm601, %v596, %v600
      %v604 = vsel %vm601, %v590, %v594
      %v605 = vsel %vm601, %v592, %v596
      %v606 = vsel %vm601, %v586, %v590
      %v607 = vsel %vm601, %v588, %v592
      %v608 = vsel %vm601, %v598, %v586
      %v609 = vsel %vm601, %v600, %v588
      %610 = vst [vmem:[#allocation2 + $0x340] sm:$0xff] %v606
      %611 = vst [vmem:[#allocation2 + $0x348] sm:$0xff] %v604
      %612 = vst [vmem:[#allocation2 + $0x350] sm:$0xff] %v602
      %613 = vst [vmem:[#allocation2 + $0x358] sm:$0xff] %v608
      %614 = vst [vmem:[#allocation2 + $0x360] sm:$0xff] %v607
      %615 = vst [vmem:[#allocation2 + $0x368] sm:$0xff] %v605
      %616 = vst [vmem:[#allocation2 + $0x370] sm:$0xff] %v603
      %617 = vst [vmem:[#allocation2 + $0x378] sm:$0xff] %v609
      %618 = vrot.lane.b32.xlu0 %v171, 84
      %v619 = vpop.permute.xlu0 %618
      %620 = vrot.lane.b32.xlu0 %v175, 84
      %v621 = vpop.permute.xlu0 %620
      %622 = vrot.lane.b32.xlu0 %v172, 84
      %v623 = vpop.permute.xlu0 %622
      %624 = vrot.lane.b32.xlu0 %v176, 84
      %v625 = vpop.permute.xlu0 %624
      %626 = vrot.lane.b32.xlu0 %v173, 84
      %v627 = vpop.permute.xlu0 %626
      %628 = vrot.lane.b32.xlu0 %v177, 84
      %v629 = vpop.permute.xlu0 %628
      %630 = vrot.lane.b32.xlu0 %v174, 84
      %v631 = vpop.permute.xlu0 %630
      %632 = vrot.lane.b32.xlu0 %v178, 84
      %v633 = vpop.permute.xlu0 %632
      %vm634 = vcmp.lt.s32.totalorder %v204, 84
      %v635 = vsel %vm634, %v627, %v631
      %v636 = vsel %vm634, %v629, %v633
      %v637 = vsel %vm634, %v623, %v627
      %v638 = vsel %vm634, %v625, %v629
      %v639 = vsel %vm634, %v619, %v623
      %v640 = vsel %vm634, %v621, %v625
      %v641 = vsel %vm634, %v631, %v619
      %v642 = vsel %vm634, %v633, %v621
      %643 = vst [vmem:[#allocation2 + $0x380] sm:$0xff] %v639
      %644 = vst [vmem:[#allocation2 + $0x388] sm:$0xff] %v637
      %645 = vst [vmem:[#allocation2 + $0x390] sm:$0xff] %v635
      %646 = vst [vmem:[#allocation2 + $0x398] sm:$0xff] %v641
      %647 = vst [vmem:[#allocation2 + $0x3a0] sm:$0xff] %v640
      %648 = vst [vmem:[#allocation2 + $0x3a8] sm:$0xff] %v638
      %649 = vst [vmem:[#allocation2 + $0x3b0] sm:$0xff] %v636
      %650 = vst [vmem:[#allocation2 + $0x3b8] sm:$0xff] %v642
      %651 = vrot.lane.b32.xlu0 %v171, 83
      %v652 = vpop.permute.xlu0 %651
      %653 = vrot.lane.b32.xlu0 %v175, 83
      %v654 = vpop.permute.xlu0 %653
      %655 = vrot.lane.b32.xlu0 %v172, 83
      %v656 = vpop.permute.xlu0 %655
      %657 = vrot.lane.b32.xlu0 %v176, 83
      %v658 = vpop.permute.xlu0 %657
      %659 = vrot.lane.b32.xlu0 %v173, 83
      %v660 = vpop.permute.xlu0 %659
      %661 = vrot.lane.b32.xlu0 %v177, 83
      %v662 = vpop.permute.xlu0 %661
      %663 = vrot.lane.b32.xlu0 %v174, 83
      %v664 = vpop.permute.xlu0 %663
      %665 = vrot.lane.b32.xlu0 %v178, 83
      %v666 = vpop.permute.xlu0 %665
      %vm667 = vcmp.lt.s32.totalorder %v204, 83
      %v668 = vsel %vm667, %v660, %v664
      %v669 = vsel %vm667, %v662, %v666
      %v670 = vsel %vm667, %v656, %v660
      %v671 = vsel %vm667, %v658, %v662
      %v672 = vsel %vm667, %v652, %v656
      %v673 = vsel %vm667, %v654, %v658
      %v674 = vsel %vm667, %v664, %v652
      %v675 = vsel %vm667, %v666, %v654
      %676 = vst [vmem:[#allocation2 + $0x3c0] sm:$0xff] %v672
      %677 = vst [vmem:[#allocation2 + $0x3c8] sm:$0xff] %v670
      %678 = vst [vmem:[#allocation2 + $0x3d0] sm:$0xff] %v668
      %679 = vst [vmem:[#allocation2 + $0x3d8] sm:$0xff] %v674
      %680 = vst [vmem:[#allocation2 + $0x3e0] sm:$0xff] %v673
      %681 = vst [vmem:[#allocation2 + $0x3e8] sm:$0xff] %v671
      %682 = vst [vmem:[#allocation2 + $0x3f0] sm:$0xff] %v669
      %683 = vst [vmem:[#allocation2 + $0x3f8] sm:$0xff] %v675
      %684 = vrot.lane.b32.xlu0 %v171, 82
      %v685 = vpop.permute.xlu0 %684
      %686 = vrot.lane.b32.xlu0 %v175, 82
      %v687 = vpop.permute.xlu0 %686
      %688 = vrot.lane.b32.xlu0 %v172, 82
      %v689 = vpop.permute.xlu0 %688
      %690 = vrot.lane.b32.xlu0 %v176, 82
      %v691 = vpop.permute.xlu0 %690
      %692 = vrot.lane.b32.xlu0 %v173, 82
      %v693 = vpop.permute.xlu0 %692
      %694 = vrot.lane.b32.xlu0 %v177, 82
      %v695 = vpop.permute.xlu0 %694
      %696 = vrot.lane.b32.xlu0 %v174, 82
      %v697 = vpop.permute.xlu0 %696
      %698 = vrot.lane.b32.xlu0 %v178, 82
      %v699 = vpop.permute.xlu0 %698
      %vm700 = vcmp.lt.s32.totalorder %v204, 82
      %v701 = vsel %vm700, %v693, %v697
      %v702 = vsel %vm700, %v695, %v699
      %v703 = vsel %vm700, %v689, %v693
      %v704 = vsel %vm700, %v691, %v695
      %v705 = vsel %vm700, %v685, %v689
      %v706 = vsel %vm700, %v687, %v691
      %v707 = vsel %vm700, %v697, %v685
      %v708 = vsel %vm700, %v699, %v687
      %709 = vst [vmem:[#allocation2 + $0x400] sm:$0xff] %v705
      %710 = vst [vmem:[#allocation2 + $0x408] sm:$0xff] %v703
      %711 = vst [vmem:[#allocation2 + $0x410] sm:$0xff] %v701
      %712 = vst [vmem:[#allocation2 + $0x418] sm:$0xff] %v707
      %713 = vst [vmem:[#allocation2 + $0x420] sm:$0xff] %v706
      %714 = vst [vmem:[#allocation2 + $0x428] sm:$0xff] %v704
      %715 = vst [vmem:[#allocation2 + $0x430] sm:$0xff] %v702
      %716 = vst [vmem:[#allocation2 + $0x438] sm:$0xff] %v708
      %717 = vrot.lane.b32.xlu0 %v171, 81
      %v718 = vpop.permute.xlu0 %717
      %719 = vrot.lane.b32.xlu0 %v175, 81
      %v720 = vpop.permute.xlu0 %719
      %721 = vrot.lane.b32.xlu0 %v172, 81
      %v722 = vpop.permute.xlu0 %721
      %723 = vrot.lane.b32.xlu0 %v176, 81
      %v724 = vpop.permute.xlu0 %723
      %725 = vrot.lane.b32.xlu0 %v173, 81
      %v726 = vpop.permute.xlu0 %725
      %727 = vrot.lane.b32.xlu0 %v177, 81
      %v728 = vpop.permute.xlu0 %727
      %729 = vrot.lane.b32.xlu0 %v174, 81
      %v730 = vpop.permute.xlu0 %729
      %731 = vrot.lane.b32.xlu0 %v178, 81
      %v732 = vpop.permute.xlu0 %731
      %vm733 = vcmp.lt.s32.totalorder %v204, 81
      %v734 = vsel %vm733, %v726, %v730
      %v735 = vsel %vm733, %v728, %v732
      %v736 = vsel %vm733, %v722, %v726
      %v737 = vsel %vm733, %v724, %v728
      %v738 = vsel %vm733, %v718, %v722
      %v739 = vsel %vm733, %v720, %v724
      %v740 = vsel %vm733, %v730, %v718
      %v741 = vsel %vm733, %v732, %v720
      %742 = vst [vmem:[#allocation2 + $0x440] sm:$0xff] %v738
      %743 = vst [vmem:[#allocation2 + $0x448] sm:$0xff] %v736
      %744 = vst [vmem:[#allocation2 + $0x450] sm:$0xff] %v734
      %745 = vst [vmem:[#allocation2 + $0x458] sm:$0xff] %v740
      %746 = vst [vmem:[#allocation2 + $0x460] sm:$0xff] %v739
      %747 = vst [vmem:[#allocation2 + $0x468] sm:$0xff] %v737
      %748 = vst [vmem:[#allocation2 + $0x470] sm:$0xff] %v735
      %749 = vst [vmem:[#allocation2 + $0x478] sm:$0xff] %v741
      %750 = vrot.lane.b32.xlu0 %v171, 80
      %v751 = vpop.permute.xlu0 %750
      %752 = vrot.lane.b32.xlu0 %v175, 80
      %v753 = vpop.permute.xlu0 %752
      %754 = vrot.lane.b32.xlu0 %v172, 80
      %v755 = vpop.permute.xlu0 %754
      %756 = vrot.lane.b32.xlu0 %v176, 80
      %v757 = vpop.permute.xlu0 %756
      %758 = vrot.lane.b32.xlu0 %v173, 80
      %v759 = vpop.permute.xlu0 %758
      %760 = vrot.lane.b32.xlu0 %v177, 80
      %v761 = vpop.permute.xlu0 %760
      %762 = vrot.lane.b32.xlu0 %v174, 80
      %v763 = vpop.permute.xlu0 %762
      %764 = vrot.lane.b32.xlu0 %v178, 80
      %v765 = vpop.permute.xlu0 %764
      %vm766 = vcmp.lt.s32.totalorder %v204, 80
      %v767 = vsel %vm766, %v759, %v763
      %v768 = vsel %vm766, %v761, %v765
      %v769 = vsel %vm766, %v755, %v759
      %v770 = vsel %vm766, %v757, %v761
      %v771 = vsel %vm766, %v751, %v755
      %v772 = vsel %vm766, %v753, %v757
      %v773 = vsel %vm766, %v763, %v751
      %v774 = vsel %vm766, %v765, %v753
      %775 = vst [vmem:[#allocation2 + $0x480] sm:$0xff] %v771
      %776 = vst [vmem:[#allocation2 + $0x488] sm:$0xff] %v769
      %777 = vst [vmem:[#allocation2 + $0x490] sm:$0xff] %v767
      %778 = vst [vmem:[#allocation2 + $0x498] sm:$0xff] %v773
      %779 = vst [vmem:[#allocation2 + $0x4a0] sm:$0xff] %v772
      %780 = vst [vmem:[#allocation2 + $0x4a8] sm:$0xff] %v770
      %781 = vst [vmem:[#allocation2 + $0x4b0] sm:$0xff] %v768
      %782 = vst [vmem:[#allocation2 + $0x4b8] sm:$0xff] %v774
      %783 = vrot.lane.b32.xlu0 %v171, 79
      %v784 = vpop.permute.xlu0 %783
      %785 = vrot.lane.b32.xlu0 %v175, 79
      %v786 = vpop.permute.xlu0 %785
      %787 = vrot.lane.b32.xlu0 %v172, 79
      %v788 = vpop.permute.xlu0 %787
      %789 = vrot.lane.b32.xlu0 %v176, 79
      %v790 = vpop.permute.xlu0 %789
      %791 = vrot.lane.b32.xlu0 %v173, 79
      %v792 = vpop.permute.xlu0 %791
      %793 = vrot.lane.b32.xlu0 %v177, 79
      %v794 = vpop.permute.xlu0 %793
      %795 = vrot.lane.b32.xlu0 %v174, 79
      %v796 = vpop.permute.xlu0 %795
      %797 = vrot.lane.b32.xlu0 %v178, 79
      %v798 = vpop.permute.xlu0 %797
      %vm799 = vcmp.lt.s32.totalorder %v204, 79
      %v800 = vsel %vm799, %v792, %v796
      %v801 = vsel %vm799, %v794, %v798
      %v802 = vsel %vm799, %v788, %v792
      %v803 = vsel %vm799, %v790, %v794
      %v804 = vsel %vm799, %v784, %v788
      %v805 = vsel %vm799, %v786, %v790
      %v806 = vsel %vm799, %v796, %v784
      %v807 = vsel %vm799, %v798, %v786
      %808 = vst [vmem:[#allocation2 + $0x4c0] sm:$0xff] %v804
      %809 = vst [vmem:[#allocation2 + $0x4c8] sm:$0xff] %v802
      %810 = vst [vmem:[#allocation2 + $0x4d0] sm:$0xff] %v800
      %811 = vst [vmem:[#allocation2 + $0x4d8] sm:$0xff] %v806
      %812 = vst [vmem:[#allocation2 + $0x4e0] sm:$0xff] %v805
      %813 = vst [vmem:[#allocation2 + $0x4e8] sm:$0xff] %v803
      %814 = vst [vmem:[#allocation2 + $0x4f0] sm:$0xff] %v801
      %815 = vst [vmem:[#allocation2 + $0x4f8] sm:$0xff] %v807
      %816 = vrot.lane.b32.xlu0 %v171, 78
      %v817 = vpop.permute.xlu0 %816
      %818 = vrot.lane.b32.xlu0 %v175, 78
      %v819 = vpop.permute.xlu0 %818
      %820 = vrot.lane.b32.xlu0 %v172, 78
      %v821 = vpop.permute.xlu0 %820
      %822 = vrot.lane.b32.xlu0 %v176, 78
      %v823 = vpop.permute.xlu0 %822
      %824 = vrot.lane.b32.xlu0 %v173, 78
      %v825 = vpop.permute.xlu0 %824
      %826 = vrot.lane.b32.xlu0 %v177, 78
      %v827 = vpop.permute.xlu0 %826
      %828 = vrot.lane.b32.xlu0 %v174, 78
      %v829 = vpop.permute.xlu0 %828
      %830 = vrot.lane.b32.xlu0 %v178, 78
      %v831 = vpop.permute.xlu0 %830
      %vm832 = vcmp.lt.s32.totalorder %v204, 78
      %v833 = vsel %vm832, %v825, %v829
      %v834 = vsel %vm832, %v827, %v831
      %v835 = vsel %vm832, %v821, %v825
      %v836 = vsel %vm832, %v823, %v827
      %v837 = vsel %vm832, %v817, %v821
      %v838 = vsel %vm832, %v819, %v823
      %v839 = vsel %vm832, %v829, %v817
      %v840 = vsel %vm832, %v831, %v819
      %841 = vst [vmem:[#allocation2 + $0x500] sm:$0xff] %v837
      %842 = vst [vmem:[#allocation2 + $0x508] sm:$0xff] %v835
      %843 = vst [vmem:[#allocation2 + $0x510] sm:$0xff] %v833
      %844 = vst [vmem:[#allocation2 + $0x518] sm:$0xff] %v839
      %845 = vst [vmem:[#allocation2 + $0x520] sm:$0xff] %v838
      %846 = vst [vmem:[#allocation2 + $0x528] sm:$0xff] %v836
      %847 = vst [vmem:[#allocation2 + $0x530] sm:$0xff] %v834
      %848 = vst [vmem:[#allocation2 + $0x538] sm:$0xff] %v840
      %849 = vrot.lane.b32.xlu0 %v171, 62
      %v850 = vpop.permute.xlu0 %849
      %851 = vrot.lane.b32.xlu0 %v175, 62
      %v852 = vpop.permute.xlu0 %851
      %853 = vrot.lane.b32.xlu0 %v172, 62
      %v854 = vpop.permute.xlu0 %853
      %855 = vrot.lane.b32.xlu0 %v176, 62
      %v856 = vpop.permute.xlu0 %855
      %857 = vrot.lane.b32.xlu0 %v173, 62
      %v858 = vpop.permute.xlu0 %857
      %859 = vrot.lane.b32.xlu0 %v177, 62
      %v860 = vpop.permute.xlu0 %859
      %861 = vrot.lane.b32.xlu0 %v174, 62
      %v862 = vpop.permute.xlu0 %861
      %863 = vrot.lane.b32.xlu0 %v178, 62
      %v864 = vpop.permute.xlu0 %863
      %vm865 = vcmp.lt.s32.totalorder %v204, 62
      %v866 = vsel %vm865, %v858, %v862
      %v867 = vsel %vm865, %v860, %v864
      %v868 = vsel %vm865, %v854, %v858
      %v869 = vsel %vm865, %v856, %v860
      %v870 = vsel %vm865, %v850, %v854
      %v871 = vsel %vm865, %v852, %v856
      %v872 = vsel %vm865, %v862, %v850
      %v873 = vsel %vm865, %v864, %v852
      %874 = vst [vmem:[#allocation2 + $0x540] sm:$0xff] %v870
      %875 = vst [vmem:[#allocation2 + $0x548] sm:$0xff] %v868
      %876 = vst [vmem:[#allocation2 + $0x550] sm:$0xff] %v866
      %877 = vst [vmem:[#allocation2 + $0x558] sm:$0xff] %v872
      %878 = vst [vmem:[#allocation2 + $0x560] sm:$0xff] %v871
      %879 = vst [vmem:[#allocation2 + $0x568] sm:$0xff] %v869
      %880 = vst [vmem:[#allocation2 + $0x570] sm:$0xff] %v867
      %881 = vst [vmem:[#allocation2 + $0x578] sm:$0xff] %v873
      %882 = vrot.lane.b32.xlu0 %v171, 61
      %v883 = vpop.permute.xlu0 %882
      %884 = vrot.lane.b32.xlu0 %v175, 61
      %v885 = vpop.permute.xlu0 %884
      %886 = vrot.lane.b32.xlu0 %v172, 61
      %v887 = vpop.permute.xlu0 %886
      %888 = vrot.lane.b32.xlu0 %v176, 61
      %v889 = vpop.permute.xlu0 %888
      %890 = vrot.lane.b32.xlu0 %v173, 61
      %v891 = vpop.permute.xlu0 %890
      %892 = vrot.lane.b32.xlu0 %v177, 61
      %v893 = vpop.permute.xlu0 %892
      %894 = vrot.lane.b32.xlu0 %v174, 61
      %v895 = vpop.permute.xlu0 %894
      %896 = vrot.lane.b32.xlu0 %v178, 61
      %v897 = vpop.permute.xlu0 %896
      %vm898 = vcmp.lt.s32.totalorder %v204, 61
      %v899 = vsel %vm898, %v891, %v895
      %v900 = vsel %vm898, %v893, %v897
      %v901 = vsel %vm898, %v887, %v891
      %v902 = vsel %vm898, %v889, %v893
      %v903 = vsel %vm898, %v883, %v887
      %v904 = vsel %vm898, %v885, %v889
      %v905 = vsel %vm898, %v895, %v883
      %v906 = vsel %vm898, %v897, %v885
      %907 = vst [vmem:[#allocation2 + $0x580] sm:$0xff] %v903
      %908 = vst [vmem:[#allocation2 + $0x588] sm:$0xff] %v901
      %909 = vst [vmem:[#allocation2 + $0x590] sm:$0xff] %v899
      %910 = vst [vmem:[#allocation2 + $0x598] sm:$0xff] %v905
      %911 = vst [vmem:[#allocation2 + $0x5a0] sm:$0xff] %v904
      %912 = vst [vmem:[#allocation2 + $0x5a8] sm:$0xff] %v902
      %913 = vst [vmem:[#allocation2 + $0x5b0] sm:$0xff] %v900
      %914 = vst [vmem:[#allocation2 + $0x5b8] sm:$0xff] %v906
      %915 = vrot.lane.b32.xlu0 %v171, 60
      %v916 = vpop.permute.xlu0 %915
      %917 = vrot.lane.b32.xlu0 %v175, 60
      %v918 = vpop.permute.xlu0 %917
      %919 = vrot.lane.b32.xlu0 %v172, 60
      %v920 = vpop.permute.xlu0 %919
      %921 = vrot.lane.b32.xlu0 %v176, 60
      %v922 = vpop.permute.xlu0 %921
      %923 = vrot.lane.b32.xlu0 %v173, 60
      %v924 = vpop.permute.xlu0 %923
      %925 = vrot.lane.b32.xlu0 %v177, 60
      %v926 = vpop.permute.xlu0 %925
      %927 = vrot.lane.b32.xlu0 %v174, 60
      %v928 = vpop.permute.xlu0 %927
      %929 = vrot.lane.b32.xlu0 %v178, 60
      %v930 = vpop.permute.xlu0 %929
      %vm931 = vcmp.lt.s32.totalorder %v204, 60
      %v932 = vsel %vm931, %v924, %v928
      %v933 = vsel %vm931, %v926, %v930
      %v934 = vsel %vm931, %v920, %v924
      %v935 = vsel %vm931, %v922, %v926
      %v936 = vsel %vm931, %v916, %v920
      %v937 = vsel %vm931, %v918, %v922
      %v938 = vsel %vm931, %v928, %v916
      %v939 = vsel %vm931, %v930, %v918
      %940 = vst [vmem:[#allocation2 + $0x5c0] sm:$0xff] %v936
      %941 = vst [vmem:[#allocation2 + $0x5c8] sm:$0xff] %v934
      %942 = vst [vmem:[#allocation2 + $0x5d0] sm:$0xff] %v932
      %943 = vst [vmem:[#allocation2 + $0x5d8] sm:$0xff] %v938
      %944 = vst [vmem:[#allocation2 + $0x5e0] sm:$0xff] %v937
      %945 = vst [vmem:[#allocation2 + $0x5e8] sm:$0xff] %v935
      %946 = vst [vmem:[#allocation2 + $0x5f0] sm:$0xff] %v933
      %947 = vst [vmem:[#allocation2 + $0x5f8] sm:$0xff] %v939
      %948 = vrot.lane.b32.xlu0 %v171, 59
      %v949 = vpop.permute.xlu0 %948
      %950 = vrot.lane.b32.xlu0 %v175, 59
      %v951 = vpop.permute.xlu0 %950
      %952 = vrot.lane.b32.xlu0 %v172, 59
      %v953 = vpop.permute.xlu0 %952
      %954 = vrot.lane.b32.xlu0 %v176, 59
      %v955 = vpop.permute.xlu0 %954
      %956 = vrot.lane.b32.xlu0 %v173, 59
      %v957 = vpop.permute.xlu0 %956
      %958 = vrot.lane.b32.xlu0 %v177, 59
      %v959 = vpop.permute.xlu0 %958
      %960 = vrot.lane.b32.xlu0 %v174, 59
      %v961 = vpop.permute.xlu0 %960
      %962 = vrot.lane.b32.xlu0 %v178, 59
      %v963 = vpop.permute.xlu0 %962
      %vm964 = vcmp.lt.s32.totalorder %v204, 59
      %v965 = vsel %vm964, %v957, %v961
      %v966 = vsel %vm964, %v959, %v963
      %v967 = vsel %vm964, %v953, %v957
      %v968 = vsel %vm964, %v955, %v959
      %v969 = vsel %vm964, %v949, %v953
      %v970 = vsel %vm964, %v951, %v955
      %v971 = vsel %vm964, %v961, %v949
      %v972 = vsel %vm964, %v963, %v951
      %973 = vst [vmem:[#allocation2 + $0x600] sm:$0xff] %v969
      %974 = vst [vmem:[#allocation2 + $0x608] sm:$0xff] %v967
      %975 = vst [vmem:[#allocation2 + $0x610] sm:$0xff] %v965
      %976 = vst [vmem:[#allocation2 + $0x618] sm:$0xff] %v971
      %977 = vst [vmem:[#allocation2 + $0x620] sm:$0xff] %v970
      %978 = vst [vmem:[#allocation2 + $0x628] sm:$0xff] %v968
      %979 = vst [vmem:[#allocation2 + $0x630] sm:$0xff] %v966
      %980 = vst [vmem:[#allocation2 + $0x638] sm:$0xff] %v972
      %981 = vrot.lane.b32.xlu0 %v171, 58
      %v982 = vpop.permute.xlu0 %981
      %983 = vrot.lane.b32.xlu0 %v175, 58
      %v984 = vpop.permute.xlu0 %983
      %985 = vrot.lane.b32.xlu0 %v172, 58
      %v986 = vpop.permute.xlu0 %985
      %987 = vrot.lane.b32.xlu0 %v176, 58
      %v988 = vpop.permute.xlu0 %987
      %989 = vrot.lane.b32.xlu0 %v173, 58
      %v990 = vpop.permute.xlu0 %989
      %991 = vrot.lane.b32.xlu0 %v177, 58
      %v992 = vpop.permute.xlu0 %991
      %993 = vrot.lane.b32.xlu0 %v174, 58
      %v994 = vpop.permute.xlu0 %993
      %995 = vrot.lane.b32.xlu0 %v178, 58
      %v996 = vpop.permute.xlu0 %995
      %vm997 = vcmp.lt.s32.totalorder %v204, 58
      %v998 = vsel %vm997, %v990, %v994
      %v999 = vsel %vm997, %v992, %v996
      %v1000 = vsel %vm997, %v986, %v990
      %v1001 = vsel %vm997, %v988, %v992
      %v1002 = vsel %vm997, %v982, %v986
      %v1003 = vsel %vm997, %v984, %v988
      %v1004 = vsel %vm997, %v994, %v982
      %v1005 = vsel %vm997, %v996, %v984
      %1006 = vst [vmem:[#allocation2 + $0x640] sm:$0xff] %v1002
      %1007 = vst [vmem:[#allocation2 + $0x648] sm:$0xff] %v1000
      %1008 = vst [vmem:[#allocation2 + $0x650] sm:$0xff] %v998
      %1009 = vst [vmem:[#allocation2 + $0x658] sm:$0xff] %v1004
      %1010 = vst [vmem:[#allocation2 + $0x660] sm:$0xff] %v1003
      %1011 = vst [vmem:[#allocation2 + $0x668] sm:$0xff] %v1001
      %1012 = vst [vmem:[#allocation2 + $0x670] sm:$0xff] %v999
      %1013 = vst [vmem:[#allocation2 + $0x678] sm:$0xff] %v1005
      %1014 = vrot.lane.b32.xlu0 %v171, 57
      %v1015 = vpop.permute.xlu0 %1014
      %1016 = vrot.lane.b32.xlu0 %v175, 57
      %v1017 = vpop.permute.xlu0 %1016
      %1018 = vrot.lane.b32.xlu0 %v172, 57
      %v1019 = vpop.permute.xlu0 %1018
      %1020 = vrot.lane.b32.xlu0 %v176, 57
      %v1021 = vpop.permute.xlu0 %1020
      %1022 = vrot.lane.b32.xlu0 %v173, 57
      %v1023 = vpop.permute.xlu0 %1022
      %1024 = vrot.lane.b32.xlu0 %v177, 57
      %v1025 = vpop.permute.xlu0 %1024
      %1026 = vrot.lane.b32.xlu0 %v174, 57
      %v1027 = vpop.permute.xlu0 %1026
      %1028 = vrot.lane.b32.xlu0 %v178, 57
      %v1029 = vpop.permute.xlu0 %1028
      %vm1030 = vcmp.lt.s32.totalorder %v204, 57
      %v1031 = vsel %vm1030, %v1023, %v1027
      %v1032 = vsel %vm1030, %v1025, %v1029
      %v1033 = vsel %vm1030, %v1019, %v1023
      %v1034 = vsel %vm1030, %v1021, %v1025
      %v1035 = vsel %vm1030, %v1015, %v1019
      %v1036 = vsel %vm1030, %v1017, %v1021
      %v1037 = vsel %vm1030, %v1027, %v1015
      %v1038 = vsel %vm1030, %v1029, %v1017
      %1039 = vst [vmem:[#allocation2 + $0x680] sm:$0xff] %v1035
      %1040 = vst [vmem:[#allocation2 + $0x688] sm:$0xff] %v1033
      %1041 = vst [vmem:[#allocation2 + $0x690] sm:$0xff] %v1031
      %1042 = vst [vmem:[#allocation2 + $0x698] sm:$0xff] %v1037
      %1043 = vst [vmem:[#allocation2 + $0x6a0] sm:$0xff] %v1036
      %1044 = vst [vmem:[#allocation2 + $0x6a8] sm:$0xff] %v1034
      %1045 = vst [vmem:[#allocation2 + $0x6b0] sm:$0xff] %v1032
      %1046 = vst [vmem:[#allocation2 + $0x6b8] sm:$0xff] %v1038
      %1047 = vrot.lane.b32.xlu0 %v171, 56
      %v1048 = vpop.permute.xlu0 %1047
      %1049 = vrot.lane.b32.xlu0 %v175, 56
      %v1050 = vpop.permute.xlu0 %1049
      %1051 = vrot.lane.b32.xlu0 %v172, 56
      %v1052 = vpop.permute.xlu0 %1051
      %1053 = vrot.lane.b32.xlu0 %v176, 56
      %v1054 = vpop.permute.xlu0 %1053
      %1055 = vrot.lane.b32.xlu0 %v173, 56
      %v1056 = vpop.permute.xlu0 %1055
      %1057 = vrot.lane.b32.xlu0 %v177, 56
      %v1058 = vpop.permute.xlu0 %1057
      %1059 = vrot.lane.b32.xlu0 %v174, 56
      %v1060 = vpop.permute.xlu0 %1059
      %1061 = vrot.lane.b32.xlu0 %v178, 56
      %v1062 = vpop.permute.xlu0 %1061
      %vm1063 = vcmp.lt.s32.totalorder %v204, 56
      %v1064 = vsel %vm1063, %v1056, %v1060
      %v1065 = vsel %vm1063, %v1058, %v1062
      %v1066 = vsel %vm1063, %v1052, %v1056
      %v1067 = vsel %vm1063, %v1054, %v1058
      %v1068 = vsel %vm1063, %v1048, %v1052
      %v1069 = vsel %vm1063, %v1050, %v1054
      %v1070 = vsel %vm1063, %v1060, %v1048
      %v1071 = vsel %vm1063, %v1062, %v1050
      %1072 = vst [vmem:[#allocation2 + $0x6c0] sm:$0xff] %v1068
      %1073 = vst [vmem:[#allocation2 + $0x6c8] sm:$0xff] %v1066
      %1074 = vst [vmem:[#allocation2 + $0x6d0] sm:$0xff] %v1064
      %1075 = vst [vmem:[#allocation2 + $0x6d8] sm:$0xff] %v1070
      %1076 = vst [vmem:[#allocation2 + $0x6e0] sm:$0xff] %v1069
      %1077 = vst [vmem:[#allocation2 + $0x6e8] sm:$0xff] %v1067
      %1078 = vst [vmem:[#allocation2 + $0x6f0] sm:$0xff] %v1065
      %1079 = vst [vmem:[#allocation2 + $0x6f8] sm:$0xff] %v1071
      %1080 = vrot.lane.b32.xlu0 %v171, 40
      %v1081 = vpop.permute.xlu0 %1080
      %1082 = vrot.lane.b32.xlu0 %v175, 40
      %v1083 = vpop.permute.xlu0 %1082
      %1084 = vrot.lane.b32.xlu0 %v172, 40
      %v1085 = vpop.permute.xlu0 %1084
      %1086 = vrot.lane.b32.xlu0 %v176, 40
      %v1087 = vpop.permute.xlu0 %1086
      %1088 = vrot.lane.b32.xlu0 %v173, 40
      %v1089 = vpop.permute.xlu0 %1088
      %1090 = vrot.lane.b32.xlu0 %v177, 40
      %v1091 = vpop.permute.xlu0 %1090
      %1092 = vrot.lane.b32.xlu0 %v174, 40
      %v1093 = vpop.permute.xlu0 %1092
      %1094 = vrot.lane.b32.xlu0 %v178, 40
      %v1095 = vpop.permute.xlu0 %1094
      %vm1096 = vcmp.lt.s32.totalorder %v204, 40
      %v1097 = vsel %vm1096, %v1089, %v1093
      %v1098 = vsel %vm1096, %v1091, %v1095
      %v1099 = vsel %vm1096, %v1085, %v1089
      %v1100 = vsel %vm1096, %v1087, %v1091
      %v1101 = vsel %vm1096, %v1081, %v1085
      %v1102 = vsel %vm1096, %v1083, %v1087
      %v1103 = vsel %vm1096, %v1093, %v1081
      %v1104 = vsel %vm1096, %v1095, %v1083
      %1105 = vst [vmem:[#allocation2 + $0x700] sm:$0xff] %v1101
      %1106 = vst [vmem:[#allocation2 + $0x708] sm:$0xff] %v1099
      %1107 = vst [vmem:[#allocation2 + $0x710] sm:$0xff] %v1097
      %1108 = vst [vmem:[#allocation2 + $0x718] sm:$0xff] %v1103
      %1109 = vst [vmem:[#allocation2 + $0x720] sm:$0xff] %v1102
      %1110 = vst [vmem:[#allocation2 + $0x728] sm:$0xff] %v1100
      %1111 = vst [vmem:[#allocation2 + $0x730] sm:$0xff] %v1098
      %1112 = vst [vmem:[#allocation2 + $0x738] sm:$0xff] %v1104
      %1113 = vrot.lane.b32.xlu0 %v171, 39
      %v1114 = vpop.permute.xlu0 %1113
      %1115 = vrot.lane.b32.xlu0 %v175, 39
      %v1116 = vpop.permute.xlu0 %1115
      %1117 = vrot.lane.b32.xlu0 %v172, 39
      %v1118 = vpop.permute.xlu0 %1117
      %1119 = vrot.lane.b32.xlu0 %v176, 39
      %v1120 = vpop.permute.xlu0 %1119
      %1121 = vrot.lane.b32.xlu0 %v173, 39
      %v1122 = vpop.permute.xlu0 %1121
      %1123 = vrot.lane.b32.xlu0 %v177, 39
      %v1124 = vpop.permute.xlu0 %1123
      %1125 = vrot.lane.b32.xlu0 %v174, 39
      %v1126 = vpop.permute.xlu0 %1125
      %1127 = vrot.lane.b32.xlu0 %v178, 39
      %v1128 = vpop.permute.xlu0 %1127
      %vm1129 = vcmp.lt.s32.totalorder %v204, 39
      %v1130 = vsel %vm1129, %v1122, %v1126
      %v1131 = vsel %vm1129, %v1124, %v1128
      %v1132 = vsel %vm1129, %v1118, %v1122
      %v1133 = vsel %vm1129, %v1120, %v1124
      %v1134 = vsel %vm1129, %v1114, %v1118
      %v1135 = vsel %vm1129, %v1116, %v1120
      %v1136 = vsel %vm1129, %v1126, %v1114
      %v1137 = vsel %vm1129, %v1128, %v1116
      %1138 = vst [vmem:[#allocation2 + $0x740] sm:$0xff] %v1134
      %1139 = vst [vmem:[#allocation2 + $0x748] sm:$0xff] %v1132
      %1140 = vst [vmem:[#allocation2 + $0x750] sm:$0xff] %v1130
      %1141 = vst [vmem:[#allocation2 + $0x758] sm:$0xff] %v1136
      %1142 = vst [vmem:[#allocation2 + $0x760] sm:$0xff] %v1135
      %1143 = vst [vmem:[#allocation2 + $0x768] sm:$0xff] %v1133
      %1144 = vst [vmem:[#allocation2 + $0x770] sm:$0xff] %v1131
      %1145 = vst [vmem:[#allocation2 + $0x778] sm:$0xff] %v1137
      %1146 = vrot.lane.b32.xlu0 %v171, 38
      %v1147 = vpop.permute.xlu0 %1146
      %1148 = vrot.lane.b32.xlu0 %v175, 38
      %v1149 = vpop.permute.xlu0 %1148
      %1150 = vrot.lane.b32.xlu0 %v172, 38
      %v1151 = vpop.permute.xlu0 %1150
      %1152 = vrot.lane.b32.xlu0 %v176, 38
      %v1153 = vpop.permute.xlu0 %1152
      %1154 = vrot.lane.b32.xlu0 %v173, 38
      %v1155 = vpop.permute.xlu0 %1154
      %1156 = vrot.lane.b32.xlu0 %v177, 38
      %v1157 = vpop.permute.xlu0 %1156
      %1158 = vrot.lane.b32.xlu0 %v174, 38
      %v1159 = vpop.permute.xlu0 %1158
      %1160 = vrot.lane.b32.xlu0 %v178, 38
      %v1161 = vpop.permute.xlu0 %1160
      %vm1162 = vcmp.lt.s32.totalorder %v204, 38
      %v1163 = vsel %vm1162, %v1155, %v1159
      %v1164 = vsel %vm1162, %v1157, %v1161
      %v1165 = vsel %vm1162, %v1151, %v1155
      %v1166 = vsel %vm1162, %v1153, %v1157
      %v1167 = vsel %vm1162, %v1147, %v1151
      %v1168 = vsel %vm1162, %v1149, %v1153
      %v1169 = vsel %vm1162, %v1159, %v1147
      %v1170 = vsel %vm1162, %v1161, %v1149
      %1171 = vst [vmem:[#allocation2 + $0x780] sm:$0xff] %v1167
      %1172 = vst [vmem:[#allocation2 + $0x788] sm:$0xff] %v1165
      %1173 = vst [vmem:[#allocation2 + $0x790] sm:$0xff] %v1163
      %1174 = vst [vmem:[#allocation2 + $0x798] sm:$0xff] %v1169
      %1175 = vst [vmem:[#allocation2 + $0x7a0] sm:$0xff] %v1168
      %1176 = vst [vmem:[#allocation2 + $0x7a8] sm:$0xff] %v1166
      %1177 = vst [vmem:[#allocation2 + $0x7b0] sm:$0xff] %v1164
      %1178 = vst [vmem:[#allocation2 + $0x7b8] sm:$0xff] %v1170
      %1179 = vrot.lane.b32.xlu0 %v171, 37
      %v1180 = vpop.permute.xlu0 %1179
      %1181 = vrot.lane.b32.xlu0 %v175, 37
      %v1182 = vpop.permute.xlu0 %1181
      %1183 = vrot.lane.b32.xlu0 %v172, 37
      %v1184 = vpop.permute.xlu0 %1183
      %1185 = vrot.lane.b32.xlu0 %v176, 37
      %v1186 = vpop.permute.xlu0 %1185
      %1187 = vrot.lane.b32.xlu0 %v173, 37
      %v1188 = vpop.permute.xlu0 %1187
      %1189 = vrot.lane.b32.xlu0 %v177, 37
      %v1190 = vpop.permute.xlu0 %1189
      %1191 = vrot.lane.b32.xlu0 %v174, 37
      %v1192 = vpop.permute.xlu0 %1191
      %1193 = vrot.lane.b32.xlu0 %v178, 37
      %v1194 = vpop.permute.xlu0 %1193
      %vm1195 = vcmp.lt.s32.totalorder %v204, 37
      %v1196 = vsel %vm1195, %v1188, %v1192
      %v1197 = vsel %vm1195, %v1190, %v1194
      %v1198 = vsel %vm1195, %v1184, %v1188
      %v1199 = vsel %vm1195, %v1186, %v1190
      %v1200 = vsel %vm1195, %v1180, %v1184
      %v1201 = vsel %vm1195, %v1182, %v1186
      %v1202 = vsel %vm1195, %v1192, %v1180
      %v1203 = vsel %vm1195, %v1194, %v1182
      %1204 = vst [vmem:[#allocation2 + $0x7c0] sm:$0xff] %v1200
      %1205 = vst [vmem:[#allocation2 + $0x7c8] sm:$0xff] %v1198
      %1206 = vst [vmem:[#allocation2 + $0x7d0] sm:$0xff] %v1196
      %1207 = vst [vmem:[#allocation2 + $0x7d8] sm:$0xff] %v1202
      %1208 = vst [vmem:[#allocation2 + $0x7e0] sm:$0xff] %v1201
      %1209 = vst [vmem:[#allocation2 + $0x7e8] sm:$0xff] %v1199
      %1210 = vst [vmem:[#allocation2 + $0x7f0] sm:$0xff] %v1197
      %1211 = vst [vmem:[#allocation2 + $0x7f8] sm:$0xff] %v1203
      %1212 = vrot.lane.b32.xlu0 %v171, 36
      %v1213 = vpop.permute.xlu0 %1212
      %1214 = vrot.lane.b32.xlu0 %v175, 36
      %v1215 = vpop.permute.xlu0 %1214
      %1216 = vrot.lane.b32.xlu0 %v172, 36
      %v1217 = vpop.permute.xlu0 %1216
      %1218 = vrot.lane.b32.xlu0 %v176, 36
      %v1219 = vpop.permute.xlu0 %1218
      %1220 = vrot.lane.b32.xlu0 %v173, 36
      %v1221 = vpop.permute.xlu0 %1220
      %1222 = vrot.lane.b32.xlu0 %v177, 36
      %v1223 = vpop.permute.xlu0 %1222
      %1224 = vrot.lane.b32.xlu0 %v174, 36
      %v1225 = vpop.permute.xlu0 %1224
      %1226 = vrot.lane.b32.xlu0 %v178, 36
      %v1227 = vpop.permute.xlu0 %1226
      %vm1228 = vcmp.lt.s32.totalorder %v204, 36
      %v1229 = vsel %vm1228, %v1221, %v1225
      %v1230 = vsel %vm1228, %v1223, %v1227
      %v1231 = vsel %vm1228, %v1217, %v1221
      %v1232 = vsel %vm1228, %v1219, %v1223
      %v1233 = vsel %vm1228, %v1213, %v1217
      %v1234 = vsel %vm1228, %v1215, %v1219
      %v1235 = vsel %vm1228, %v1225, %v1213
      %v1236 = vsel %vm1228, %v1227, %v1215
      %1237 = vst [vmem:[#allocation2 + $0x800] sm:$0xff] %v1233
      %1238 = vst [vmem:[#allocation2 + $0x808] sm:$0xff] %v1231
      %1239 = vst [vmem:[#allocation2 + $0x810] sm:$0xff] %v1229
      %1240 = vst [vmem:[#allocation2 + $0x818] sm:$0xff] %v1235
      %1241 = vst [vmem:[#allocation2 + $0x820] sm:$0xff] %v1234
      %1242 = vst [vmem:[#allocation2 + $0x828] sm:$0xff] %v1232
      %1243 = vst [vmem:[#allocation2 + $0x830] sm:$0xff] %v1230
      %1244 = vst [vmem:[#allocation2 + $0x838] sm:$0xff] %v1236
      %1245 = vrot.lane.b32.xlu0 %v171, 35
      %v1246 = vpop.permute.xlu0 %1245
      %1247 = vrot.lane.b32.xlu0 %v175, 35
      %v1248 = vpop.permute.xlu0 %1247
      %1249 = vrot.lane.b32.xlu0 %v172, 35
      %v1250 = vpop.permute.xlu0 %1249
      %1251 = vrot.lane.b32.xlu0 %v176, 35
      %v1252 = vpop.permute.xlu0 %1251
      %1253 = vrot.lane.b32.xlu0 %v173, 35
      %v1254 = vpop.permute.xlu0 %1253
      %1255 = vrot.lane.b32.xlu0 %v177, 35
      %v1256 = vpop.permute.xlu0 %1255
      %1257 = vrot.lane.b32.xlu0 %v174, 35
      %v1258 = vpop.permute.xlu0 %1257
      %1259 = vrot.lane.b32.xlu0 %v178, 35
      %v1260 = vpop.permute.xlu0 %1259
      %vm1261 = vcmp.lt.s32.totalorder %v204, 35
      %v1262 = vsel %vm1261, %v1254, %v1258
      %v1263 = vsel %vm1261, %v1256, %v1260
      %v1264 = vsel %vm1261, %v1250, %v1254
      %v1265 = vsel %vm1261, %v1252, %v1256
      %v1266 = vsel %vm1261, %v1246, %v1250
      %v1267 = vsel %vm1261, %v1248, %v1252
      %v1268 = vsel %vm1261, %v1258, %v1246
      %v1269 = vsel %vm1261, %v1260, %v1248
      %1270 = vst [vmem:[#allocation2 + $0x840] sm:$0xff] %v1266
      %1271 = vst [vmem:[#allocation2 + $0x848] sm:$0xff] %v1264
      %1272 = vst [vmem:[#allocation2 + $0x850] sm:$0xff] %v1262
      %1273 = vst [vmem:[#allocation2 + $0x858] sm:$0xff] %v1268
      %1274 = vst [vmem:[#allocation2 + $0x860] sm:$0xff] %v1267
      %1275 = vst [vmem:[#allocation2 + $0x868] sm:$0xff] %v1265
      %1276 = vst [vmem:[#allocation2 + $0x870] sm:$0xff] %v1263
      %1277 = vst [vmem:[#allocation2 + $0x878] sm:$0xff] %v1269
      %1278 = vrot.lane.b32.xlu0 %v171, 34
      %v1279 = vpop.permute.xlu0 %1278
      %1280 = vrot.lane.b32.xlu0 %v175, 34
      %v1281 = vpop.permute.xlu0 %1280
      %1282 = vrot.lane.b32.xlu0 %v172, 34
      %v1283 = vpop.permute.xlu0 %1282
      %1284 = vrot.lane.b32.xlu0 %v176, 34
      %v1285 = vpop.permute.xlu0 %1284
      %1286 = vrot.lane.b32.xlu0 %v173, 34
      %v1287 = vpop.permute.xlu0 %1286
      %1288 = vrot.lane.b32.xlu0 %v177, 34
      %v1289 = vpop.permute.xlu0 %1288
      %1290 = vrot.lane.b32.xlu0 %v174, 34
      %v1291 = vpop.permute.xlu0 %1290
      %1292 = vrot.lane.b32.xlu0 %v178, 34
      %v1293 = vpop.permute.xlu0 %1292
      %vm1294 = vcmp.lt.s32.totalorder %v204, 34
      %v1295 = vsel %vm1294, %v1287, %v1291
      %v1296 = vsel %vm1294, %v1289, %v1293
      %v1297 = vsel %vm1294, %v1283, %v1287
      %v1298 = vsel %vm1294, %v1285, %v1289
      %v1299 = vsel %vm1294, %v1279, %v1283
      %v1300 = vsel %vm1294, %v1281, %v1285
      %v1301 = vsel %vm1294, %v1291, %v1279
      %v1302 = vsel %vm1294, %v1293, %v1281
      %1303 = vst [vmem:[#allocation2 + $0x880] sm:$0xff] %v1299
      %1304 = vst [vmem:[#allocation2 + $0x888] sm:$0xff] %v1297
      %1305 = vst [vmem:[#allocation2 + $0x890] sm:$0xff] %v1295
      %1306 = vst [vmem:[#allocation2 + $0x898] sm:$0xff] %v1301
      %1307 = vst [vmem:[#allocation2 + $0x8a0] sm:$0xff] %v1300
      %1308 = vst [vmem:[#allocation2 + $0x8a8] sm:$0xff] %v1298
      %1309 = vst [vmem:[#allocation2 + $0x8b0] sm:$0xff] %v1296
      %1310 = vst [vmem:[#allocation2 + $0x8b8] sm:$0xff] %v1302
      %1311 = vrot.lane.b32.xlu0 %v171, 18
      %v1312 = vpop.permute.xlu0 %1311
      %1313 = vrot.lane.b32.xlu0 %v175, 18
      %v1314 = vpop.permute.xlu0 %1313
      %1315 = vrot.lane.b32.xlu0 %v172, 18
      %v1316 = vpop.permute.xlu0 %1315
      %1317 = vrot.lane.b32.xlu0 %v176, 18
      %v1318 = vpop.permute.xlu0 %1317
      %1319 = vrot.lane.b32.xlu0 %v173, 18
      %v1320 = vpop.permute.xlu0 %1319
      %1321 = vrot.lane.b32.xlu0 %v177, 18
      %v1322 = vpop.permute.xlu0 %1321
      %1323 = vrot.lane.b32.xlu0 %v174, 18
      %v1324 = vpop.permute.xlu0 %1323
      %1325 = vrot.lane.b32.xlu0 %v178, 18
      %v1326 = vpop.permute.xlu0 %1325
      %vm1327 = vcmp.lt.s32.totalorder %v204, 18
      %v1328 = vsel %vm1327, %v1320, %v1324
      %v1329 = vsel %vm1327, %v1322, %v1326
      %v1330 = vsel %vm1327, %v1316, %v1320
      %v1331 = vsel %vm1327, %v1318, %v1322
      %v1332 = vsel %vm1327, %v1312, %v1316
      %v1333 = vsel %vm1327, %v1314, %v1318
      %v1334 = vsel %vm1327, %v1324, %v1312
      %v1335 = vsel %vm1327, %v1326, %v1314
      %1336 = vst [vmem:[#allocation2 + $0x8c0] sm:$0xff] %v1332
      %1337 = vst [vmem:[#allocation2 + $0x8c8] sm:$0xff] %v1330
      %1338 = vst [vmem:[#allocation2 + $0x8d0] sm:$0xff] %v1328
      %1339 = vst [vmem:[#allocation2 + $0x8d8] sm:$0xff] %v1334
      %1340 = vst [vmem:[#allocation2 + $0x8e0] sm:$0xff] %v1333
      %1341 = vst [vmem:[#allocation2 + $0x8e8] sm:$0xff] %v1331
      %1342 = vst [vmem:[#allocation2 + $0x8f0] sm:$0xff] %v1329
      %1343 = vst [vmem:[#allocation2 + $0x8f8] sm:$0xff] %v1335
      %1344 = vrot.lane.b32.xlu0 %v171, 17
      %v1345 = vpop.permute.xlu0 %1344
      %1346 = vrot.lane.b32.xlu0 %v175, 17
      %v1347 = vpop.permute.xlu0 %1346
      %1348 = vrot.lane.b32.xlu0 %v172, 17
      %v1349 = vpop.permute.xlu0 %1348
      %1350 = vrot.lane.b32.xlu0 %v176, 17
      %v1351 = vpop.permute.xlu0 %1350
      %1352 = vrot.lane.b32.xlu0 %v173, 17
      %v1353 = vpop.permute.xlu0 %1352
      %1354 = vrot.lane.b32.xlu0 %v177, 17
      %v1355 = vpop.permute.xlu0 %1354
      %1356 = vrot.lane.b32.xlu0 %v174, 17
      %v1357 = vpop.permute.xlu0 %1356
      %1358 = vrot.lane.b32.xlu0 %v178, 17
      %v1359 = vpop.permute.xlu0 %1358
      %vm1360 = vcmp.lt.s32.totalorder %v204, 17
      %v1361 = vsel %vm1360, %v1353, %v1357
      %v1362 = vsel %vm1360, %v1355, %v1359
      %v1363 = vsel %vm1360, %v1349, %v1353
      %v1364 = vsel %vm1360, %v1351, %v1355
      %v1365 = vsel %vm1360, %v1345, %v1349
      %v1366 = vsel %vm1360, %v1347, %v1351
      %v1367 = vsel %vm1360, %v1357, %v1345
      %v1368 = vsel %vm1360, %v1359, %v1347
      %1369 = vst [vmem:[#allocation2 + $0x900] sm:$0xff] %v1365
      %1370 = vst [vmem:[#allocation2 + $0x908] sm:$0xff] %v1363
      %1371 = vst [vmem:[#allocation2 + $0x910] sm:$0xff] %v1361
      %1372 = vst [vmem:[#allocation2 + $0x918] sm:$0xff] %v1367
      %1373 = vst [vmem:[#allocation2 + $0x920] sm:$0xff] %v1366
      %1374 = vst [vmem:[#allocation2 + $0x928] sm:$0xff] %v1364
      %1375 = vst [vmem:[#allocation2 + $0x930] sm:$0xff] %v1362
      %1376 = vst [vmem:[#allocation2 + $0x938] sm:$0xff] %v1368
      %1377 = vrot.lane.b32.xlu0 %v171, 16
      %v1378 = vpop.permute.xlu0 %1377
      %1379 = vrot.lane.b32.xlu0 %v175, 16
      %v1380 = vpop.permute.xlu0 %1379
      %1381 = vrot.lane.b32.xlu0 %v172, 16
      %v1382 = vpop.permute.xlu0 %1381
      %1383 = vrot.lane.b32.xlu0 %v176, 16
      %v1384 = vpop.permute.xlu0 %1383
      %1385 = vrot.lane.b32.xlu0 %v173, 16
      %v1386 = vpop.permute.xlu0 %1385
      %1387 = vrot.lane.b32.xlu0 %v177, 16
      %v1388 = vpop.permute.xlu0 %1387
      %1389 = vrot.lane.b32.xlu0 %v174, 16
      %v1390 = vpop.permute.xlu0 %1389
      %1391 = vrot.lane.b32.xlu0 %v178, 16
      %v1392 = vpop.permute.xlu0 %1391
      %vm1393 = vcmp.lt.s32.totalorder %v204, 16
      %v1394 = vsel %vm1393, %v1386, %v1390
      %v1395 = vsel %vm1393, %v1388, %v1392
      %v1396 = vsel %vm1393, %v1382, %v1386
      %v1397 = vsel %vm1393, %v1384, %v1388
      %v1398 = vsel %vm1393, %v1378, %v1382
      %v1399 = vsel %vm1393, %v1380, %v1384
      %v1400 = vsel %vm1393, %v1390, %v1378
      %v1401 = vsel %vm1393, %v1392, %v1380
      %1402 = vst [vmem:[#allocation2 + $0x940] sm:$0xff] %v1398
      %1403 = vst [vmem:[#allocation2 + $0x948] sm:$0xff] %v1396
      %1404 = vst [vmem:[#allocation2 + $0x950] sm:$0xff] %v1394
      %1405 = vst [vmem:[#allocation2 + $0x958] sm:$0xff] %v1400
      %1406 = vst [vmem:[#allocation2 + $0x960] sm:$0xff] %v1399
      %1407 = vst [vmem:[#allocation2 + $0x968] sm:$0xff] %v1397
      %1408 = vst [vmem:[#allocation2 + $0x970] sm:$0xff] %v1395
      %1409 = vst [vmem:[#allocation2 + $0x978] sm:$0xff] %v1401
      %1410 = vrot.lane.b32.xlu0 %v171, 15
      %v1411 = vpop.permute.xlu0 %1410
      %1412 = vrot.lane.b32.xlu0 %v175, 15
      %v1413 = vpop.permute.xlu0 %1412
      %1414 = vrot.lane.b32.xlu0 %v172, 15
      %v1415 = vpop.permute.xlu0 %1414
      %1416 = vrot.lane.b32.xlu0 %v176, 15
      %v1417 = vpop.permute.xlu0 %1416
      %1418 = vrot.lane.b32.xlu0 %v173, 15
      %v1419 = vpop.permute.xlu0 %1418
      %1420 = vrot.lane.b32.xlu0 %v177, 15
      %v1421 = vpop.permute.xlu0 %1420
      %1422 = vrot.lane.b32.xlu0 %v174, 15
      %v1423 = vpop.permute.xlu0 %1422
      %1424 = vrot.lane.b32.xlu0 %v178, 15
      %v1425 = vpop.permute.xlu0 %1424
      %vm1426 = vcmp.lt.s32.totalorder %v204, 15
      %v1427 = vsel %vm1426, %v1419, %v1423
      %v1428 = vsel %vm1426, %v1421, %v1425
      %v1429 = vsel %vm1426, %v1415, %v1419
      %v1430 = vsel %vm1426, %v1417, %v1421
      %v1431 = vsel %vm1426, %v1411, %v1415
      %v1432 = vsel %vm1426, %v1413, %v1417
      %v1433 = vsel %vm1426, %v1423, %v1411
      %v1434 = vsel %vm1426, %v1425, %v1413
      %1435 = vst [vmem:[#allocation2 + $0x980] sm:$0xff] %v1431
      %1436 = vst [vmem:[#allocation2 + $0x988] sm:$0xff] %v1429
      %1437 = vst [vmem:[#allocation2 + $0x990] sm:$0xff] %v1427
      %1438 = vst [vmem:[#allocation2 + $0x998] sm:$0xff] %v1433
      %1439 = vst [vmem:[#allocation2 + $0x9a0] sm:$0xff] %v1432
      %1440 = vst [vmem:[#allocation2 + $0x9a8] sm:$0xff] %v1430
      %1441 = vst [vmem:[#allocation2 + $0x9b0] sm:$0xff] %v1428
      %1442 = vst [vmem:[#allocation2 + $0x9b8] sm:$0xff] %v1434
      %1443 = vrot.lane.b32.xlu0 %v171, 14
      %v1444 = vpop.permute.xlu0 %1443
      %1445 = vrot.lane.b32.xlu0 %v175, 14
      %v1446 = vpop.permute.xlu0 %1445
      %1447 = vrot.lane.b32.xlu0 %v172, 14
      %v1448 = vpop.permute.xlu0 %1447
      %1449 = vrot.lane.b32.xlu0 %v176, 14
      %v1450 = vpop.permute.xlu0 %1449
      %1451 = vrot.lane.b32.xlu0 %v173, 14
      %v1452 = vpop.permute.xlu0 %1451
      %1453 = vrot.lane.b32.xlu0 %v177, 14
      %v1454 = vpop.permute.xlu0 %1453
      %1455 = vrot.lane.b32.xlu0 %v174, 14
      %v1456 = vpop.permute.xlu0 %1455
      %1457 = vrot.lane.b32.xlu0 %v178, 14
      %v1458 = vpop.permute.xlu0 %1457
      %vm1459 = vcmp.lt.s32.totalorder %v204, 14
      %v1460 = vsel %vm1459, %v1452, %v1456
      %v1461 = vsel %vm1459, %v1454, %v1458
      %v1462 = vsel %vm1459, %v1448, %v1452
      %v1463 = vsel %vm1459, %v1450, %v1454
      %v1464 = vsel %vm1459, %v1444, %v1448
      %v1465 = vsel %vm1459, %v1446, %v1450
      %v1466 = vsel %vm1459, %v1456, %v1444
      %v1467 = vsel %vm1459, %v1458, %v1446
      %1468 = vst [vmem:[#allocation2 + $0x9c0] sm:$0xff] %v1464
      %1469 = vst [vmem:[#allocation2 + $0x9c8] sm:$0xff] %v1462
      %1470 = vst [vmem:[#allocation2 + $0x9d0] sm:$0xff] %v1460
      %1471 = vst [vmem:[#allocation2 + $0x9d8] sm:$0xff] %v1466
      %1472 = vst [vmem:[#allocation2 + $0x9e0] sm:$0xff] %v1465
      %1473 = vst [vmem:[#allocation2 + $0x9e8] sm:$0xff] %v1463
      %1474 = vst [vmem:[#allocation2 + $0x9f0] sm:$0xff] %v1461
      %1475 = vst [vmem:[#allocation2 + $0x9f8] sm:$0xff] %v1467
      %1476 = vrot.lane.b32.xlu0 %v171, 13
      %v1477 = vpop.permute.xlu0 %1476
      %1478 = vrot.lane.b32.xlu0 %v175, 13
      %v1479 = vpop.permute.xlu0 %1478
      %1480 = vrot.lane.b32.xlu0 %v172, 13
      %v1481 = vpop.permute.xlu0 %1480
      %1482 = vrot.lane.b32.xlu0 %v176, 13
      %v1483 = vpop.permute.xlu0 %1482
      %1484 = vrot.lane.b32.xlu0 %v173, 13
      %v1485 = vpop.permute.xlu0 %1484
      %1486 = vrot.lane.b32.xlu0 %v177, 13
      %v1487 = vpop.permute.xlu0 %1486
      %1488 = vrot.lane.b32.xlu0 %v174, 13
      %v1489 = vpop.permute.xlu0 %1488
      %1490 = vrot.lane.b32.xlu0 %v178, 13
      %v1491 = vpop.permute.xlu0 %1490
      %vm1492 = vcmp.lt.s32.totalorder %v204, 13
      %v1493 = vsel %vm1492, %v1485, %v1489
      %v1494 = vsel %vm1492, %v1487, %v1491
      %v1495 = vsel %vm1492, %v1481, %v1485
      %v1496 = vsel %vm1492, %v1483, %v1487
      %v1497 = vsel %vm1492, %v1477, %v1481
      %v1498 = vsel %vm1492, %v1479, %v1483
      %v1499 = vsel %vm1492, %v1489, %v1477
      %v1500 = vsel %vm1492, %v1491, %v1479
      %1501 = vst [vmem:[#allocation2 + $0xa00] sm:$0xff] %v1497
      %1502 = vst [vmem:[#allocation2 + $0xa08] sm:$0xff] %v1495
      %1503 = vst [vmem:[#allocation2 + $0xa10] sm:$0xff] %v1493
      %1504 = vst [vmem:[#allocation2 + $0xa18] sm:$0xff] %v1499
      %1505 = vst [vmem:[#allocation2 + $0xa20] sm:$0xff] %v1498
      %1506 = vst [vmem:[#allocation2 + $0xa28] sm:$0xff] %v1496
      %1507 = vst [vmem:[#allocation2 + $0xa30] sm:$0xff] %v1494
      %1508 = vst [vmem:[#allocation2 + $0xa38] sm:$0xff] %v1500
      %1509 = vrot.lane.b32.xlu0 %v171, 12
      %v1510 = vpop.permute.xlu0 %1509
      %1511 = vrot.lane.b32.xlu0 %v175, 12
      %v1512 = vpop.permute.xlu0 %1511
      %1513 = vrot.lane.b32.xlu0 %v172, 12
      %v1514 = vpop.permute.xlu0 %1513
      %1515 = vrot.lane.b32.xlu0 %v176, 12
      %v1516 = vpop.permute.xlu0 %1515
      %1517 = vrot.lane.b32.xlu0 %v173, 12
      %v1518 = vpop.permute.xlu0 %1517
      %1519 = vrot.lane.b32.xlu0 %v177, 12
      %v1520 = vpop.permute.xlu0 %1519
      %1521 = vrot.lane.b32.xlu0 %v174, 12
      %v1522 = vpop.permute.xlu0 %1521
      %1523 = vrot.lane.b32.xlu0 %v178, 12
      %v1524 = vpop.permute.xlu0 %1523
      %vm1525 = vcmp.lt.s32.totalorder %v204, 12
      %v1526 = vsel %vm1525, %v1518, %v1522
      %v1527 = vsel %vm1525, %v1520, %v1524
      %v1528 = vsel %vm1525, %v1514, %v1518
      %v1529 = vsel %vm1525, %v1516, %v1520
      %v1530 = vsel %vm1525, %v1510, %v1514
      %v1531 = vsel %vm1525, %v1512, %v1516
      %v1532 = vsel %vm1525, %v1522, %v1510
      %v1533 = vsel %vm1525, %v1524, %v1512
      %1534 = vst [vmem:[#allocation2 + $0xa40] sm:$0xff] %v1530
      %1535 = vst [vmem:[#allocation2 + $0xa48] sm:$0xff] %v1528
      %1536 = vst [vmem:[#allocation2 + $0xa50] sm:$0xff] %v1526
      %1537 = vst [vmem:[#allocation2 + $0xa58] sm:$0xff] %v1532
      %1538 = vst [vmem:[#allocation2 + $0xa60] sm:$0xff] %v1531
      %1539 = vst [vmem:[#allocation2 + $0xa68] sm:$0xff] %v1529
      %1540 = vst [vmem:[#allocation2 + $0xa70] sm:$0xff] %v1527
      %1541 = vst [vmem:[#allocation2 + $0xa78] sm:$0xff] %v1533
      %1542 = vst [vmem:[#allocation2 + $0xa80] sm:$0xff] %v307
      %1543 = vst [vmem:[#allocation2 + $0xa88] sm:$0xff] %v305
      %1544 = vst [vmem:[#allocation2 + $0xa90] sm:$0xff] %v311
      %1545 = vst [vmem:[#allocation2 + $0xa98] sm:$0xff] %v309
      %1546 = vst [vmem:[#allocation2 + $0xaa0] sm:$0xff] %v308
      %1547 = vst [vmem:[#allocation2 + $0xaa8] sm:$0xff] %v306
      %1548 = vst [vmem:[#allocation2 + $0xab0] sm:$0xff] %v312
      %1549 = vst [vmem:[#allocation2 + $0xab8] sm:$0xff] %v310
      %1550 = vst [vmem:[#allocation2 + $0xac0] sm:$0xff] %v340
      %1551 = vst [vmem:[#allocation2 + $0xac8] sm:$0xff] %v338
      %1552 = vst [vmem:[#allocation2 + $0xad0] sm:$0xff] %v344
      %1553 = vst [vmem:[#allocation2 + $0xad8] sm:$0xff] %v342
      %1554 = vst [vmem:[#allocation2 + $0xae0] sm:$0xff] %v341
      %1555 = vst [vmem:[#allocation2 + $0xae8] sm:$0xff] %v339
      %1556 = vst [vmem:[#allocation2 + $0xaf0] sm:$0xff] %v345
      %1557 = vst [vmem:[#allocation2 + $0xaf8] sm:$0xff] %v343
      %1558 = vst [vmem:[#allocation2 + $0xb00] sm:$0xff] %v373
      %1559 = vst [vmem:[#allocation2 + $0xb08] sm:$0xff] %v371
      %1560 = vst [vmem:[#allocation2 + $0xb10] sm:$0xff] %v377
      %1561 = vst [vmem:[#allocation2 + $0xb18] sm:$0xff] %v375
      %1562 = vst [vmem:[#allocation2 + $0xb20] sm:$0xff] %v374
      %1563 = vst [vmem:[#allocation2 + $0xb28] sm:$0xff] %v372
      %1564 = vst [vmem:[#allocation2 + $0xb30] sm:$0xff] %v378
      %1565 = vst [vmem:[#allocation2 + $0xb38] sm:$0xff] %v376
      %1566 = vrot.lane.b32.xlu0 %v171, 121
      %v1567 = vpop.permute.xlu0 %1566
      %1568 = vrot.lane.b32.xlu0 %v175, 121
      %v1569 = vpop.permute.xlu0 %1568
      %1570 = vrot.lane.b32.xlu0 %v172, 121
      %v1571 = vpop.permute.xlu0 %1570
      %1572 = vrot.lane.b32.xlu0 %v176, 121
      %v1573 = vpop.permute.xlu0 %1572
      %1574 = vrot.lane.b32.xlu0 %v173, 121
      %v1575 = vpop.permute.xlu0 %1574
      %1576 = vrot.lane.b32.xlu0 %v177, 121
      %v1577 = vpop.permute.xlu0 %1576
      %1578 = vrot.lane.b32.xlu0 %v174, 121
      %v1579 = vpop.permute.xlu0 %1578
      %1580 = vrot.lane.b32.xlu0 %v178, 121
      %v1581 = vpop.permute.xlu0 %1580
      %vm1582 = vcmp.lt.s32.totalorder %v204, 121
      %v1583 = vsel %vm1582, %v1575, %v1579
      %v1584 = vsel %vm1582, %v1577, %v1581
      %v1585 = vsel %vm1582, %v1571, %v1575
      %v1586 = vsel %vm1582, %v1573, %v1577
      %v1587 = vsel %vm1582, %v1567, %v1571
      %v1588 = vsel %vm1582, %v1569, %v1573
      %v1589 = vsel %vm1582, %v1579, %v1567
      %v1590 = vsel %vm1582, %v1581, %v1569
      %1591 = vst [vmem:[#allocation2 + $0xb40] sm:$0xff] %v1585
      %1592 = vst [vmem:[#allocation2 + $0xb48] sm:$0xff] %v1583
      %1593 = vst [vmem:[#allocation2 + $0xb50] sm:$0xff] %v1589
      %1594 = vst [vmem:[#allocation2 + $0xb58] sm:$0xff] %v1587
      %1595 = vst [vmem:[#allocation2 + $0xb60] sm:$0xff] %v1586
      %1596 = vst [vmem:[#allocation2 + $0xb68] sm:$0xff] %v1584
      %1597 = vst [vmem:[#allocation2 + $0xb70] sm:$0xff] %v1590
      %1598 = vst [vmem:[#allocation2 + $0xb78] sm:$0xff] %v1588
      %1599 = vrot.lane.b32.xlu0 %v171, 120
      %v1600 = vpop.permute.xlu0 %1599
      %1601 = vrot.lane.b32.xlu0 %v175, 120
      %v1602 = vpop.permute.xlu0 %1601
      %1603 = vrot.lane.b32.xlu0 %v172, 120
      %v1604 = vpop.permute.xlu0 %1603
      %1605 = vrot.lane.b32.xlu0 %v176, 120
      %v1606 = vpop.permute.xlu0 %1605
      %1607 = vrot.lane.b32.xlu0 %v173, 120
      %v1608 = vpop.permute.xlu0 %1607
      %1609 = vrot.lane.b32.xlu0 %v177, 120
      %v1610 = vpop.permute.xlu0 %1609
      %1611 = vrot.lane.b32.xlu0 %v174, 120
      %v1612 = vpop.permute.xlu0 %1611
      %1613 = vrot.lane.b32.xlu0 %v178, 120
      %v1614 = vpop.permute.xlu0 %1613
      %vm1615 = vcmp.lt.s32.totalorder %v204, 120
      %v1616 = vsel %vm1615, %v1608, %v1612
      %v1617 = vsel %vm1615, %v1610, %v1614
      %v1618 = vsel %vm1615, %v1604, %v1608
      %v1619 = vsel %vm1615, %v1606, %v1610
      %v1620 = vsel %vm1615, %v1600, %v1604
      %v1621 = vsel %vm1615, %v1602, %v1606
      %v1622 = vsel %vm1615, %v1612, %v1600
      %v1623 = vsel %vm1615, %v1614, %v1602
      %1624 = vst [vmem:[#allocation2 + $0xb80] sm:$0xff] %v1618
      %1625 = vst [vmem:[#allocation2 + $0xb88] sm:$0xff] %v1616
      %1626 = vst [vmem:[#allocation2 + $0xb90] sm:$0xff] %v1622
      %1627 = vst [vmem:[#allocation2 + $0xb98] sm:$0xff] %v1620
      %1628 = vst [vmem:[#allocation2 + $0xba0] sm:$0xff] %v1619
      %1629 = vst [vmem:[#allocation2 + $0xba8] sm:$0xff] %v1617
      %1630 = vst [vmem:[#allocation2 + $0xbb0] sm:$0xff] %v1623
      %1631 = vst [vmem:[#allocation2 + $0xbb8] sm:$0xff] %v1621
      %1632 = vrot.lane.b32.xlu0 %v171, 119
      %v1633 = vpop.permute.xlu0 %1632
      %1634 = vrot.lane.b32.xlu0 %v175, 119
      %v1635 = vpop.permute.xlu0 %1634
      %1636 = vrot.lane.b32.xlu0 %v172, 119
      %v1637 = vpop.permute.xlu0 %1636
      %1638 = vrot.lane.b32.xlu0 %v176, 119
      %v1639 = vpop.permute.xlu0 %1638
      %1640 = vrot.lane.b32.xlu0 %v173, 119
      %v1641 = vpop.permute.xlu0 %1640
      %1642 = vrot.lane.b32.xlu0 %v177, 119
      %v1643 = vpop.permute.xlu0 %1642
      %1644 = vrot.lane.b32.xlu0 %v174, 119
      %v1645 = vpop.permute.xlu0 %1644
      %1646 = vrot.lane.b32.xlu0 %v178, 119
      %v1647 = vpop.permute.xlu0 %1646
      %vm1648 = vcmp.lt.s32.totalorder %v204, 119
      %v1649 = vsel %vm1648, %v1641, %v1645
      %v1650 = vsel %vm1648, %v1643, %v1647
      %v1651 = vsel %vm1648, %v1637, %v1641
      %v1652 = vsel %vm1648, %v1639, %v1643
      %v1653 = vsel %vm1648, %v1633, %v1637
      %v1654 = vsel %vm1648, %v1635, %v1639
      %v1655 = vsel %vm1648, %v1645, %v1633
      %v1656 = vsel %vm1648, %v1647, %v1635
      %1657 = vst [vmem:[#allocation2 + $0xbc0] sm:$0xff] %v1651
      %1658 = vst [vmem:[#allocation2 + $0xbc8] sm:$0xff] %v1649
      %1659 = vst [vmem:[#allocation2 + $0xbd0] sm:$0xff] %v1655
      %1660 = vst [vmem:[#allocation2 + $0xbd8] sm:$0xff] %v1653
      %1661 = vst [vmem:[#allocation2 + $0xbe0] sm:$0xff] %v1652
      %1662 = vst [vmem:[#allocation2 + $0xbe8] sm:$0xff] %v1650
      %1663 = vst [vmem:[#allocation2 + $0xbf0] sm:$0xff] %v1656
      %1664 = vst [vmem:[#allocation2 + $0xbf8] sm:$0xff] %v1654
      %1665 = vrot.lane.b32.xlu0 %v171, 118
      %v1666 = vpop.permute.xlu0 %1665
      %1667 = vrot.lane.b32.xlu0 %v175, 118
      %v1668 = vpop.permute.xlu0 %1667
      %1669 = vrot.lane.b32.xlu0 %v172, 118
      %v1670 = vpop.permute.xlu0 %1669
      %1671 = vrot.lane.b32.xlu0 %v176, 118
      %v1672 = vpop.permute.xlu0 %1671
      %1673 = vrot.lane.b32.xlu0 %v173, 118
      %v1674 = vpop.permute.xlu0 %1673
      %1675 = vrot.lane.b32.xlu0 %v177, 118
      %v1676 = vpop.permute.xlu0 %1675
      %1677 = vrot.lane.b32.xlu0 %v174, 118
      %v1678 = vpop.permute.xlu0 %1677
      %1679 = vrot.lane.b32.xlu0 %v178, 118
      %v1680 = vpop.permute.xlu0 %1679
      %vm1681 = vcmp.lt.s32.totalorder %v204, 118
      %v1682 = vsel %vm1681, %v1674, %v1678
      %v1683 = vsel %vm1681, %v1676, %v1680
      %v1684 = vsel %vm1681, %v1670, %v1674
      %v1685 = vsel %vm1681, %v1672, %v1676
      %v1686 = vsel %vm1681, %v1666, %v1670
      %v1687 = vsel %vm1681, %v1668, %v1672
      %v1688 = vsel %vm1681, %v1678, %v1666
      %v1689 = vsel %vm1681, %v1680, %v1668
      %1690 = vst [vmem:[#allocation2 + $0xc00] sm:$0xff] %v1684
      %1691 = vst [vmem:[#allocation2 + $0xc08] sm:$0xff] %v1682
      %1692 = vst [vmem:[#allocation2 + $0xc10] sm:$0xff] %v1688
      %1693 = vst [vmem:[#allocation2 + $0xc18] sm:$0xff] %v1686
      %1694 = vst [vmem:[#allocation2 + $0xc20] sm:$0xff] %v1685
      %1695 = vst [vmem:[#allocation2 + $0xc28] sm:$0xff] %v1683
      %1696 = vst [vmem:[#allocation2 + $0xc30] sm:$0xff] %v1689
      %1697 = vst [vmem:[#allocation2 + $0xc38] sm:$0xff] %v1687
      %v1698 = vld [vmem:[%s1] sm:$0xff]
      %v1699 = vld [vmem:[%s1 + $0x8] sm:$0xff]
      %v1700 = vld [vmem:[%s1 + $0x10] sm:$0xff]
      %v1701 = vld [vmem:[%s1 + $0x18] sm:$0xff]
      %v1702 = vld [vmem:[%s1 + $0x20] sm:$0xff]
      %v1703 = vld [vmem:[%s1 + $0x28] sm:$0xff]
      %v1704 = vld [vmem:[%s1 + $0x30] sm:$0xff]
      %v1705 = vld [vmem:[%s1 + $0x38] sm:$0xff]
      %v1706 = vld [vmem:[%s1 + $0x40] sm:$0xff]
      %v1707 = vld [vmem:[%s1 + $0x48] sm:$0xff]
      %v1708 = vld [vmem:[%s1 + $0x50] sm:$0xff]
      %v1709 = vld [vmem:[%s1 + $0x58] sm:$0xff]
      %v1710 = vld [vmem:[%s1 + $0x60] sm:$0xff]
      %v1711 = vld [vmem:[%s1 + $0x68] sm:$0xff]
      %v1712 = vld [vmem:[#allocation2] sm:$0xff]
      %v1713 = vld [vmem:[#allocation2 + $0x8] sm:$0xff]
      %v1714 = vld [vmem:[#allocation2 + $0x10] sm:$0xff]
      %v1715 = vld [vmem:[#allocation2 + $0x18] sm:$0xff]
      %v1716 = vld [vmem:[#allocation2 + $0x20] sm:$0xff]
      %v1717 = vld [vmem:[#allocation2 + $0x28] sm:$0xff]
      %v1718 = vld [vmem:[#allocation2 + $0x30] sm:$0xff]
      %v1719 = vld [vmem:[#allocation2 + $0x38] sm:$0xff]
      %v1720 = vld [vmem:[#allocation2 + $0x40] sm:$0xff]
      %v1721 = vld [vmem:[#allocation2 + $0x48] sm:$0xff]
      %v1722 = vld [vmem:[#allocation2 + $0x50] sm:$0xff]
      %v1723 = vld [vmem:[#allocation2 + $0x58] sm:$0xff]
      %v1724 = vld [vmem:[#allocation2 + $0x60] sm:$0xff]
      %v1725 = vld [vmem:[#allocation2 + $0x68] sm:$0xff]
      %v1726 = vld [vmem:[#allocation2 + $0x70] sm:$0xff]
      %v1727 = vld [vmem:[#allocation2 + $0x78] sm:$0xff]
      %v1728 = vld [vmem:[#allocation2 + $0x80] sm:$0xff]
      %v1729 = vld [vmem:[#allocation2 + $0x88] sm:$0xff]
      %v1730 = vld [vmem:[#allocation2 + $0x90] sm:$0xff]
      %v1731 = vld [vmem:[#allocation2 + $0x98] sm:$0xff]
      %v1732 = vld [vmem:[#allocation2 + $0xa0] sm:$0xff]
      %v1733 = vld [vmem:[#allocation2 + $0xa8] sm:$0xff]
      %v1734 = vld [vmem:[#allocation2 + $0xb0] sm:$0xff]
      %v1735 = vld [vmem:[#allocation2 + $0xb8] sm:$0xff]
      %v1736 = vld [vmem:[#allocation2 + $0xc0] sm:$0xff]
      %v1737 = vld [vmem:[#allocation2 + $0xc8] sm:$0xff]
      %v1738 = vld [vmem:[#allocation2 + $0xd0] sm:$0xff]
      %v1739 = vld [vmem:[#allocation2 + $0xd8] sm:$0xff]
      %v1740 = vld [vmem:[#allocation2 + $0xe0] sm:$0xff]
      %v1741 = vld [vmem:[#allocation2 + $0xe8] sm:$0xff]
      %v1742 = vld [vmem:[#allocation2 + $0xf0] sm:$0xff]
      %v1743 = vld [vmem:[#allocation2 + $0xf8] sm:$0xff]
      %v1744 = vld [vmem:[#allocation2 + $0x100] sm:$0xff]
      %v1745 = vld [vmem:[#allocation2 + $0x108] sm:$0xff]
      %v1746 = vld [vmem:[#allocation2 + $0x110] sm:$0xff]
      %v1747 = vld [vmem:[#allocation2 + $0x118] sm:$0xff]
      %v1748 = vld [vmem:[#allocation2 + $0x120] sm:$0xff]
      %v1749 = vld [vmem:[#allocation2 + $0x128] sm:$0xff]
      %v1750 = vld [vmem:[#allocation2 + $0x130] sm:$0xff]
      %v1751 = vld [vmem:[#allocation2 + $0x138] sm:$0xff]
      %v1752 = vld [vmem:[#allocation2 + $0x140] sm:$0xff]
      %v1753 = vld [vmem:[#allocation2 + $0x148] sm:$0xff]
      %v1754 = vld [vmem:[#allocation2 + $0x150] sm:$0xff]
      %v1755 = vld [vmem:[#allocation2 + $0x158] sm:$0xff]
      %v1756 = vld [vmem:[#allocation2 + $0x160] sm:$0xff]
      %v1757 = vld [vmem:[#allocation2 + $0x168] sm:$0xff]
      %v1758 = vld [vmem:[#allocation2 + $0x170] sm:$0xff]
      %v1759 = vld [vmem:[#allocation2 + $0x178] sm:$0xff]
      %v1760 = vld [vmem:[#allocation2 + $0x180] sm:$0xff]
      %v1761 = vld [vmem:[#allocation2 + $0x188] sm:$0xff]
      %v1762 = vld [vmem:[#allocation2 + $0x190] sm:$0xff]
      %v1763 = vld [vmem:[#allocation2 + $0x198] sm:$0xff]
      %v1764 = vld [vmem:[#allocation2 + $0x1a0] sm:$0xff]
      %v1765 = vld [vmem:[#allocation2 + $0x1a8] sm:$0xff]
      %v1766 = vld [vmem:[#allocation2 + $0x1b0] sm:$0xff]
      %v1767 = vld [vmem:[#allocation2 + $0x1b8] sm:$0xff]
      %v1768 = vld [vmem:[#allocation2 + $0x1c0] sm:$0xff]
      %v1769 = vld [vmem:[#allocation2 + $0x1c8] sm:$0xff]
      %v1770 = vld [vmem:[#allocation2 + $0x1d0] sm:$0xff]
      %v1771 = vld [vmem:[#allocation2 + $0x1d8] sm:$0xff]
      %v1772 = vld [vmem:[#allocation2 + $0x1e0] sm:$0xff]
      %v1773 = vld [vmem:[#allocation2 + $0x1e8] sm:$0xff]
      %v1774 = vld [vmem:[#allocation2 + $0x1f0] sm:$0xff]
      %v1775 = vld [vmem:[#allocation2 + $0x1f8] sm:$0xff]
      %v1776 = vld [vmem:[#allocation2 + $0x200] sm:$0xff]
      %v1777 = vld [vmem:[#allocation2 + $0x208] sm:$0xff]
      %v1778 = vld [vmem:[#allocation2 + $0x210] sm:$0xff]
      %v1779 = vld [vmem:[#allocation2 + $0x218] sm:$0xff]
      %v1780 = vld [vmem:[#allocation2 + $0x220] sm:$0xff]
      %v1781 = vld [vmem:[#allocation2 + $0x228] sm:$0xff]
      %v1782 = vld [vmem:[#allocation2 + $0x230] sm:$0xff]
      %v1783 = vld [vmem:[#allocation2 + $0x238] sm:$0xff]
      %v1784 = vld [vmem:[#allocation2 + $0x240] sm:$0xff]
      %v1785 = vld [vmem:[#allocation2 + $0x248] sm:$0xff]
      %v1786 = vld [vmem:[#allocation2 + $0x250] sm:$0xff]
      %v1787 = vld [vmem:[#allocation2 + $0x258] sm:$0xff]
      %v1788 = vld [vmem:[#allocation2 + $0x260] sm:$0xff]
      %v1789 = vld [vmem:[#allocation2 + $0x268] sm:$0xff]
      %v1790 = vld [vmem:[#allocation2 + $0x270] sm:$0xff]
      %v1791 = vld [vmem:[#allocation2 + $0x278] sm:$0xff]
      %v1792 = vld [vmem:[#allocation2 + $0x280] sm:$0xff]
      %v1793 = vld [vmem:[#allocation2 + $0x288] sm:$0xff]
      %v1794 = vld [vmem:[#allocation2 + $0x290] sm:$0xff]
      %v1795 = vld [vmem:[#allocation2 + $0x298] sm:$0xff]
      %v1796 = vld [vmem:[#allocation2 + $0x2a0] sm:$0xff]
      %v1797 = vld [vmem:[#allocation2 + $0x2a8] sm:$0xff]
      %v1798 = vld [vmem:[#allocation2 + $0x2b0] sm:$0xff]
      %v1799 = vld [vmem:[#allocation2 + $0x2b8] sm:$0xff]
      %v1800 = vld [vmem:[#allocation2 + $0x2c0] sm:$0xff]
      %v1801 = vld [vmem:[#allocation2 + $0x2c8] sm:$0xff]
      %v1802 = vld [vmem:[#allocation2 + $0x2d0] sm:$0xff]
      %v1803 = vld [vmem:[#allocation2 + $0x2d8] sm:$0xff]
      %v1804 = vld [vmem:[#allocation2 + $0x2e0] sm:$0xff]
      %v1805 = vld [vmem:[#allocation2 + $0x2e8] sm:$0xff]
      %v1806 = vld [vmem:[#allocation2 + $0x2f0] sm:$0xff]
      %v1807 = vld [vmem:[#allocation2 + $0x2f8] sm:$0xff]
      %v1808 = vld [vmem:[#allocation2 + $0x300] sm:$0xff]
      %v1809 = vld [vmem:[#allocation2 + $0x308] sm:$0xff]
      %v1810 = vld [vmem:[#allocation2 + $0x310] sm:$0xff]
      %v1811 = vld [vmem:[#allocation2 + $0x318] sm:$0xff]
      %v1812 = vld [vmem:[#allocation2 + $0x320] sm:$0xff]
      %v1813 = vld [vmem:[#allocation2 + $0x328] sm:$0xff]
      %v1814 = vld [vmem:[#allocation2 + $0x330] sm:$0xff]
      %v1815 = vld [vmem:[#allocation2 + $0x338] sm:$0xff]
      %v1816 = vld [vmem:[#allocation2 + $0x340] sm:$0xff]
      %v1817 = vld [vmem:[#allocation2 + $0x348] sm:$0xff]
      %v1818 = vld [vmem:[#allocation2 + $0x350] sm:$0xff]
      %v1819 = vld [vmem:[#allocation2 + $0x358] sm:$0xff]
      %v1820 = vld [vmem:[#allocation2 + $0x360] sm:$0xff]
      %v1821 = vld [vmem:[#allocation2 + $0x368] sm:$0xff]
      %v1822 = vld [vmem:[#allocation2 + $0x370] sm:$0xff]
      %v1823 = vld [vmem:[#allocation2 + $0x378] sm:$0xff]
      %v1824 = vld [vmem:[#allocation2 + $0x380] sm:$0xff]
      %v1825 = vld [vmem:[#allocation2 + $0x388] sm:$0xff]
      %v1826 = vld [vmem:[#allocation2 + $0x390] sm:$0xff]
      %v1827 = vld [vmem:[#allocation2 + $0x398] sm:$0xff]
      %v1828 = vld [vmem:[#allocation2 + $0x3a0] sm:$0xff]
      %v1829 = vld [vmem:[#allocation2 + $0x3a8] sm:$0xff]
      %v1830 = vld [vmem:[#allocation2 + $0x3b0] sm:$0xff]
      %v1831 = vld [vmem:[#allocation2 + $0x3b8] sm:$0xff]
      %v1832 = vld [vmem:[#allocation2 + $0x3c0] sm:$0xff]
      %v1833 = vld [vmem:[#allocation2 + $0x3c8] sm:$0xff]
      %v1834 = vld [vmem:[#allocation2 + $0x3d0] sm:$0xff]
      %v1835 = vld [vmem:[#allocation2 + $0x3d8] sm:$0xff]
      %v1836 = vld [vmem:[#allocation2 + $0x3e0] sm:$0xff]
      %v1837 = vld [vmem:[#allocation2 + $0x3e8] sm:$0xff]
      %v1838 = vld [vmem:[#allocation2 + $0x3f0] sm:$0xff]
      %v1839 = vld [vmem:[#allocation2 + $0x3f8] sm:$0xff]
      %v1840 = vld [vmem:[#allocation2 + $0x400] sm:$0xff]
      %v1841 = vld [vmem:[#allocation2 + $0x408] sm:$0xff]
      %v1842 = vld [vmem:[#allocation2 + $0x410] sm:$0xff]
      %v1843 = vld [vmem:[#allocation2 + $0x418] sm:$0xff]
      %v1844 = vld [vmem:[#allocation2 + $0x420] sm:$0xff]
      %v1845 = vld [vmem:[#allocation2 + $0x428] sm:$0xff]
      %v1846 = vld [vmem:[#allocation2 + $0x430] sm:$0xff]
      %v1847 = vld [vmem:[#allocation2 + $0x438] sm:$0xff]
      %v1848 = vld [vmem:[#allocation2 + $0x440] sm:$0xff]
      %v1849 = vld [vmem:[#allocation2 + $0x448] sm:$0xff]
      %v1850 = vld [vmem:[#allocation2 + $0x450] sm:$0xff]
      %v1851 = vld [vmem:[#allocation2 + $0x458] sm:$0xff]
      %v1852 = vld [vmem:[#allocation2 + $0x460] sm:$0xff]
      %v1853 = vld [vmem:[#allocation2 + $0x468] sm:$0xff]
      %v1854 = vld [vmem:[#allocation2 + $0x470] sm:$0xff]
      %v1855 = vld [vmem:[#allocation2 + $0x478] sm:$0xff]
      %v1856 = vld [vmem:[#allocation2 + $0x480] sm:$0xff]
      %v1857 = vld [vmem:[#allocation2 + $0x488] sm:$0xff]
      %v1858 = vld [vmem:[#allocation2 + $0x490] sm:$0xff]
      %v1859 = vld [vmem:[#allocation2 + $0x498] sm:$0xff]
      %v1860 = vld [vmem:[#allocation2 + $0x4a0] sm:$0xff]
      %v1861 = vld [vmem:[#allocation2 + $0x4a8] sm:$0xff]
      %v1862 = vld [vmem:[#allocation2 + $0x4b0] sm:$0xff]
      %v1863 = vld [vmem:[#allocation2 + $0x4b8] sm:$0xff]
      %v1864 = vld [vmem:[#allocation2 + $0x4c0] sm:$0xff]
      %v1865 = vld [vmem:[#allocation2 + $0x4c8] sm:$0xff]
      %v1866 = vld [vmem:[#allocation2 + $0x4d0] sm:$0xff]
      %v1867 = vld [vmem:[#allocation2 + $0x4d8] sm:$0xff]
      %v1868 = vld [vmem:[#allocation2 + $0x4e0] sm:$0xff]
      %v1869 = vld [vmem:[#allocation2 + $0x4e8] sm:$0xff]
      %v1870 = vld [vmem:[#allocation2 + $0x4f0] sm:$0xff]
      %v1871 = vld [vmem:[#allocation2 + $0x4f8] sm:$0xff]
      %v1872 = vld [vmem:[#allocation2 + $0x500] sm:$0xff]
      %v1873 = vld [vmem:[#allocation2 + $0x508] sm:$0xff]
      %v1874 = vld [vmem:[#allocation2 + $0x510] sm:$0xff]
      %v1875 = vld [vmem:[#allocation2 + $0x518] sm:$0xff]
      %v1876 = vld [vmem:[#allocation2 + $0x520] sm:$0xff]
      %v1877 = vld [vmem:[#allocation2 + $0x528] sm:$0xff]
      %v1878 = vld [vmem:[#allocation2 + $0x530] sm:$0xff]
      %v1879 = vld [vmem:[#allocation2 + $0x538] sm:$0xff]
      %v1880 = vld [vmem:[#allocation2 + $0x540] sm:$0xff]
      %v1881 = vld [vmem:[#allocation2 + $0x548] sm:$0xff]
      %v1882 = vld [vmem:[#allocation2 + $0x550] sm:$0xff]
      %v1883 = vld [vmem:[#allocation2 + $0x558] sm:$0xff]
      %v1884 = vld [vmem:[#allocation2 + $0x560] sm:$0xff]
      %v1885 = vld [vmem:[#allocation2 + $0x568] sm:$0xff]
      %v1886 = vld [vmem:[#allocation2 + $0x570] sm:$0xff]
      %v1887 = vld [vmem:[#allocation2 + $0x578] sm:$0xff]
      %v1888 = vld [vmem:[#allocation2 + $0x580] sm:$0xff]
      %v1889 = vld [vmem:[#allocation2 + $0x588] sm:$0xff]
      %v1890 = vld [vmem:[#allocation2 + $0x590] sm:$0xff]
      %v1891 = vld [vmem:[#allocation2 + $0x598] sm:$0xff]
      %v1892 = vld [vmem:[#allocation2 + $0x5a0] sm:$0xff]
      %v1893 = vld [vmem:[#allocation2 + $0x5a8] sm:$0xff]
      %v1894 = vld [vmem:[#allocation2 + $0x5b0] sm:$0xff]
      %v1895 = vld [vmem:[#allocation2 + $0x5b8] sm:$0xff]
      %v1896 = vld [vmem:[#allocation2 + $0x5c0] sm:$0xff]
      %v1897 = vld [vmem:[#allocation2 + $0x5c8] sm:$0xff]
      %v1898 = vld [vmem:[#allocation2 + $0x5d0] sm:$0xff]
      %v1899 = vld [vmem:[#allocation2 + $0x5d8] sm:$0xff]
      %v1900 = vld [vmem:[#allocation2 + $0x5e0] sm:$0xff]
      %v1901 = vld [vmem:[#allocation2 + $0x5e8] sm:$0xff]
      %v1902 = vld [vmem:[#allocation2 + $0x5f0] sm:$0xff]
      %v1903 = vld [vmem:[#allocation2 + $0x5f8] sm:$0xff]
      %v1904 = vld [vmem:[#allocation2 + $0x600] sm:$0xff]
      %v1905 = vld [vmem:[#allocation2 + $0x608] sm:$0xff]
      %v1906 = vld [vmem:[#allocation2 + $0x610] sm:$0xff]
      %v1907 = vld [vmem:[#allocation2 + $0x618] sm:$0xff]
      %v1908 = vld [vmem:[#allocation2 + $0x620] sm:$0xff]
      %v1909 = vld [vmem:[#allocation2 + $0x628] sm:$0xff]
      %v1910 = vld [vmem:[#allocation2 + $0x630] sm:$0xff]
      %v1911 = vld [vmem:[#allocation2 + $0x638] sm:$0xff]
      %v1912 = vld [vmem:[#allocation2 + $0x640] sm:$0xff]
      %v1913 = vld [vmem:[#allocation2 + $0x648] sm:$0xff]
      %v1914 = vld [vmem:[#allocation2 + $0x650] sm:$0xff]
      %v1915 = vld [vmem:[#allocation2 + $0x658] sm:$0xff]
      %v1916 = vld [vmem:[#allocation2 + $0x660] sm:$0xff]
      %v1917 = vld [vmem:[#allocation2 + $0x668] sm:$0xff]
      %v1918 = vld [vmem:[#allocation2 + $0x670] sm:$0xff]
      %v1919 = vld [vmem:[#allocation2 + $0x678] sm:$0xff]
      %v1920 = vld [vmem:[#allocation2 + $0x680] sm:$0xff]
      %v1921 = vld [vmem:[#allocation2 + $0x688] sm:$0xff]
      %v1922 = vld [vmem:[#allocation2 + $0x690] sm:$0xff]
      %v1923 = vld [vmem:[#allocation2 + $0x698] sm:$0xff]
      %v1924 = vld [vmem:[#allocation2 + $0x6a0] sm:$0xff]
      %v1925 = vld [vmem:[#allocation2 + $0x6a8] sm:$0xff]
      %v1926 = vld [vmem:[#allocation2 + $0x6b0] sm:$0xff]
      %v1927 = vld [vmem:[#allocation2 + $0x6b8] sm:$0xff]
      %v1928 = vld [vmem:[#allocation2 + $0x6c0] sm:$0xff]
      %v1929 = vld [vmem:[#allocation2 + $0x6c8] sm:$0xff]
      %v1930 = vld [vmem:[#allocation2 + $0x6d0] sm:$0xff]
      %v1931 = vld [vmem:[#allocation2 + $0x6d8] sm:$0xff]
      %v1932 = vld [vmem:[#allocation2 + $0x6e0] sm:$0xff]
      %v1933 = vld [vmem:[#allocation2 + $0x6e8] sm:$0xff]
      %v1934 = vld [vmem:[#allocation2 + $0x6f0] sm:$0xff]
      %v1935 = vld [vmem:[#allocation2 + $0x6f8] sm:$0xff]
      %v1936 = vld [vmem:[#allocation2 + $0x700] sm:$0xff]
      %v1937 = vld [vmem:[#allocation2 + $0x708] sm:$0xff]
      %v1938 = vld [vmem:[#allocation2 + $0x710] sm:$0xff]
      %v1939 = vld [vmem:[#allocation2 + $0x718] sm:$0xff]
      %v1940 = vld [vmem:[#allocation2 + $0x720] sm:$0xff]
      %v1941 = vld [vmem:[#allocation2 + $0x728] sm:$0xff]
      %v1942 = vld [vmem:[#allocation2 + $0x730] sm:$0xff]
      %v1943 = vld [vmem:[#allocation2 + $0x738] sm:$0xff]
      %v1944 = vld [vmem:[#allocation2 + $0x740] sm:$0xff]
      %v1945 = vld [vmem:[#allocation2 + $0x748] sm:$0xff]
      %v1946 = vld [vmem:[#allocation2 + $0x750] sm:$0xff]
      %v1947 = vld [vmem:[#allocation2 + $0x758] sm:$0xff]
      %v1948 = vld [vmem:[#allocation2 + $0x760] sm:$0xff]
      %v1949 = vld [vmem:[#allocation2 + $0x768] sm:$0xff]
      %v1950 = vld [vmem:[#allocation2 + $0x770] sm:$0xff]
      %v1951 = vld [vmem:[#allocation2 + $0x778] sm:$0xff]
      %v1952 = vld [vmem:[#allocation2 + $0x780] sm:$0xff]
      %v1953 = vld [vmem:[#allocation2 + $0x788] sm:$0xff]
      %v1954 = vld [vmem:[#allocation2 + $0x790] sm:$0xff]
      %v1955 = vld [vmem:[#allocation2 + $0x798] sm:$0xff]
      %v1956 = vld [vmem:[#allocation2 + $0x7a0] sm:$0xff]
      %v1957 = vld [vmem:[#allocation2 + $0x7a8] sm:$0xff]
      %v1958 = vld [vmem:[#allocation2 + $0x7b0] sm:$0xff]
      %v1959 = vld [vmem:[#allocation2 + $0x7b8] sm:$0xff]
      %v1960 = vld [vmem:[#allocation2 + $0x7c0] sm:$0xff]
      %v1961 = vld [vmem:[#allocation2 + $0x7c8] sm:$0xff]
      %v1962 = vld [vmem:[#allocation2 + $0x7d0] sm:$0xff]
      %v1963 = vld [vmem:[#allocation2 + $0x7d8] sm:$0xff]
      %v1964 = vld [vmem:[#allocation2 + $0x7e0] sm:$0xff]
      %v1965 = vld [vmem:[#allocation2 + $0x7e8] sm:$0xff]
      %v1966 = vld [vmem:[#allocation2 + $0x7f0] sm:$0xff]
      %v1967 = vld [vmem:[#allocation2 + $0x7f8] sm:$0xff]
      %v1968 = vld [vmem:[#allocation2 + $0x800] sm:$0xff]
      %v1969 = vld [vmem:[#allocation2 + $0x808] sm:$0xff]
      %v1970 = vld [vmem:[#allocation2 + $0x810] sm:$0xff]
      %v1971 = vld [vmem:[#allocation2 + $0x818] sm:$0xff]
      %v1972 = vld [vmem:[#allocation2 + $0x820] sm:$0xff]
      %v1973 = vld [vmem:[#allocation2 + $0x828] sm:$0xff]
      %v1974 = vld [vmem:[#allocation2 + $0x830] sm:$0xff]
      %v1975 = vld [vmem:[#allocation2 + $0x838] sm:$0xff]
      %v1976 = vld [vmem:[#allocation2 + $0x840] sm:$0xff]
      %v1977 = vld [vmem:[#allocation2 + $0x848] sm:$0xff]
      %v1978 = vld [vmem:[#allocation2 + $0x850] sm:$0xff]
      %v1979 = vld [vmem:[#allocation2 + $0x858] sm:$0xff]
      %v1980 = vld [vmem:[#allocation2 + $0x860] sm:$0xff]
      %v1981 = vld [vmem:[#allocation2 + $0x868] sm:$0xff]
      %v1982 = vld [vmem:[#allocation2 + $0x870] sm:$0xff]
      %v1983 = vld [vmem:[#allocation2 + $0x878] sm:$0xff]
      %v1984 = vld [vmem:[#allocation2 + $0x880] sm:$0xff]
      %v1985 = vld [vmem:[#allocation2 + $0x888] sm:$0xff]
      %v1986 = vld [vmem:[#allocation2 + $0x890] sm:$0xff]
      %v1987 = vld [vmem:[#allocation2 + $0x898] sm:$0xff]
      %v1988 = vld [vmem:[#allocation2 + $0x8a0] sm:$0xff]
      %v1989 = vld [vmem:[#allocation2 + $0x8a8] sm:$0xff]
      %v1990 = vld [vmem:[#allocation2 + $0x8b0] sm:$0xff]
      %v1991 = vld [vmem:[#allocation2 + $0x8b8] sm:$0xff]
      %v1992 = vld [vmem:[#allocation2 + $0x8c0] sm:$0xff]
      %v1993 = vld [vmem:[#allocation2 + $0x8c8] sm:$0xff]
      %v1994 = vld [vmem:[#allocation2 + $0x8d0] sm:$0xff]
      %v1995 = vld [vmem:[#allocation2 + $0x8d8] sm:$0xff]
      %v1996 = vld [vmem:[#allocation2 + $0x8e0] sm:$0xff]
      %v1997 = vld [vmem:[#allocation2 + $0x8e8] sm:$0xff]
      %v1998 = vld [vmem:[#allocation2 + $0x8f0] sm:$0xff]
      %v1999 = vld [vmem:[#allocation2 + $0x8f8] sm:$0xff]
      %v2000 = vld [vmem:[#allocation2 + $0x900] sm:$0xff]
      %v2001 = vld [vmem:[#allocation2 + $0x908] sm:$0xff]
      %v2002 = vld [vmem:[#allocation2 + $0x910] sm:$0xff]
      %v2003 = vld [vmem:[#allocation2 + $0x918] sm:$0xff]
      %v2004 = vld [vmem:[#allocation2 + $0x920] sm:$0xff]
      %v2005 = vld [vmem:[#allocation2 + $0x928] sm:$0xff]
      %v2006 = vld [vmem:[#allocation2 + $0x930] sm:$0xff]
      %v2007 = vld [vmem:[#allocation2 + $0x938] sm:$0xff]
      %v2008 = vld [vmem:[#allocation2 + $0x940] sm:$0xff]
      %v2009 = vld [vmem:[#allocation2 + $0x948] sm:$0xff]
      %v2010 = vld [vmem:[#allocation2 + $0x950] sm:$0xff]
      %v2011 = vld [vmem:[#allocation2 + $0x958] sm:$0xff]
      %v2012 = vld [vmem:[#allocation2 + $0x960] sm:$0xff]
      %v2013 = vld [vmem:[#allocation2 + $0x968] sm:$0xff]
      %v2014 = vld [vmem:[#allocation2 + $0x970] sm:$0xff]
      %v2015 = vld [vmem:[#allocation2 + $0x978] sm:$0xff]
      %v2016 = vld [vmem:[#allocation2 + $0x980] sm:$0xff]
      %v2017 = vld [vmem:[#allocation2 + $0x988] sm:$0xff]
      %v2018 = vld [vmem:[#allocation2 + $0x990] sm:$0xff]
      %v2019 = vld [vmem:[#allocation2 + $0x998] sm:$0xff]
      %v2020 = vld [vmem:[#allocation2 + $0x9a0] sm:$0xff]
      %v2021 = vld [vmem:[#allocation2 + $0x9a8] sm:$0xff]
      %v2022 = vld [vmem:[#allocation2 + $0x9b0] sm:$0xff]
      %v2023 = vld [vmem:[#allocation2 + $0x9b8] sm:$0xff]
      %v2024 = vld [vmem:[#allocation2 + $0x9c0] sm:$0xff]
      %v2025 = vld [vmem:[#allocation2 + $0x9c8] sm:$0xff]
      %v2026 = vld [vmem:[#allocation2 + $0x9d0] sm:$0xff]
      %v2027 = vld [vmem:[#allocation2 + $0x9d8] sm:$0xff]
      %v2028 = vld [vmem:[#allocation2 + $0x9e0] sm:$0xff]
      %v2029 = vld [vmem:[#allocation2 + $0x9e8] sm:$0xff]
      %v2030 = vld [vmem:[#allocation2 + $0x9f0] sm:$0xff]
      %v2031 = vld [vmem:[#allocation2 + $0x9f8] sm:$0xff]
      %v2032 = vld [vmem:[#allocation2 + $0xa00] sm:$0xff]
      %v2033 = vld [vmem:[#allocation2 + $0xa08] sm:$0xff]
      %v2034 = vld [vmem:[#allocation2 + $0xa10] sm:$0xff]
      %v2035 = vld [vmem:[#allocation2 + $0xa18] sm:$0xff]
      %v2036 = vld [vmem:[#allocation2 + $0xa20] sm:$0xff]
      %v2037 = vld [vmem:[#allocation2 + $0xa28] sm:$0xff]
      %v2038 = vld [vmem:[#allocation2 + $0xa30] sm:$0xff]
      %v2039 = vld [vmem:[#allocation2 + $0xa38] sm:$0xff]
      %v2040 = vld [vmem:[#allocation2 + $0xa40] sm:$0xff]
      %v2041 = vld [vmem:[#allocation2 + $0xa48] sm:$0xff]
      %v2042 = vld [vmem:[#allocation2 + $0xa50] sm:$0xff]
      %v2043 = vld [vmem:[#allocation2 + $0xa58] sm:$0xff]
      %v2044 = vld [vmem:[#allocation2 + $0xa60] sm:$0xff]
      %v2045 = vld [vmem:[#allocation2 + $0xa68] sm:$0xff]
      %v2046 = vld [vmem:[#allocation2 + $0xa70] sm:$0xff]
      %v2047 = vld [vmem:[#allocation2 + $0xa78] sm:$0xff]
      %v2048 = vld [vmem:[#allocation2 + $0xa80] sm:$0xff]
      %v2049 = vld [vmem:[#allocation2 + $0xa88] sm:$0xff]
      %v2050 = vld [vmem:[#allocation2 + $0xa90] sm:$0xff]
      %v2051 = vld [vmem:[#allocation2 + $0xa98] sm:$0xff]
      %v2052 = vld [vmem:[#allocation2 + $0xaa0] sm:$0xff]
      %v2053 = vld [vmem:[#allocation2 + $0xaa8] sm:$0xff]
      %v2054 = vld [vmem:[#allocation2 + $0xab0] sm:$0xff]
      %v2055 = vld [vmem:[#allocation2 + $0xab8] sm:$0xff]
      %v2056 = vld [vmem:[#allocation2 + $0xac0] sm:$0xff]
      %v2057 = vld [vmem:[#allocation2 + $0xac8] sm:$0xff]
      %v2058 = vld [vmem:[#allocation2 + $0xad0] sm:$0xff]
      %v2059 = vld [vmem:[#allocation2 + $0xad8] sm:$0xff]
      %v2060 = vld [vmem:[#allocation2 + $0xae0] sm:$0xff]
      %v2061 = vld [vmem:[#allocation2 + $0xae8] sm:$0xff]
      %v2062 = vld [vmem:[#allocation2 + $0xaf0] sm:$0xff]
      %v2063 = vld [vmem:[#allocation2 + $0xaf8] sm:$0xff]
      %v2064 = vld [vmem:[#allocation2 + $0xb00] sm:$0xff]
      %v2065 = vld [vmem:[#allocation2 + $0xb08] sm:$0xff]
      %v2066 = vld [vmem:[#allocation2 + $0xb10] sm:$0xff]
      %v2067 = vld [vmem:[#allocation2 + $0xb18] sm:$0xff]
      %v2068 = vld [vmem:[#allocation2 + $0xb20] sm:$0xff]
      %v2069 = vld [vmem:[#allocation2 + $0xb28] sm:$0xff]
      %v2070 = vld [vmem:[#allocation2 + $0xb30] sm:$0xff]
      %v2071 = vld [vmem:[#allocation2 + $0xb38] sm:$0xff]
      %v2072 = vld [vmem:[#allocation2 + $0xb40] sm:$0xff]
      %v2073 = vld [vmem:[#allocation2 + $0xb48] sm:$0xff]
      %v2074 = vld [vmem:[#allocation2 + $0xb50] sm:$0xff]
      %v2075 = vld [vmem:[#allocation2 + $0xb58] sm:$0xff]
      %v2076 = vld [vmem:[#allocation2 + $0xb60] sm:$0xff]
      %v2077 = vld [vmem:[#allocation2 + $0xb68] sm:$0xff]
      %v2078 = vld [vmem:[#allocation2 + $0xb70] sm:$0xff]
      %v2079 = vld [vmem:[#allocation2 + $0xb78] sm:$0xff]
      %v2080 = vld [vmem:[#allocation2 + $0xb80] sm:$0xff]
      %v2081 = vld [vmem:[#allocation2 + $0xb88] sm:$0xff]
      %v2082 = vld [vmem:[#allocation2 + $0xb90] sm:$0xff]
      %v2083 = vld [vmem:[#allocation2 + $0xb98] sm:$0xff]
      %v2084 = vld [vmem:[#allocation2 + $0xba0] sm:$0xff]
      %v2085 = vld [vmem:[#allocation2 + $0xba8] sm:$0xff]
      %v2086 = vld [vmem:[#allocation2 + $0xbb0] sm:$0xff]
      %v2087 = vld [vmem:[#allocation2 + $0xbb8] sm:$0xff]
      %v2088 = vld [vmem:[#allocation2 + $0xbc0] sm:$0xff]
      %v2089 = vld [vmem:[#allocation2 + $0xbc8] sm:$0xff]
      %v2090 = vld [vmem:[#allocation2 + $0xbd0] sm:$0xff]
      %v2091 = vld [vmem:[#allocation2 + $0xbd8] sm:$0xff]
      %v2092 = vld [vmem:[#allocation2 + $0xbe0] sm:$0xff]
      %v2093 = vld [vmem:[#allocation2 + $0xbe8] sm:$0xff]
      %v2094 = vld [vmem:[#allocation2 + $0xbf0] sm:$0xff]
      %v2095 = vld [vmem:[#allocation2 + $0xbf8] sm:$0xff]
      %v2096 = vld [vmem:[#allocation2 + $0xc00] sm:$0xff]
      %v2097 = vld [vmem:[#allocation2 + $0xc08] sm:$0xff]
      %v2098 = vld [vmem:[#allocation2 + $0xc10] sm:$0xff]
      %v2099 = vld [vmem:[#allocation2 + $0xc18] sm:$0xff]
      %v2100 = vld [vmem:[#allocation2 + $0xc20] sm:$0xff]
      %v2101 = vld [vmem:[#allocation2 + $0xc28] sm:$0xff]
      %v2102 = vld [vmem:[#allocation2 + $0xc30] sm:$0xff]
      %v2103 = vld [vmem:[#allocation2 + $0xc38] sm:$0xff]
      %v2104 = vld [vmem:[%s2] sm:$0xff]
      %v2105 = vld [vmem:[%s2 + $0x8] sm:$0xff]
      %2107 = vset.pattern.permute.xlu0 0
      %2108 = vperm.xlu0 %2107, %v2104
      %v2109 = vpop.permute.xlu0 %2108
      %2112 = vset.pattern.permute.xlu0 0
      %2113 = vperm.xlu0 %2112, %v2105
      %v2114 = vpop.permute.xlu0 %2113
      %vm2116 = vcmask 130048
      %v2118 = vsel %vm2116, %v1704, 0
      %v2121 = vsel %vm2116, %v1711, 0
      %2123 = vmatprep.subr.mxu0 %v1773
      %2124 = vmatpush1.msra.mxu0 %v1772
      %2125 = vmatprep.subr.mxu0 %v1769
      %2126 = vmatpush1.msra.mxu0 %v1768
      %2127 = vmatprep.subr.mxu0 %v1765
      %2128 = vmatpush1.msra.mxu0 %v1764
      %2129 = vmatprep.subr.mxu0 %v1761
      %2130 = vmatpush1.msra.mxu0 %v1760
      %2131 = vmatprep.subr.mxu0 %v1757
      %2132 = vmatpush1.msra.mxu0 %v1756
      %2133 = vmatprep.subr.mxu0 %v1753
      %2134 = vmatpush1.msra.mxu0 %v1752
      %2135 = vmatprep.subr.mxu0 %v1749
      %2136 = vmatpush1.msra.mxu0 %v1748
      %2137 = vmatprep.subr.mxu0 %v1745
      %2138 = vmatpush1.msra.mxu0 %v1744
      %2139 = vmatprep.subr.mxu0 %v1741
      %2140 = vmatpush1.msra.mxu0 %v1740
      %2141 = vmatprep.subr.mxu0 %v1737
      %2142 = vmatpush1.msra.mxu0 %v1736
      %2143 = vmatprep.subr.mxu0 %v1733
      %2144 = vmatpush1.msra.mxu0 %v1732
      %2145 = vmatprep.subr.mxu0 %v1729
      %2146 = vmatpush1.msra.mxu0 %v1728
      %2147 = vmatprep.subr.mxu0 %v1725
      %2148 = vmatpush1.msra.mxu0 %v1724
      %2149 = vmatprep.subr.mxu0 %v1721
      %2150 = vmatpush1.msra.mxu0 %v1720
      %2151 = vmatprep.subr.mxu0 %v1717
      %2152 = vmatpush1.msra.mxu0 %v1716
      %2153 = vmatprep.subr.mxu0 %v1713
      %2154 = vmatpush1.msra.mxu0 %v1712
      %2155 = vmatprep.subr.mxu0 %v1837
      %2156 = vmatpush2.msra.mxu0 %v1836
      %2157 = vmatprep.subr.mxu0 %v1833
      %2158 = vmatpush2.msra.mxu0 %v1832
      %2159 = vmatprep.subr.mxu0 %v1829
      %2160 = vmatpush2.msra.mxu0 %v1828
      %2161 = vmatprep.subr.mxu0 %v1825
      %2162 = vmatpush2.msra.mxu0 %v1824
      %2163 = vmatprep.subr.mxu0 %v1821
      %2164 = vmatpush2.msra.mxu0 %v1820
      %2165 = vmatprep.subr.mxu0 %v1817
      %2166 = vmatpush2.msra.mxu0 %v1816
      %2167 = vmatprep.subr.mxu0 %v1813
      %2168 = vmatpush2.msra.mxu0 %v1812
      %2169 = vmatprep.subr.mxu0 %v1809
      %2170 = vmatpush2.msra.mxu0 %v1808
      %2171 = vmatprep.subr.mxu0 %v1805
      %2172 = vmatpush2.msra.mxu0 %v1804
      %2173 = vmatprep.subr.mxu0 %v1801
      %2174 = vmatpush2.msra.mxu0 %v1800
      %2175 = vmatprep.subr.mxu0 %v1797
      %2176 = vmatpush2.msra.mxu0 %v1796
      %2177 = vmatprep.subr.mxu0 %v1793
      %2178 = vmatpush2.msra.mxu0 %v1792
      %2179 = vmatprep.subr.mxu0 %v1789
      %2180 = vmatpush2.msra.mxu0 %v1788
      %2181 = vmatprep.subr.mxu0 %v1785
      %2182 = vmatpush2.msra.mxu0 %v1784
      %2183 = vmatprep.subr.mxu0 %v1781
      %2184 = vmatpush2.msra.mxu0 %v1780
      %2185 = vmatprep.subr.mxu0 %v1777
      %2186 = vmatpush2.msra.mxu0 %v1776
      %2187 = vmatprep.mubr.f32.mxu0 %v1699
      %2188 = vmatmul.mubr.f32.gmra.mxu0 %v1698
      %v2189 = vpop.f32.mrf.mxu0
      %v2190 = vadd.f32 %v2109, %v2189
      %v2191 = vpop.f32.mrf.mxu0
      %v2192 = vadd.f32 %v2109, %v2191
      %2193 = vmatprep.mubr.f32.mxu0 %v1706
      %2194 = vmatmul.mubr.f32.gmra.mxu0 %v1705
      %v2195 = vpop.f32.mrf.mxu0
      %v2196 = vadd.f32 %v2114, %v2195
      %v2197 = vpop.f32.mrf.mxu0
      %v2198 = vadd.f32 %v2114, %v2197
      %2199 = vdwg.mxu0
      %2200 = vmatprep.subr.mxu0 %v1901
      %2201 = vmatpush1.msra.mxu0 %v1900
      %2202 = vmatprep.subr.mxu0 %v1897
      %2203 = vmatpush1.msra.mxu0 %v1896
      %2204 = vmatprep.subr.mxu0 %v1893
      %2205 = vmatpush1.msra.mxu0 %v1892
      %2206 = vmatprep.subr.mxu0 %v1889
      %2207 = vmatpush1.msra.mxu0 %v1888
      %2208 = vmatprep.subr.mxu0 %v1885
      %2209 = vmatpush1.msra.mxu0 %v1884
      %2210 = vmatprep.subr.mxu0 %v1881
      %2211 = vmatpush1.msra.mxu0 %v1880
      %2212 = vmatprep.subr.mxu0 %v1877
      %2213 = vmatpush1.msra.mxu0 %v1876
      %2214 = vmatprep.subr.mxu0 %v1873
      %2215 = vmatpush1.msra.mxu0 %v1872
      %2216 = vmatprep.subr.mxu0 %v1869
      %2217 = vmatpush1.msra.mxu0 %v1868
      %2218 = vmatprep.subr.mxu0 %v1865
      %2219 = vmatpush1.msra.mxu0 %v1864
      %2220 = vmatprep.subr.mxu0 %v1861
      %2221 = vmatpush1.msra.mxu0 %v1860
      %2222 = vmatprep.subr.mxu0 %v1857
      %2223 = vmatpush1.msra.mxu0 %v1856
      %2224 = vmatprep.subr.mxu0 %v1853
      %2225 = vmatpush1.msra.mxu0 %v1852
      %2226 = vmatprep.subr.mxu0 %v1849
      %2227 = vmatpush1.msra.mxu0 %v1848
      %2228 = vmatprep.subr.mxu0 %v1845
      %2229 = vmatpush1.msra.mxu0 %v1844
      %2230 = vmatprep.subr.mxu0 %v1841
      %2231 = vmatpush1.msra.mxu0 %v1840
      %2232 = vmatprep.subr.mxu0 %v1965
      %2233 = vmatpush2.msra.mxu0 %v1964
      %2234 = vmatprep.subr.mxu0 %v1961
      %2235 = vmatpush2.msra.mxu0 %v1960
      %2236 = vmatprep.subr.mxu0 %v1957
      %2237 = vmatpush2.msra.mxu0 %v1956
      %2238 = vmatprep.subr.mxu0 %v1953
      %2239 = vmatpush2.msra.mxu0 %v1952
      %2240 = vmatprep.subr.mxu0 %v1949
      %2241 = vmatpush2.msra.mxu0 %v1948
      %2242 = vmatprep.subr.mxu0 %v1945
      %2243 = vmatpush2.msra.mxu0 %v1944
      %2244 = vmatprep.subr.mxu0 %v1941
      %2245 = vmatpush2.msra.mxu0 %v1940
      %2246 = vmatprep.subr.mxu0 %v1937
      %2247 = vmatpush2.msra.mxu0 %v1936
      %2248 = vmatprep.subr.mxu0 %v1933
      %2249 = vmatpush2.msra.mxu0 %v1932
      %2250 = vmatprep.subr.mxu0 %v1929
      %2251 = vmatpush2.msra.mxu0 %v1928
      %2252 = vmatprep.subr.mxu0 %v1925
      %2253 = vmatpush2.msra.mxu0 %v1924
      %2254 = vmatprep.subr.mxu0 %v1921
      %2255 = vmatpush2.msra.mxu0 %v1920
      %2256 = vmatprep.subr.mxu0 %v1917
      %2257 = vmatpush2.msra.mxu0 %v1916
      %2258 = vmatprep.subr.mxu0 %v1913
      %2259 = vmatpush2.msra.mxu0 %v1912
      %2260 = vmatprep.subr.mxu0 %v1909
      %2261 = vmatpush2.msra.mxu0 %v1908
      %2262 = vmatprep.subr.mxu0 %v1905
      %2263 = vmatpush2.msra.mxu0 %v1904
      %2264 = vmatprep.mubr.f32.mxu0 %v1701
      %2265 = vmatmul.mubr.f32.gmra.mxu0 %v1700
      %v2266 = vpop.f32.mrf.mxu0
      %v2267 = vadd.f32 %v2190, %v2266
      %v2268 = vpop.f32.mrf.mxu0
      %v2269 = vadd.f32 %v2192, %v2268
      %2270 = vmatprep.mubr.f32.mxu0 %v1708
      %2271 = vmatmul.mubr.f32.gmra.mxu0 %v1707
      %v2272 = vpop.f32.mrf.mxu0
      %v2273 = vadd.f32 %v2196, %v2272
      %v2274 = vpop.f32.mrf.mxu0
      %v2275 = vadd.f32 %v2198, %v2274
      %2276 = vdwg.mxu0
      %2277 = vmatprep.subr.mxu0 %v2029
      %2278 = vmatpush1.msra.mxu0 %v2028
      %2279 = vmatprep.subr.mxu0 %v2025
      %2280 = vmatpush1.msra.mxu0 %v2024
      %2281 = vmatprep.subr.mxu0 %v2021
      %2282 = vmatpush1.msra.mxu0 %v2020
      %2283 = vmatprep.subr.mxu0 %v2017
      %2284 = vmatpush1.msra.mxu0 %v2016
      %2285 = vmatprep.subr.mxu0 %v2013
      %2286 = vmatpush1.msra.mxu0 %v2012
      %2287 = vmatprep.subr.mxu0 %v2009
      %2288 = vmatpush1.msra.mxu0 %v2008
      %2289 = vmatprep.subr.mxu0 %v2005
      %2290 = vmatpush1.msra.mxu0 %v2004
      %2291 = vmatprep.subr.mxu0 %v2001
      %2292 = vmatpush1.msra.mxu0 %v2000
      %2293 = vmatprep.subr.mxu0 %v1997
      %2294 = vmatpush1.msra.mxu0 %v1996
      %2295 = vmatprep.subr.mxu0 %v1993
      %2296 = vmatpush1.msra.mxu0 %v1992
      %2297 = vmatprep.subr.mxu0 %v1989
      %2298 = vmatpush1.msra.mxu0 %v1988
      %2299 = vmatprep.subr.mxu0 %v1985
      %2300 = vmatpush1.msra.mxu0 %v1984
      %2301 = vmatprep.subr.mxu0 %v1981
      %2302 = vmatpush1.msra.mxu0 %v1980
      %2303 = vmatprep.subr.mxu0 %v1977
      %2304 = vmatpush1.msra.mxu0 %v1976
      %2305 = vmatprep.subr.mxu0 %v1973
      %2306 = vmatpush1.msra.mxu0 %v1972
      %2307 = vmatprep.subr.mxu0 %v1969
      %2308 = vmatpush1.msra.mxu0 %v1968
      %2309 = vmatprep.subr.mxu0 %v2093
      %2310 = vmatpush2.msra.mxu0 %v2092
      %2311 = vmatprep.subr.mxu0 %v2089
      %2312 = vmatpush2.msra.mxu0 %v2088
      %2313 = vmatprep.subr.mxu0 %v2085
      %2314 = vmatpush2.msra.mxu0 %v2084
      %2315 = vmatprep.subr.mxu0 %v2081
      %2316 = vmatpush2.msra.mxu0 %v2080
      %2317 = vmatprep.subr.mxu0 %v2077
      %2318 = vmatpush2.msra.mxu0 %v2076
      %2319 = vmatprep.subr.mxu0 %v2073
      %2320 = vmatpush2.msra.mxu0 %v2072
      %2321 = vmatprep.subr.mxu0 %v2069
      %2322 = vmatpush2.msra.mxu0 %v2068
      %2323 = vmatprep.subr.mxu0 %v2065
      %2324 = vmatpush2.msra.mxu0 %v2064
      %2325 = vmatprep.subr.mxu0 %v2061
      %2326 = vmatpush2.msra.mxu0 %v2060
      %2327 = vmatprep.subr.mxu0 %v2057
      %2328 = vmatpush2.msra.mxu0 %v2056
      %2329 = vmatprep.subr.mxu0 %v2053
      %2330 = vmatpush2.msra.mxu0 %v2052
      %2331 = vmatprep.subr.mxu0 %v2049
      %2332 = vmatpush2.msra.mxu0 %v2048
      %2333 = vmatprep.subr.mxu0 %v2045
      %2334 = vmatpush2.msra.mxu0 %v2044
      %2335 = vmatprep.subr.mxu0 %v2041
      %2336 = vmatpush2.msra.mxu0 %v2040
      %2337 = vmatprep.subr.mxu0 %v2037
      %2338 = vmatpush2.msra.mxu0 %v2036
      %2339 = vmatprep.subr.mxu0 %v2033
      %2340 = vmatpush2.msra.mxu0 %v2032
      %2341 = vmatprep.mubr.f32.mxu0 %v1703
      %2342 = vmatmul.mubr.f32.gmra.mxu0 %v1702
      %v2343 = vpop.f32.mrf.mxu0
      %v2344 = vadd.f32 %v2267, %v2343
      %v2345 = vpop.f32.mrf.mxu0
      %v2346 = vadd.f32 %v2269, %v2345
      %2347 = vmatprep.mubr.f32.mxu0 %v1710
      %2348 = vmatmul.mubr.f32.gmra.mxu0 %v1709
      %v2349 = vpop.f32.mrf.mxu0
      %v2350 = vadd.f32 %v2273, %v2349
      %v2351 = vpop.f32.mrf.mxu0
      %v2352 = vadd.f32 %v2275, %v2351
      %2353 = vdwg.mxu0
      %2354 = vmatprep.subr.mxu0 0.0
      %2355 = vmatpush1.msra.mxu0 0.0
      %2356 = vmatprep.subr.mxu0 0.0
      %2357 = vmatpush1.msra.mxu0 0.0
      %2358 = vmatprep.subr.mxu0 0.0
      %2359 = vmatpush1.msra.mxu0 0.0
      %2360 = vmatprep.subr.mxu0 0.0
      %2361 = vmatpush1.msra.mxu0 0.0
      %2362 = vmatprep.subr.mxu0 0.0
      %2363 = vmatpush1.msra.mxu0 0.0
      %2364 = vmatprep.subr.mxu0 0.0
      %2365 = vmatpush1.msra.mxu0 0.0
      %2366 = vmatprep.subr.mxu0 0.0
      %2367 = vmatpush1.msra.mxu0 0.0
      %2368 = vmatprep.subr.mxu0 0.0
      %2369 = vmatpush1.msra.mxu0 0.0
      %2370 = vmatprep.subr.mxu0 0.0
      %2371 = vmatpush1.msra.mxu0 0.0
      %2372 = vmatprep.subr.mxu0 0.0
      %2373 = vmatpush1.msra.mxu0 0.0
      %2374 = vmatprep.subr.mxu0 0.0
      %2375 = vmatpush1.msra.mxu0 0.0
      %2376 = vmatprep.subr.mxu0 0.0
      %2377 = vmatpush1.msra.mxu0 0.0
      %2378 = vmatprep.subr.mxu0 0.0
      %2379 = vmatpush1.msra.mxu0 0.0
      %2380 = vmatprep.subr.mxu0 0.0
      %2381 = vmatpush1.msra.mxu0 0.0
      %2382 = vmatprep.subr.mxu0 %v2101
      %2383 = vmatpush1.msra.mxu0 %v2100
      %2384 = vmatprep.subr.mxu0 %v2097
      %2385 = vmatpush1.msra.mxu0 %v2096
      %2386 = vmatprep.subr.mxu0 0.0
      %2387 = vmatpush2.msra.mxu0 0.0
      %2388 = vmatprep.subr.mxu0 0.0
      %2389 = vmatpush2.msra.mxu0 0.0
      %2390 = vmatprep.subr.mxu0 0.0
      %2391 = vmatpush2.msra.mxu0 0.0
      %2392 = vmatprep.subr.mxu0 0.0
      %2393 = vmatpush2.msra.mxu0 0.0
      %2394 = vmatprep.subr.mxu0 0.0
      %2395 = vmatpush2.msra.mxu0 0.0
      %2396 = vmatprep.subr.mxu0 0.0
      %2397 = vmatpush2.msra.mxu0 0.0
      %2398 = vmatprep.subr.mxu0 0.0
      %2399 = vmatpush2.msra.mxu0 0.0
      %2400 = vmatprep.subr.mxu0 0.0
      %2401 = vmatpush2.msra.mxu0 0.0
      %2402 = vmatprep.subr.mxu0 0.0
      %2403 = vmatpush2.msra.mxu0 0.0
      %2404 = vmatprep.subr.mxu0 0.0
      %2405 = vmatpush2.msra.mxu0 0.0
      %2406 = vmatprep.subr.mxu0 0.0
      %2407 = vmatpush2.msra.mxu0 0.0
      %2408 = vmatprep.subr.mxu0 0.0
      %2409 = vmatpush2.msra.mxu0 0.0
      %2410 = vmatprep.subr.mxu0 0.0
      %2411 = vmatpush2.msra.mxu0 0.0
      %2412 = vmatprep.subr.mxu0 0.0
      %2413 = vmatpush2.msra.mxu0 0.0
      %2414 = vmatprep.subr.mxu0 0.0
      %2415 = vmatpush2.msra.mxu0 0.0
      %2416 = vmatprep.subr.mxu0 0.0
      %2417 = vmatpush2.msra.mxu0 0.0
      %2418 = vmatprep.mubr.f32.mxu0 0.0
      %2419 = vmatmul.mubr.f32.gmra.mxu0 %v2118
      %v2420 = vpop.f32.mrf.mxu0
      %v2421 = vadd.f32 %v2344, %v2420
      %v2422 = vpop.f32.mrf.mxu0
      %v2423 = vadd.f32 %v2346, %v2422
      %2424 = vmatprep.mubr.f32.mxu0 0.0
      %2425 = vmatmul.mubr.f32.gmra.mxu0 %v2121
      %v2426 = vpop.f32.mrf.mxu0
      %v2427 = vadd.f32 %v2350, %v2426
      %v2428 = vpop.f32.mrf.mxu0
      %v2429 = vadd.f32 %v2352, %v2428
      %2430 = vdwg.mxu0
      %2431 = vmatprep.subr.mxu0 %v1775
      %2432 = vmatpush1.msra.mxu0 %v1774
      %2433 = vmatprep.subr.mxu0 %v1771
      %2434 = vmatpush1.msra.mxu0 %v1770
      %2435 = vmatprep.subr.mxu0 %v1767
      %2436 = vmatpush1.msra.mxu0 %v1766
      %2437 = vmatprep.subr.mxu0 %v1763
      %2438 = vmatpush1.msra.mxu0 %v1762
      %2439 = vmatprep.subr.mxu0 %v1759
      %2440 = vmatpush1.msra.mxu0 %v1758
      %2441 = vmatprep.subr.mxu0 %v1755
      %2442 = vmatpush1.msra.mxu0 %v1754
      %2443 = vmatprep.subr.mxu0 %v1751
      %2444 = vmatpush1.msra.mxu0 %v1750
      %2445 = vmatprep.subr.mxu0 %v1747
      %2446 = vmatpush1.msra.mxu0 %v1746
      %2447 = vmatprep.subr.mxu0 %v1743
      %2448 = vmatpush1.msra.mxu0 %v1742
      %2449 = vmatprep.subr.mxu0 %v1739
      %2450 = vmatpush1.msra.mxu0 %v1738
      %2451 = vmatprep.subr.mxu0 %v1735
      %2452 = vmatpush1.msra.mxu0 %v1734
      %2453 = vmatprep.subr.mxu0 %v1731
      %2454 = vmatpush1.msra.mxu0 %v1730
      %2455 = vmatprep.subr.mxu0 %v1727
      %2456 = vmatpush1.msra.mxu0 %v1726
      %2457 = vmatprep.subr.mxu0 %v1723
      %2458 = vmatpush1.msra.mxu0 %v1722
      %2459 = vmatprep.subr.mxu0 %v1719
      %2460 = vmatpush1.msra.mxu0 %v1718
      %2461 = vmatprep.subr.mxu0 %v1715
      %2462 = vmatpush1.msra.mxu0 %v1714
      %2463 = vmatprep.subr.mxu0 %v1839
      %2464 = vmatpush2.msra.mxu0 %v1838
      %2465 = vmatprep.subr.mxu0 %v1835
      %2466 = vmatpush2.msra.mxu0 %v1834
      %2467 = vmatprep.subr.mxu0 %v1831
      %2468 = vmatpush2.msra.mxu0 %v1830
      %2469 = vmatprep.subr.mxu0 %v1827
      %2470 = vmatpush2.msra.mxu0 %v1826
      %2471 = vmatprep.subr.mxu0 %v1823
      %2472 = vmatpush2.msra.mxu0 %v1822
      %2473 = vmatprep.subr.mxu0 %v1819
      %2474 = vmatpush2.msra.mxu0 %v1818
      %2475 = vmatprep.subr.mxu0 %v1815
      %2476 = vmatpush2.msra.mxu0 %v1814
      %2477 = vmatprep.subr.mxu0 %v1811
      %2478 = vmatpush2.msra.mxu0 %v1810
      %2479 = vmatprep.subr.mxu0 %v1807
      %2480 = vmatpush2.msra.mxu0 %v1806
      %2481 = vmatprep.subr.mxu0 %v1803
      %2482 = vmatpush2.msra.mxu0 %v1802
      %2483 = vmatprep.subr.mxu0 %v1799
      %2484 = vmatpush2.msra.mxu0 %v1798
      %2485 = vmatprep.subr.mxu0 %v1795
      %2486 = vmatpush2.msra.mxu0 %v1794
      %2487 = vmatprep.subr.mxu0 %v1791
      %2488 = vmatpush2.msra.mxu0 %v1790
      %2489 = vmatprep.subr.mxu0 %v1787
      %2490 = vmatpush2.msra.mxu0 %v1786
      %2491 = vmatprep.subr.mxu0 %v1783
      %2492 = vmatpush2.msra.mxu0 %v1782
      %2493 = vmatprep.subr.mxu0 %v1779
      %2494 = vmatpush2.msra.mxu0 %v1778
      %2495 = vmatprep.mubr.f32.mxu0 %v1699
      %2496 = vmatmul.mubr.f32.gmra.mxu0 %v1698
      %v2497 = vpop.f32.mrf.mxu0
      %v2498 = vadd.f32 %v2109, %v2497
      %v2499 = vpop.f32.mrf.mxu0
      %v2500 = vadd.f32 %v2109, %v2499
      %2501 = vmatprep.mubr.f32.mxu0 %v1706
      %2502 = vmatmul.mubr.f32.gmra.mxu0 %v1705
      %v2503 = vpop.f32.mrf.mxu0
      %v2504 = vadd.f32 %v2114, %v2503
      %v2505 = vpop.f32.mrf.mxu0
      %v2506 = vadd.f32 %v2114, %v2505
      %2507 = vdwg.mxu0
      %2508 = vmatprep.subr.mxu0 %v1903
      %2509 = vmatpush1.msra.mxu0 %v1902
      %2510 = vmatprep.subr.mxu0 %v1899
      %2511 = vmatpush1.msra.mxu0 %v1898
      %2512 = vmatprep.subr.mxu0 %v1895
      %2513 = vmatpush1.msra.mxu0 %v1894
      %2514 = vmatprep.subr.mxu0 %v1891
      %2515 = vmatpush1.msra.mxu0 %v1890
      %2516 = vmatprep.subr.mxu0 %v1887
      %2517 = vmatpush1.msra.mxu0 %v1886
      %2518 = vmatprep.subr.mxu0 %v1883
      %2519 = vmatpush1.msra.mxu0 %v1882
      %2520 = vmatprep.subr.mxu0 %v1879
      %2521 = vmatpush1.msra.mxu0 %v1878
      %2522 = vmatprep.subr.mxu0 %v1875
      %2523 = vmatpush1.msra.mxu0 %v1874
      %2524 = vmatprep.subr.mxu0 %v1871
      %2525 = vmatpush1.msra.mxu0 %v1870
      %2526 = vmatprep.subr.mxu0 %v1867
      %2527 = vmatpush1.msra.mxu0 %v1866
      %2528 = vmatprep.subr.mxu0 %v1863
      %2529 = vmatpush1.msra.mxu0 %v1862
      %2530 = vmatprep.subr.mxu0 %v1859
      %2531 = vmatpush1.msra.mxu0 %v1858
      %2532 = vmatprep.subr.mxu0 %v1855
      %2533 = vmatpush1.msra.mxu0 %v1854
      %2534 = vmatprep.subr.mxu0 %v1851
      %2535 = vmatpush1.msra.mxu0 %v1850
      %2536 = vmatprep.subr.mxu0 %v1847
      %2537 = vmatpush1.msra.mxu0 %v1846
      %2538 = vmatprep.subr.mxu0 %v1843
      %2539 = vmatpush1.msra.mxu0 %v1842
      %2540 = vmatprep.subr.mxu0 %v1967
      %2541 = vmatpush2.msra.mxu0 %v1966
      %2542 = vmatprep.subr.mxu0 %v1963
      %2543 = vmatpush2.msra.mxu0 %v1962
      %2544 = vmatprep.subr.mxu0 %v1959
      %2545 = vmatpush2.msra.mxu0 %v1958
      %2546 = vmatprep.subr.mxu0 %v1955
      %2547 = vmatpush2.msra.mxu0 %v1954
      %2548 = vmatprep.subr.mxu0 %v1951
      %2549 = vmatpush2.msra.mxu0 %v1950
      %2550 = vmatprep.subr.mxu0 %v1947
      %2551 = vmatpush2.msra.mxu0 %v1946
      %2552 = vmatprep.subr.mxu0 %v1943
      %2553 = vmatpush2.msra.mxu0 %v1942
      %2554 = vmatprep.subr.mxu0 %v1939
      %2555 = vmatpush2.msra.mxu0 %v1938
      %2556 = vmatprep.subr.mxu0 %v1935
      %2557 = vmatpush2.msra.mxu0 %v1934
      %2558 = vmatprep.subr.mxu0 %v1931
      %2559 = vmatpush2.msra.mxu0 %v1930
      %2560 = vmatprep.subr.mxu0 %v1927
      %2561 = vmatpush2.msra.mxu0 %v1926
      %2562 = vmatprep.subr.mxu0 %v1923
      %2563 = vmatpush2.msra.mxu0 %v1922
      %2564 = vmatprep.subr.mxu0 %v1919
      %2565 = vmatpush2.msra.mxu0 %v1918
      %2566 = vmatprep.subr.mxu0 %v1915
      %2567 = vmatpush2.msra.mxu0 %v1914
      %2568 = vmatprep.subr.mxu0 %v1911
      %2569 = vmatpush2.msra.mxu0 %v1910
      %2570 = vmatprep.subr.mxu0 %v1907
      %2571 = vmatpush2.msra.mxu0 %v1906
      %2572 = vmatprep.mubr.f32.mxu0 %v1701
      %2573 = vmatmul.mubr.f32.gmra.mxu0 %v1700
      %v2574 = vpop.f32.mrf.mxu0
      %v2575 = vadd.f32 %v2498, %v2574
      %v2576 = vpop.f32.mrf.mxu0
      %v2577 = vadd.f32 %v2500, %v2576
      %2578 = vmatprep.mubr.f32.mxu0 %v1708
      %2579 = vmatmul.mubr.f32.gmra.mxu0 %v1707
      %v2580 = vpop.f32.mrf.mxu0
      %v2581 = vadd.f32 %v2504, %v2580
      %v2582 = vpop.f32.mrf.mxu0
      %v2583 = vadd.f32 %v2506, %v2582
      %2584 = vdwg.mxu0
      %2585 = vmatprep.subr.mxu0 %v2031
      %2586 = vmatpush1.msra.mxu0 %v2030
      %2587 = vmatprep.subr.mxu0 %v2027
      %2588 = vmatpush1.msra.mxu0 %v2026
      %2589 = vmatprep.subr.mxu0 %v2023
      %2590 = vmatpush1.msra.mxu0 %v2022
      %2591 = vmatprep.subr.mxu0 %v2019
      %2592 = vmatpush1.msra.mxu0 %v2018
      %2593 = vmatprep.subr.mxu0 %v2015
      %2594 = vmatpush1.msra.mxu0 %v2014
      %2595 = vmatprep.subr.mxu0 %v2011
      %2596 = vmatpush1.msra.mxu0 %v2010
      %2597 = vmatprep.subr.mxu0 %v2007
      %2598 = vmatpush1.msra.mxu0 %v2006
      %2599 = vmatprep.subr.mxu0 %v2003
      %2600 = vmatpush1.msra.mxu0 %v2002
      %2601 = vmatprep.subr.mxu0 %v1999
      %2602 = vmatpush1.msra.mxu0 %v1998
      %2603 = vmatprep.subr.mxu0 %v1995
      %2604 = vmatpush1.msra.mxu0 %v1994
      %2605 = vmatprep.subr.mxu0 %v1991
      %2606 = vmatpush1.msra.mxu0 %v1990
      %2607 = vmatprep.subr.mxu0 %v1987
      %2608 = vmatpush1.msra.mxu0 %v1986
      %2609 = vmatprep.subr.mxu0 %v1983
      %2610 = vmatpush1.msra.mxu0 %v1982
      %2611 = vmatprep.subr.mxu0 %v1979
      %2612 = vmatpush1.msra.mxu0 %v1978
      %2613 = vmatprep.subr.mxu0 %v1975
      %2614 = vmatpush1.msra.mxu0 %v1974
      %2615 = vmatprep.subr.mxu0 %v1971
      %2616 = vmatpush1.msra.mxu0 %v1970
      %2617 = vmatprep.subr.mxu0 %v2095
      %2618 = vmatpush2.msra.mxu0 %v2094
      %2619 = vmatprep.subr.mxu0 %v2091
      %2620 = vmatpush2.msra.mxu0 %v2090
      %2621 = vmatprep.subr.mxu0 %v2087
      %2622 = vmatpush2.msra.mxu0 %v2086
      %2623 = vmatprep.subr.mxu0 %v2083
      %2624 = vmatpush2.msra.mxu0 %v2082
      %2625 = vmatprep.subr.mxu0 %v2079
      %2626 = vmatpush2.msra.mxu0 %v2078
      %2627 = vmatprep.subr.mxu0 %v2075
      %2628 = vmatpush2.msra.mxu0 %v2074
      %2629 = vmatprep.subr.mxu0 %v2071
      %2630 = vmatpush2.msra.mxu0 %v2070
      %2631 = vmatprep.subr.mxu0 %v2067
      %2632 = vmatpush2.msra.mxu0 %v2066
      %2633 = vmatprep.subr.mxu0 %v2063
      %2634 = vmatpush2.msra.mxu0 %v2062
      %2635 = vmatprep.subr.mxu0 %v2059
      %2636 = vmatpush2.msra.mxu0 %v2058
      %2637 = vmatprep.subr.mxu0 %v2055
      %2638 = vmatpush2.msra.mxu0 %v2054
      %2639 = vmatprep.subr.mxu0 %v2051
      %2640 = vmatpush2.msra.mxu0 %v2050
      %2641 = vmatprep.subr.mxu0 %v2047
      %2642 = vmatpush2.msra.mxu0 %v2046
      %2643 = vmatprep.subr.mxu0 %v2043
      %2644 = vmatpush2.msra.mxu0 %v2042
      %2645 = vmatprep.subr.mxu0 %v2039
      %2646 = vmatpush2.msra.mxu0 %v2038
      %2647 = vmatprep.subr.mxu0 %v2035
      %2648 = vmatpush2.msra.mxu0 %v2034
      %2649 = vmatprep.mubr.f32.mxu0 %v1703
      %2650 = vmatmul.mubr.f32.gmra.mxu0 %v1702
      %v2651 = vpop.f32.mrf.mxu0
      %v2652 = vadd.f32 %v2575, %v2651
      %v2653 = vpop.f32.mrf.mxu0
      %v2654 = vadd.f32 %v2577, %v2653
      %2655 = vmatprep.mubr.f32.mxu0 %v1710
      %2656 = vmatmul.mubr.f32.gmra.mxu0 %v1709
      %v2657 = vpop.f32.mrf.mxu0
      %v2658 = vadd.f32 %v2581, %v2657
      %v2659 = vpop.f32.mrf.mxu0
      %v2660 = vadd.f32 %v2583, %v2659
      %2661 = vdwg.mxu0
      %2662 = vmatprep.subr.mxu0 0.0
      %2663 = vmatpush1.msra.mxu0 0.0
      %2664 = vmatprep.subr.mxu0 0.0
      %2665 = vmatpush1.msra.mxu0 0.0
      %2666 = vmatprep.subr.mxu0 0.0
      %2667 = vmatpush1.msra.mxu0 0.0
      %2668 = vmatprep.subr.mxu0 0.0
      %2669 = vmatpush1.msra.mxu0 0.0
      %2670 = vmatprep.subr.mxu0 0.0
      %2671 = vmatpush1.msra.mxu0 0.0
      %2672 = vmatprep.subr.mxu0 0.0
      %2673 = vmatpush1.msra.mxu0 0.0
      %2674 = vmatprep.subr.mxu0 0.0
      %2675 = vmatpush1.msra.mxu0 0.0
      %2676 = vmatprep.subr.mxu0 0.0
      %2677 = vmatpush1.msra.mxu0 0.0
      %2678 = vmatprep.subr.mxu0 0.0
      %2679 = vmatpush1.msra.mxu0 0.0
      %2680 = vmatprep.subr.mxu0 0.0
      %2681 = vmatpush1.msra.mxu0 0.0
      %2682 = vmatprep.subr.mxu0 0.0
      %2683 = vmatpush1.msra.mxu0 0.0
      %2684 = vmatprep.subr.mxu0 0.0
      %2685 = vmatpush1.msra.mxu0 0.0
      %2686 = vmatprep.subr.mxu0 0.0
      %2687 = vmatpush1.msra.mxu0 0.0
      %2688 = vmatprep.subr.mxu0 0.0
      %2689 = vmatpush1.msra.mxu0 0.0
      %2690 = vmatprep.subr.mxu0 %v2103
      %2691 = vmatpush1.msra.mxu0 %v2102
      %2692 = vmatprep.subr.mxu0 %v2099
      %2693 = vmatpush1.msra.mxu0 %v2098
      %2694 = vmatprep.subr.mxu0 0.0
      %2695 = vmatpush2.msra.mxu0 0.0
      %2696 = vmatprep.subr.mxu0 0.0
      %2697 = vmatpush2.msra.mxu0 0.0
      %2698 = vmatprep.subr.mxu0 0.0
      %2699 = vmatpush2.msra.mxu0 0.0
      %2700 = vmatprep.subr.mxu0 0.0
      %2701 = vmatpush2.msra.mxu0 0.0
      %2702 = vmatprep.subr.mxu0 0.0
      %2703 = vmatpush2.msra.mxu0 0.0
      %2704 = vmatprep.subr.mxu0 0.0
      %2705 = vmatpush2.msra.mxu0 0.0
      %2706 = vmatprep.subr.mxu0 0.0
      %2707 = vmatpush2.msra.mxu0 0.0
      %2708 = vmatprep.subr.mxu0 0.0
      %2709 = vmatpush2.msra.mxu0 0.0
      %2710 = vmatprep.subr.mxu0 0.0
      %2711 = vmatpush2.msra.mxu0 0.0
      %2712 = vmatprep.subr.mxu0 0.0
      %2713 = vmatpush2.msra.mxu0 0.0
      %2714 = vmatprep.subr.mxu0 0.0
      %2715 = vmatpush2.msra.mxu0 0.0
      %2716 = vmatprep.subr.mxu0 0.0
      %2717 = vmatpush2.msra.mxu0 0.0
      %2718 = vmatprep.subr.mxu0 0.0
      %2719 = vmatpush2.msra.mxu0 0.0
      %2720 = vmatprep.subr.mxu0 0.0
      %2721 = vmatpush2.msra.mxu0 0.0
      %2722 = vmatprep.subr.mxu0 0.0
      %2723 = vmatpush2.msra.mxu0 0.0
      %2724 = vmatprep.subr.mxu0 0.0
      %2725 = vmatpush2.msra.mxu0 0.0
      %2726 = vmatprep.mubr.f32.mxu0 0.0
      %2727 = vmatmul.mubr.f32.gmra.mxu0 %v2118
      %v2728 = vpop.f32.mrf.mxu0
      %v2729 = vadd.f32 %v2652, %v2728
      %v2730 = vpop.f32.mrf.mxu0
      %v2731 = vadd.f32 %v2654, %v2730
      %2732 = vmatprep.mubr.f32.mxu0 0.0
      %2733 = vmatmul.mubr.f32.gmra.mxu0 %v2121
      %v2734 = vpop.f32.mrf.mxu0
      %v2735 = vadd.f32 %v2658, %v2734
      %v2736 = vpop.f32.mrf.mxu0
      %v2737 = vadd.f32 %v2660, %v2736
      %2738 = vdwg.mxu0
      %v2739 = vadd.f32 %v2421, 3.0
      %v2740 = vadd.f32 %v2423, 3.0
      %v2741 = vadd.f32 %v2729, 3.0
      %v2742 = vadd.f32 %v2731, 3.0
      %v2743 = vadd.f32 %v2427, 3.0
      %v2744 = vadd.f32 %v2429, 3.0
      %v2745 = vadd.f32 %v2735, 3.0
      %v2746 = vadd.f32 %v2737, 3.0
      %v2747 = vmax.f32 %v2739, 0.0
      %v2748 = vmax.f32 %v2740, 0.0
      %v2749 = vmax.f32 %v2741, 0.0
      %v2750 = vmax.f32 %v2742, 0.0
      %v2751 = vmax.f32 %v2743, 0.0
      %v2752 = vmax.f32 %v2744, 0.0
      %v2753 = vmax.f32 %v2745, 0.0
      %v2754 = vmax.f32 %v2746, 0.0
      %v2755 = vmin.f32 %v2747, 6.0
      %v2756 = vmin.f32 %v2748, 6.0
      %v2757 = vmin.f32 %v2749, 6.0
      %v2758 = vmin.f32 %v2750, 6.0
      %v2759 = vmin.f32 %v2751, 6.0
      %v2760 = vmin.f32 %v2752, 6.0
      %v2761 = vmin.f32 %v2753, 6.0
      %v2762 = vmin.f32 %v2754, 6.0
      %v2763 = vmul.f32 %v2421, %v2755
      %v2764 = vmul.f32 %v2423, %v2756
      %v2765 = vmul.f32 %v2729, %v2757
      %v2766 = vmul.f32 %v2731, %v2758
      %v2767 = vmul.f32 %v2427, %v2759
      %v2768 = vmul.f32 %v2429, %v2760
      %v2769 = vmul.f32 %v2735, %v2761
      %v2770 = vmul.f32 %v2737, %v2762
      %v2771 = vmul.f32 %v2763, 0.16666667
      %v2772 = vmul.f32 %v2764, 0.16666667
      %v2773 = vmul.f32 %v2765, 0.16666667
      %v2774 = vmul.f32 %v2766, 0.16666667
      %v2775 = vmul.f32 %v2767, 0.16666667
      %v2776 = vmul.f32 %v2768, 0.16666667
      %v2777 = vmul.f32 %v2769, 0.16666667
      %v2778 = vmul.f32 %v2770, 0.16666667
      %2779 = vst [vmem:[%s170] sm:$0xff] %v2771
      %2780 = vst [vmem:[%s170 + $0x8] sm:$0xff] %v2772
      %2781 = vst [vmem:[%s170 + $0x10] sm:$0xff] %v2773
      %2782 = vst [vmem:[%s170 + $0x18] sm:$0xff] %v2774
      %2783 = vst [vmem:[%s170 + $0x20] sm:$0xff] %v2775
      %2784 = vst [vmem:[%s170 + $0x28] sm:$0xff] %v2776
      %2785 = vst [vmem:[%s170 + $0x30] sm:$0xff] %v2777
      %2786 = vst [vmem:[%s170 + $0x38] sm:$0xff] %v2778
      %p2787 = scmp.lt.s32.totalorder %s14, 5
      %s2788 = scalar_select %p2787, %s14, 5
      %s2789 = smul.addr %s2788, 8
      %s2790 = smul.addr %s2789, 8
      %s2791 = scalar_lea.vmem %s3, %s2790
      // Predicated region
      $region33: #{aggregator_forward.2} parent=31 // pred_check
        %p2792 = pneg %p100
      $region34: #{aggregator_forward.2} parent=31 // pred_check_branch
        %2794 = sbr.rel (%p2792) target = $region36
      $region35: #{aggregator_forward.2} parent=31 // pred_region
        _
      $region36: #{aggregator_forward.2} parent=31 // pred_fallthru
        _
    $region32: #{aggregator_forward.2} parent=5 // pred_fallthru
      _
    %p2795 = scmp.le.s32.totalorder 2, %s9
    // Predicated region
    $region37: #{aggregator_forward.2} parent=5 // pred_check
      %p2796 = pneg %p2795
    $region38: #{aggregator_forward.2} parent=5 // pred_check_branch
      %2798 = sbr.rel (%p2796) target = $region40
    $region39: #{aggregator_forward.2} parent=5 // pred_region
      %s2799 = ssub.s32 %s9, 2
      // Predicated region
      $region41: #{aggregator_forward.2} parent=39 // pred_check
        %p2800 = pneg %p106
      $region42: #{aggregator_forward.2} parent=39 // pred_check_branch
        %2802 = sbr.rel (%p2800) target = $region44
      $region43: #{aggregator_forward.2} parent=39 // pred_region
        %p2803 = scmp.lt.s32.totalorder %s15, 5
        %s2804 = scalar_select %p2803, %s15, 5
        %s2805 = smul.addr %s2804, 8
        %s2806 = smul.addr %s2805, 8
        %s2807 = scalar_lea.vmem %s3, %s2806
      $region44: #{aggregator_forward.2} parent=39 // pred_fallthru
        _
    $region40: #{aggregator_forward.2} parent=5 // pred_fallthru
      _
  $region6: #{aggregator_forward.2} parent=0 // loop_footer
    %s13 = sadd.s32 1, %s9
  $region7: #{aggregator_forward.2} parent=0 // loop_footer_branch
    %8 = sbr.rel target = $region3
  $region8: #{aggregator_forward.2} parent=0 // loop_exit
    _

// kernel: aggregator_forward.3
$region0: #{aggregator_forward.3}
  #allocation0 [shape = 'u32[]', space=smem, size = 0x4, offset = 0x4, fixed_abs, tag = 'smem constant byte address 0x4 - core index']
  #allocation1 [shape = 'u32[144,128]{1,0:T(1,128)}', space=vmem, size = 0x12000, scoped, tag = 'internal scratch']
  #allocation2 [shape = 'f32[144,384]{1,0:T(8,128)}', space=vmem, size = 0x36000, scoped, tag = 'scratch operand']
  %s0 = inlined_call_operand.vmem [shape: f32[2,16,384], index: 0, kind: input, shape index: {}]
  %s1 = inlined_call_operand.vmem [shape: f32[4,144], index: 1, kind: input, shape index: {}]
  %s2 = inlined_call_operand.vmem [shape: f32[4,1], index: 2, kind: input, shape index: {}]
  %s3 = inlined_call_operand.vmem [shape: f32[4,1], index: 3, kind: input, shape index: {}]
  %s4 = inlined_call_operand.vmem [shape: f32[2,4,384], index: 4, kind: output, shape index: {}]
  %s5 = sld [smem:[#allocation0]]
  $region49: #{aggregator_forward.3} parent=0
    _
  %s7 = ssub.s32 1, %s5
  %s8 = scalar_select 0, %s7, %s5
  loop: start=0, step=1, limit=4
  $region2: #{aggregator_forward.3} parent=0 // loop_pre_header
    _
  $region3: #{aggregator_forward.3} parent=0 // loop_header
    %s10 = sphi 0, %s14
    %p11 = scmp.ge.s32.totalorder %s10, 4
    %s20 = sphi 0, %s22
    %s23 = sphi 0, %s20
    %s24 = sphi 0, %s23
    %s40 = sphi 0, %s24
    %s44 = sphi 0, %s44
    %s46 = sphi 0, %s44
    %s47 = sphi 0, %s46
    %s61 = sphi 0, %s47
    %s65 = sphi 0, %s65
    %s67 = sphi 0, %s65
    %s68 = sphi 0, %s67
    %s82 = sphi 0, %s68
    %s86 = sphi 0, %s86
    %s88 = sphi 0, %s86
    %s89 = sphi 0, %s88
    %s103 = sphi 0, %s89
    %s109 = sphi 0, %s111
    %s112 = sphi 0, %s109
    %s113 = sphi 0, %s112
    %s129 = sphi 0, %s113
  $region4: #{aggregator_forward.3} parent=0 // loop_header_branch
    %13 = sbr.rel (%p11) target = $region8
  $region5: #{aggregator_forward.3} parent=0 // loop_body
    %s15 = ssub.s32 %s10, 1
    %s16 = ssub.s32 %s10, 2
    %s17 = sadd.s32 %s10, 1
    %s18 = ssub.s32 %s10, %s17
    %p19 = scmp.eq.s32.totalorder %s18, 0
    %s21 = sadd.s32 %s20, 1
    %s22 = scalar_select %p19, %s20, %s21
    %p25 = pneg %p19
    %p26 = scmp.eq.s32.totalorder %s10, 1
    %p27 = por %p25, %p26
    %p28 = scmp.ne.s32.totalorder %s20, %s23
    %p29 = scmp.eq.s32.totalorder %s10, 0
    %p30 = por %p28, %p29
    %p31 = scmp.ne.s32.totalorder %s20, %s23
    %p32 = scmp.eq.s32.totalorder %s15, 1
    %p33 = por %p31, %p32
    %p34 = scmp.ne.s32.totalorder %s23, %s24
    %p35 = scmp.eq.s32.totalorder %s15, 0
    %p36 = por %p34, %p35
    %p37 = scmp.ne.s32.totalorder %s23, %s24
    %p38 = scmp.eq.s32.totalorder %s16, 1
    %p39 = por %p37, %p38
    %p41 = scmp.ne.s32.totalorder %s24, %s40
    %p42 = scmp.eq.s32.totalorder %s16, 0
    %p43 = por %p41, %p42
    %s45 = sadd.s32 %s44, 1
    %p48 = scmp.eq.s32.totalorder %s10, 1
    %p49 = scmp.ne.s32.totalorder %s44, %s46
    %p50 = scmp.eq.s32.totalorder %s10, 0
    %p51 = por %p49, %p50
    %p52 = scmp.ne.s32.totalorder %s44, %s46
    %p53 = scmp.eq.s32.totalorder %s15, 1
    %p54 = por %p52, %p53
    %p55 = scmp.ne.s32.totalorder %s46, %s47
    %p56 = scmp.eq.s32.totalorder %s15, 0
    %p57 = por %p55, %p56
    %p58 = scmp.ne.s32.totalorder %s46, %s47
    %p59 = scmp.eq.s32.totalorder %s16, 1
    %p60 = por %p58, %p59
    %p62 = scmp.ne.s32.totalorder %s47, %s61
    %p63 = scmp.eq.s32.totalorder %s16, 0
    %p64 = por %p62, %p63
    %s66 = sadd.s32 %s65, 1
    %p69 = scmp.eq.s32.totalorder %s10, 1
    %p70 = scmp.ne.s32.totalorder %s65, %s67
    %p71 = scmp.eq.s32.totalorder %s10, 0
    %p72 = por %p70, %p71
    %p73 = scmp.ne.s32.totalorder %s65, %s67
    %p74 = scmp.eq.s32.totalorder %s15, 1
    %p75 = por %p73, %p74
    %p76 = scmp.ne.s32.totalorder %s67, %s68
    %p77 = scmp.eq.s32.totalorder %s15, 0
    %p78 = por %p76, %p77
    %p79 = scmp.ne.s32.totalorder %s67, %s68
    %p80 = scmp.eq.s32.totalorder %s16, 1
    %p81 = por %p79, %p80
    %p83 = scmp.ne.s32.totalorder %s68, %s82
    %p84 = scmp.eq.s32.totalorder %s16, 0
    %p85 = por %p83, %p84
    %s87 = sadd.s32 %s86, 1
    %p90 = scmp.eq.s32.totalorder %s10, 1
    %p91 = scmp.ne.s32.totalorder %s86, %s88
    %p92 = scmp.eq.s32.totalorder %s10, 0
    %p93 = por %p91, %p92
    %p94 = scmp.ne.s32.totalorder %s86, %s88
    %p95 = scmp.eq.s32.totalorder %s15, 1
    %p96 = por %p94, %p95
    %p97 = scmp.ne.s32.totalorder %s88, %s89
    %p98 = scmp.eq.s32.totalorder %s15, 0
    %p99 = por %p97, %p98
    %p100 = scmp.ne.s32.totalorder %s88, %s89
    %p101 = scmp.eq.s32.totalorder %s16, 1
    %p102 = por %p100, %p101
    %p104 = scmp.ne.s32.totalorder %s89, %s103
    %p105 = scmp.eq.s32.totalorder %s16, 0
    %p106 = por %p104, %p105
    %s107 = ssub.s32 %s10, %s17
    %p108 = scmp.eq.s32.totalorder %s107, 0
    %s110 = sadd.s32 %s109, 1
    %s111 = scalar_select %p108, %s109, %s110
    %p114 = pneg %p108
    %p115 = scmp.eq.s32.totalorder %s10, 1
    %p116 = por %p114, %p115
    %p117 = scmp.ne.s32.totalorder %s109, %s112
    %p118 = scmp.eq.s32.totalorder %s10, 0
    %p119 = por %p117, %p118
    %p120 = scmp.ne.s32.totalorder %s109, %s112
    %p121 = scmp.eq.s32.totalorder %s15, 1
    %p122 = por %p120, %p121
    %p123 = scmp.ne.s32.totalorder %s112, %s113
    %p124 = scmp.eq.s32.totalorder %s15, 0
    %p125 = por %p123, %p124
    %p126 = scmp.ne.s32.totalorder %s112, %s113
    %p127 = scmp.eq.s32.totalorder %s16, 1
    %p128 = por %p126, %p127
    %p130 = scmp.ne.s32.totalorder %s113, %s129
    %p131 = scmp.eq.s32.totalorder %s16, 0
    %p132 = por %p130, %p131
    %p133 = scmp.le.s32.totalorder 1, %s10
    %p134 = scmp.lt.s32.totalorder %s10, 3
    %p135 = pnand %p133, %p134
    %p136 = pneg %p135
    // Predicated region
    $region9: #{aggregator_forward.3} parent=5 // pred_check
      _
    $region10: #{aggregator_forward.3} parent=5 // pred_check_branch
      %138 = sbr.rel (%p135) target = $region12
    $region11: #{aggregator_forward.3} parent=5 // pred_region
      %s139 = ssub.s32 %s10, 1
      // Predicated region
      $region13: #{aggregator_forward.3} parent=11 // pred_check
        %p140 = pneg %p57
      $region14: #{aggregator_forward.3} parent=11 // pred_check_branch
        %142 = sbr.rel (%p140) target = $region16
      $region15: #{aggregator_forward.3} parent=11 // pred_region
        _
      $region16: #{aggregator_forward.3} parent=11 // pred_fallthru
        _
      // Predicated region
      $region17: #{aggregator_forward.3} parent=11 // pred_check
        %p143 = pneg %p78
      $region18: #{aggregator_forward.3} parent=11 // pred_check_branch
        %145 = sbr.rel (%p143) target = $region20
      $region19: #{aggregator_forward.3} parent=11 // pred_region
        _
      $region20: #{aggregator_forward.3} parent=11 // pred_fallthru
        _
      // Predicated region
      $region21: #{aggregator_forward.3} parent=11 // pred_check
        %p146 = pneg %p99
      $region22: #{aggregator_forward.3} parent=11 // pred_check_branch
        %148 = sbr.rel (%p146) target = $region24
      $region23: #{aggregator_forward.3} parent=11 // pred_region
        _
      $region24: #{aggregator_forward.3} parent=11 // pred_fallthru
        _
    $region12: #{aggregator_forward.3} parent=5 // pred_fallthru
      _
    %p149 = scmp.lt.s32.totalorder %s10, 2
    // Predicated region
    $region25: #{aggregator_forward.3} parent=5 // pred_check
      %p150 = pneg %p149
    $region26: #{aggregator_forward.3} parent=5 // pred_check_branch
      %152 = sbr.rel (%p150) target = $region28
    $region27: #{aggregator_forward.3} parent=5 // pred_region
      // Predicated region
      $region29: #{aggregator_forward.3} parent=27 // pred_check
        %p153 = pneg %p30
      $region30: #{aggregator_forward.3} parent=27 // pred_check_branch
        %155 = sbr.rel (%p153) target = $region32
      $region31: #{aggregator_forward.3} parent=27 // pred_region
        %p156 = scmp.lt.s32.totalorder %s10, 1
        %s157 = scalar_select %p156, %s10, 1
        %s158 = smul.addr %s157, 6
        %s159 = smul.addr %s158, 8
        %s160 = scalar_lea.vmem %s0, %s159
      $region32: #{aggregator_forward.3} parent=27 // pred_fallthru
        _
    $region28: #{aggregator_forward.3} parent=5 // pred_fallthru
      _
    %p161 = scmp.le.s32.totalorder 1, %s10
    %p162 = scmp.lt.s32.totalorder %s10, 3
    %p163 = pnand %p161, %p162
    %p164 = pneg %p163
    // Predicated region
    $region33: #{aggregator_forward.3} parent=5 // pred_check
      _
    $region34: #{aggregator_forward.3} parent=5 // pred_check_branch
      %166 = sbr.rel (%p163) target = $region36
    $region35: #{aggregator_forward.3} parent=5 // pred_region
      %s167 = ssub.s32 %s10, 1
      %p168 = scmp.lt.s32.totalorder %s15, 1
      %s169 = scalar_select %p168, %s15, 1
      %s170 = smul.addr %s169, 6
      %s171 = smul.addr %s170, 8
      %s172 = scalar_lea.vmem %s0, %s171
      %p173 = pneg %p36
      %p174 = pneg %p33
      %p175 = pneg %p57
      %p176 = pneg %p54
      %p177 = pneg %p78
      %p178 = pneg %p75
      %p179 = pneg %p99
      %p180 = pneg %p96
      %p181 = pneg %p125
      %p182 = pneg %p122
      %p183 = scmp.lt.s32.totalorder %s15, 1
      %s184 = scalar_select %p183, %s15, 1
      %s185 = smul.addr %s184, 3
      %s186 = smul.addr %s185, 4
      %s187 = scalar_lea.vmem %s4, %s186
      %p188 = scmp.lt.s32.totalorder %s15, 1
      %s189 = scalar_select %p188, %s15, 1
      %s190 = smul.addr %s189, 6
      %s191 = smul.addr %s190, 8
      %s192 = scalar_lea.vmem %s0, %s191
      %p193 = scmp.lt.s32.totalorder %s15, 1
      %s194 = scalar_select %p193, %s15, 1
      %s195 = smul.addr %s194, 3
      %s196 = smul.addr %s195, 4
      %s197 = scalar_lea.vmem %s4, %s196
      %v198 = vld [vmem:[%s192] sm:$0xff]
      %v199 = vld [vmem:[%s192 + $0x8] sm:$0xff]
      %v200 = vld [vmem:[%s192 + $0x10] sm:$0xff]
      %v201 = vld [vmem:[%s192 + $0x18] sm:$0xff]
      %v202 = vld [vmem:[%s192 + $0x20] sm:$0xff]
      %v203 = vld [vmem:[%s192 + $0x28] sm:$0xff]
      %204 = vst [vmem:[#allocation2] sm:$0xff] %v198
      %205 = vst [vmem:[#allocation2 + $0x8] sm:$0xff] %v199
      %206 = vst [vmem:[#allocation2 + $0x10] sm:$0xff] %v200
      %207 = vst [vmem:[#allocation2 + $0x18] sm:$0xff] %v201
      %208 = vst [vmem:[#allocation2 + $0x20] sm:$0xff] %v202
      %209 = vst [vmem:[#allocation2 + $0x28] sm:$0xff] %v203
      %210 = vrot.lane.b32.xlu0 %v198, 127
      %v211 = vpop.permute.xlu0 %210
      %212 = vrot.lane.b32.xlu0 %v201, 127
      %v213 = vpop.permute.xlu0 %212
      %214 = vrot.lane.b32.xlu0 %v199, 127
      %v215 = vpop.permute.xlu0 %214
      %216 = vrot.lane.b32.xlu0 %v202, 127
      %v217 = vpop.permute.xlu0 %216
      %218 = vrot.lane.b32.xlu0 %v200, 127
      %v219 = vpop.permute.xlu0 %218
      %220 = vrot.lane.b32.xlu0 %v203, 127
      %v221 = vpop.permute.xlu0 %220
      %v222 = vlaneseq
      %v223 = vand.u32 %v222, 127
      %vm224 = vcmp.lt.s32.totalorder %v223, 127
      %v225 = vsel %vm224, %v215, %v219
      %v226 = vsel %vm224, %v217, %v221
      %v227 = vsel %vm224, %v211, %v215
      %v228 = vsel %vm224, %v213, %v217
      %v229 = vsel %vm224, %v219, %v211
      %v230 = vsel %vm224, %v221, %v213
      %231 = vst [vmem:[#allocation2 + $0x30] sm:$0xff] %v227
      %232 = vst [vmem:[#allocation2 + $0x38] sm:$0xff] %v225
      %233 = vst [vmem:[#allocation2 + $0x40] sm:$0xff] %v229
      %234 = vst [vmem:[#allocation2 + $0x48] sm:$0xff] %v228
      %235 = vst [vmem:[#allocation2 + $0x50] sm:$0xff] %v226
      %236 = vst [vmem:[#allocation2 + $0x58] sm:$0xff] %v230
      %237 = vrot.lane.b32.xlu0 %v198, 126
      %v238 = vpop.permute.xlu0 %237
      %239 = vrot.lane.b32.xlu0 %v201, 126
      %v240 = vpop.permute.xlu0 %239
      %241 = vrot.lane.b32.xlu0 %v199, 126
      %v242 = vpop.permute.xlu0 %241
      %243 = vrot.lane.b32.xlu0 %v202, 126
      %v244 = vpop.permute.xlu0 %243
      %245 = vrot.lane.b32.xlu0 %v200, 126
      %v246 = vpop.permute.xlu0 %245
      %247 = vrot.lane.b32.xlu0 %v203, 126
      %v248 = vpop.permute.xlu0 %247
      %vm249 = vcmp.lt.s32.totalorder %v223, 126
      %v250 = vsel %vm249, %v242, %v246
      %v251 = vsel %vm249, %v244, %v248
      %v252 = vsel %vm249, %v238, %v242
      %v253 = vsel %vm249, %v240, %v244
      %v254 = vsel %vm249, %v246, %v238
      %v255 = vsel %vm249, %v248, %v240
      %256 = vst [vmem:[#allocation2 + $0x60] sm:$0xff] %v252
      %257 = vst [vmem:[#allocation2 + $0x68] sm:$0xff] %v250
      %258 = vst [vmem:[#allocation2 + $0x70] sm:$0xff] %v254
      %259 = vst [vmem:[#allocation2 + $0x78] sm:$0xff] %v253
      %260 = vst [vmem:[#allocation2 + $0x80] sm:$0xff] %v251
      %261 = vst [vmem:[#allocation2 + $0x88] sm:$0xff] %v255
      %262 = vrot.lane.b32.xlu0 %v198, 110
      %v263 = vpop.permute.xlu0 %262
      %264 = vrot.lane.b32.xlu0 %v201, 110
      %v265 = vpop.permute.xlu0 %264
      %266 = vrot.lane.b32.xlu0 %v199, 110
      %v267 = vpop.permute.xlu0 %266
      %268 = vrot.lane.b32.xlu0 %v202, 110
      %v269 = vpop.permute.xlu0 %268
      %270 = vrot.lane.b32.xlu0 %v200, 110
      %v271 = vpop.permute.xlu0 %270
      %272 = vrot.lane.b32.xlu0 %v203, 110
      %v273 = vpop.permute.xlu0 %272
      %vm274 = vcmp.lt.s32.totalorder %v223, 110
      %v275 = vsel %vm274, %v267, %v271
      %v276 = vsel %vm274, %v269, %v273
      %v277 = vsel %vm274, %v263, %v267
      %v278 = vsel %vm274, %v265, %v269
      %v279 = vsel %vm274, %v271, %v263
      %v280 = vsel %vm274, %v273, %v265
      %281 = vst [vmem:[#allocation2 + $0x90] sm:$0xff] %v277
      %282 = vst [vmem:[#allocation2 + $0x98] sm:$0xff] %v275
      %283 = vst [vmem:[#allocation2 + $0xa0] sm:$0xff] %v279
      %284 = vst [vmem:[#allocation2 + $0xa8] sm:$0xff] %v278
      %285 = vst [vmem:[#allocation2 + $0xb0] sm:$0xff] %v276
      %286 = vst [vmem:[#allocation2 + $0xb8] sm:$0xff] %v280
      %287 = vrot.lane.b32.xlu0 %v198, 109
      %v288 = vpop.permute.xlu0 %287
      %289 = vrot.lane.b32.xlu0 %v201, 109
      %v290 = vpop.permute.xlu0 %289
      %291 = vrot.lane.b32.xlu0 %v199, 109
      %v292 = vpop.permute.xlu0 %291
      %293 = vrot.lane.b32.xlu0 %v202, 109
      %v294 = vpop.permute.xlu0 %293
      %295 = vrot.lane.b32.xlu0 %v200, 109
      %v296 = vpop.permute.xlu0 %295
      %297 = vrot.lane.b32.xlu0 %v203, 109
      %v298 = vpop.permute.xlu0 %297
      %vm299 = vcmp.lt.s32.totalorder %v223, 109
      %v300 = vsel %vm299, %v292, %v296
      %v301 = vsel %vm299, %v294, %v298
      %v302 = vsel %vm299, %v288, %v292
      %v303 = vsel %vm299, %v290, %v294
      %v304 = vsel %vm299, %v296, %v288
      %v305 = vsel %vm299, %v298, %v290
      %306 = vst [vmem:[#allocation2 + $0xc0] sm:$0xff] %v302
      %307 = vst [vmem:[#allocation2 + $0xc8] sm:$0xff] %v300
      %308 = vst [vmem:[#allocation2 + $0xd0] sm:$0xff] %v304
      %309 = vst [vmem:[#allocation2 + $0xd8] sm:$0xff] %v303
      %310 = vst [vmem:[#allocation2 + $0xe0] sm:$0xff] %v301
      %311 = vst [vmem:[#allocation2 + $0xe8] sm:$0xff] %v305
      %312 = vrot.lane.b32.xlu0 %v198, 108
      %v313 = vpop.permute.xlu0 %312
      %314 = vrot.lane.b32.xlu0 %v201, 108
      %v315 = vpop.permute.xlu0 %314
      %316 = vrot.lane.b32.xlu0 %v199, 108
      %v317 = vpop.permute.xlu0 %316
      %318 = vrot.lane.b32.xlu0 %v202, 108
      %v319 = vpop.permute.xlu0 %318
      %320 = vrot.lane.b32.xlu0 %v200, 108
      %v321 = vpop.permute.xlu0 %320
      %322 = vrot.lane.b32.xlu0 %v203, 108
      %v323 = vpop.permute.xlu0 %322
      %vm324 = vcmp.lt.s32.totalorder %v223, 108
      %v325 = vsel %vm324, %v317, %v321
      %v326 = vsel %vm324, %v319, %v323
      %v327 = vsel %vm324, %v313, %v317
      %v328 = vsel %vm324, %v315, %v319
      %v329 = vsel %vm324, %v321, %v313
      %v330 = vsel %vm324, %v323, %v315
      %331 = vst [vmem:[#allocation2 + $0xf0] sm:$0xff] %v327
      %332 = vst [vmem:[#allocation2 + $0xf8] sm:$0xff] %v325
      %333 = vst [vmem:[#allocation2 + $0x100] sm:$0xff] %v329
      %334 = vst [vmem:[#allocation2 + $0x108] sm:$0xff] %v328
      %335 = vst [vmem:[#allocation2 + $0x110] sm:$0xff] %v326
      %336 = vst [vmem:[#allocation2 + $0x118] sm:$0xff] %v330
      %337 = vrot.lane.b32.xlu0 %v198, 92
      %v338 = vpop.permute.xlu0 %337
      %339 = vrot.lane.b32.xlu0 %v201, 92
      %v340 = vpop.permute.xlu0 %339
      %341 = vrot.lane.b32.xlu0 %v199, 92
      %v342 = vpop.permute.xlu0 %341
      %343 = vrot.lane.b32.xlu0 %v202, 92
      %v344 = vpop.permute.xlu0 %343
      %345 = vrot.lane.b32.xlu0 %v200, 92
      %v346 = vpop.permute.xlu0 %345
      %347 = vrot.lane.b32.xlu0 %v203, 92
      %v348 = vpop.permute.xlu0 %347
      %vm349 = vcmp.lt.s32.totalorder %v223, 92
      %v350 = vsel %vm349, %v342, %v346
      %v351 = vsel %vm349, %v344, %v348
      %v352 = vsel %vm349, %v338, %v342
      %v353 = vsel %vm349, %v340, %v344
      %v354 = vsel %vm349, %v346, %v338
      %v355 = vsel %vm349, %v348, %v340
      %356 = vst [vmem:[#allocation2 + $0x120] sm:$0xff] %v352
      %357 = vst [vmem:[#allocation2 + $0x128] sm:$0xff] %v350
      %358 = vst [vmem:[#allocation2 + $0x130] sm:$0xff] %v354
      %359 = vst [vmem:[#allocation2 + $0x138] sm:$0xff] %v353
      %360 = vst [vmem:[#allocation2 + $0x140] sm:$0xff] %v351
      %361 = vst [vmem:[#allocation2 + $0x148] sm:$0xff] %v355
      %362 = vrot.lane.b32.xlu0 %v198, 91
      %v363 = vpop.permute.xlu0 %362
      %364 = vrot.lane.b32.xlu0 %v201, 91
      %v365 = vpop.permute.xlu0 %364
      %366 = vrot.lane.b32.xlu0 %v199, 91
      %v367 = vpop.permute.xlu0 %366
      %368 = vrot.lane.b32.xlu0 %v202, 91
      %v369 = vpop.permute.xlu0 %368
      %370 = vrot.lane.b32.xlu0 %v200, 91
      %v371 = vpop.permute.xlu0 %370
      %372 = vrot.lane.b32.xlu0 %v203, 91
      %v373 = vpop.permute.xlu0 %372
      %vm374 = vcmp.lt.s32.totalorder %v223, 91
      %v375 = vsel %vm374, %v367, %v371
      %v376 = vsel %vm374, %v369, %v373
      %v377 = vsel %vm374, %v363, %v367
      %v378 = vsel %vm374, %v365, %v369
      %v379 = vsel %vm374, %v371, %v363
      %v380 = vsel %vm374, %v373, %v365
      %381 = vst [vmem:[#allocation2 + $0x150] sm:$0xff] %v377
      %382 = vst [vmem:[#allocation2 + $0x158] sm:$0xff] %v375
      %383 = vst [vmem:[#allocation2 + $0x160] sm:$0xff] %v379
      %384 = vst [vmem:[#allocation2 + $0x168] sm:$0xff] %v378
      %385 = vst [vmem:[#allocation2 + $0x170] sm:$0xff] %v376
      %386 = vst [vmem:[#allocation2 + $0x178] sm:$0xff] %v380
      %387 = vrot.lane.b32.xlu0 %v198, 90
      %v388 = vpop.permute.xlu0 %387
      %389 = vrot.lane.b32.xlu0 %v201, 90
      %v390 = vpop.permute.xlu0 %389
      %391 = vrot.lane.b32.xlu0 %v199, 90
      %v392 = vpop.permute.xlu0 %391
      %393 = vrot.lane.b32.xlu0 %v202, 90
      %v394 = vpop.permute.xlu0 %393
      %395 = vrot.lane.b32.xlu0 %v200, 90
      %v396 = vpop.permute.xlu0 %395
      %397 = vrot.lane.b32.xlu0 %v203, 90
      %v398 = vpop.permute.xlu0 %397
      %vm399 = vcmp.lt.s32.totalorder %v223, 90
      %v400 = vsel %vm399, %v392, %v396
      %v401 = vsel %vm399, %v394, %v398
      %v402 = vsel %vm399, %v388, %v392
      %v403 = vsel %vm399, %v390, %v394
      %v404 = vsel %vm399, %v396, %v388
      %v405 = vsel %vm399, %v398, %v390
      %406 = vst [vmem:[#allocation2 + $0x180] sm:$0xff] %v402
      %407 = vst [vmem:[#allocation2 + $0x188] sm:$0xff] %v400
      %408 = vst [vmem:[#allocation2 + $0x190] sm:$0xff] %v404
      %409 = vst [vmem:[#allocation2 + $0x198] sm:$0xff] %v403
      %410 = vst [vmem:[#allocation2 + $0x1a0] sm:$0xff] %v401
      %411 = vst [vmem:[#allocation2 + $0x1a8] sm:$0xff] %v405
      %v412 = vld [vmem:[%s1] sm:$0xff]
      %v413 = vld [vmem:[#allocation2] sm:$0xff]
      %v414 = vld [vmem:[#allocation2 + $0x8] sm:$0xff]
      %v415 = vld [vmem:[#allocation2 + $0x10] sm:$0xff]
      %v416 = vld [vmem:[#allocation2 + $0x18] sm:$0xff]
      %v417 = vld [vmem:[#allocation2 + $0x20] sm:$0xff]
      %v418 = vld [vmem:[#allocation2 + $0x28] sm:$0xff]
      %v419 = vld [vmem:[#allocation2 + $0x30] sm:$0xff]
      %v420 = vld [vmem:[#allocation2 + $0x38] sm:$0xff]
      %v421 = vld [vmem:[#allocation2 + $0x40] sm:$0xff]
      %v422 = vld [vmem:[#allocation2 + $0x48] sm:$0xff]
      %v423 = vld [vmem:[#allocation2 + $0x50] sm:$0xff]
      %v424 = vld [vmem:[#allocation2 + $0x58] sm:$0xff]
      %v425 = vld [vmem:[#allocation2 + $0x60] sm:$0xff]
      %v426 = vld [vmem:[#allocation2 + $0x68] sm:$0xff]
      %v427 = vld [vmem:[#allocation2 + $0x70] sm:$0xff]
      %v428 = vld [vmem:[#allocation2 + $0x78] sm:$0xff]
      %v429 = vld [vmem:[#allocation2 + $0x80] sm:$0xff]
      %v430 = vld [vmem:[#allocation2 + $0x88] sm:$0xff]
      %v431 = vld [vmem:[#allocation2 + $0x90] sm:$0xff]
      %v432 = vld [vmem:[#allocation2 + $0x98] sm:$0xff]
      %v433 = vld [vmem:[#allocation2 + $0xa0] sm:$0xff]
      %v434 = vld [vmem:[#allocation2 + $0xa8] sm:$0xff]
      %v435 = vld [vmem:[#allocation2 + $0xb0] sm:$0xff]
      %v436 = vld [vmem:[#allocation2 + $0xb8] sm:$0xff]
      %v437 = vld [vmem:[#allocation2 + $0xc0] sm:$0xff]
      %v438 = vld [vmem:[#allocation2 + $0xc8] sm:$0xff]
      %v439 = vld [vmem:[#allocation2 + $0xd0] sm:$0xff]
      %v440 = vld [vmem:[#allocation2 + $0xd8] sm:$0xff]
      %v441 = vld [vmem:[#allocation2 + $0xe0] sm:$0xff]
      %v442 = vld [vmem:[#allocation2 + $0xe8] sm:$0xff]
      %v443 = vld [vmem:[#allocation2 + $0xf0] sm:$0xff]
      %v444 = vld [vmem:[#allocation2 + $0xf8] sm:$0xff]
      %v445 = vld [vmem:[#allocation2 + $0x100] sm:$0xff]
      %v446 = vld [vmem:[#allocation2 + $0x108] sm:$0xff]
      %v447 = vld [vmem:[#allocation2 + $0x110] sm:$0xff]
      %v448 = vld [vmem:[#allocation2 + $0x118] sm:$0xff]
      %v449 = vld [vmem:[#allocation2 + $0x120] sm:$0xff]
      %v450 = vld [vmem:[#allocation2 + $0x128] sm:$0xff]
      %v451 = vld [vmem:[#allocation2 + $0x130] sm:$0xff]
      %v452 = vld [vmem:[#allocation2 + $0x138] sm:$0xff]
      %v453 = vld [vmem:[#allocation2 + $0x140] sm:$0xff]
      %v454 = vld [vmem:[#allocation2 + $0x148] sm:$0xff]
      %v455 = vld [vmem:[#allocation2 + $0x150] sm:$0xff]
      %v456 = vld [vmem:[#allocation2 + $0x158] sm:$0xff]
      %v457 = vld [vmem:[#allocation2 + $0x160] sm:$0xff]
      %v458 = vld [vmem:[#allocation2 + $0x168] sm:$0xff]
      %v459 = vld [vmem:[#allocation2 + $0x170] sm:$0xff]
      %v460 = vld [vmem:[#allocation2 + $0x178] sm:$0xff]
      %v461 = vld [vmem:[#allocation2 + $0x180] sm:$0xff]
      %v462 = vld [vmem:[#allocation2 + $0x188] sm:$0xff]
      %v463 = vld [vmem:[#allocation2 + $0x190] sm:$0xff]
      %v464 = vld [vmem:[#allocation2 + $0x198] sm:$0xff]
      %v465 = vld [vmem:[#allocation2 + $0x1a0] sm:$0xff]
      %v466 = vld [vmem:[#allocation2 + $0x1a8] sm:$0xff]
      %v468 = vcombine.high %v412, %v412
      %vm469 = vcmask 130048
      %v470 = vsel %vm469, %v468, 0
      %472 = vmatprep.subr.mxu0 %v459
      %473 = vmatpush1.msra.mxu0 %v458
      %474 = vmatprep.subr.mxu0 %v456
      %475 = vmatpush1.msra.mxu0 %v455
      %476 = vmatprep.subr.mxu0 %v453
      %477 = vmatpush1.msra.mxu0 %v452
      %478 = vmatprep.subr.mxu0 %v450
      %479 = vmatpush1.msra.mxu0 %v449
      %480 = vmatprep.subr.mxu0 %v447
      %481 = vmatpush1.msra.mxu0 %v446
      %482 = vmatprep.subr.mxu0 %v444
      %483 = vmatpush1.msra.mxu0 %v443
      %484 = vmatprep.subr.mxu0 %v441
      %485 = vmatpush1.msra.mxu0 %v440
      %486 = vmatprep.subr.mxu0 %v438
      %487 = vmatpush1.msra.mxu0 %v437
      %488 = vmatprep.subr.mxu0 %v435
      %489 = vmatpush1.msra.mxu0 %v434
      %490 = vmatprep.subr.mxu0 %v432
      %491 = vmatpush1.msra.mxu0 %v431
      %492 = vmatprep.subr.mxu0 %v429
      %493 = vmatpush1.msra.mxu0 %v428
      %494 = vmatprep.subr.mxu0 %v426
      %495 = vmatpush1.msra.mxu0 %v425
      %496 = vmatprep.subr.mxu0 %v423
      %497 = vmatpush1.msra.mxu0 %v422
      %498 = vmatprep.subr.mxu0 %v420
      %499 = vmatpush1.msra.mxu0 %v419
      %500 = vmatprep.subr.mxu0 %v417
      %501 = vmatpush1.msra.mxu0 %v416
      %502 = vmatprep.subr.mxu0 %v414
      %503 = vmatpush1.msra.mxu0 %v413
      %504 = vmatprep.subr.mxu0 0.0
      %505 = vmatpush2.msra.mxu0 0.0
      %506 = vmatprep.subr.mxu0 0.0
      %507 = vmatpush2.msra.mxu0 0.0
      %508 = vmatprep.subr.mxu0 0.0
      %509 = vmatpush2.msra.mxu0 0.0
      %510 = vmatprep.subr.mxu0 0.0
      %511 = vmatpush2.msra.mxu0 0.0
      %512 = vmatprep.subr.mxu0 0.0
      %513 = vmatpush2.msra.mxu0 0.0
      %514 = vmatprep.subr.mxu0 0.0
      %515 = vmatpush2.msra.mxu0 0.0
      %516 = vmatprep.subr.mxu0 0.0
      %517 = vmatpush2.msra.mxu0 0.0
      %518 = vmatprep.subr.mxu0 0.0
      %519 = vmatpush2.msra.mxu0 0.0
      %520 = vmatprep.subr.mxu0 0.0
      %521 = vmatpush2.msra.mxu0 0.0
      %522 = vmatprep.subr.mxu0 0.0
      %523 = vmatpush2.msra.mxu0 0.0
      %524 = vmatprep.subr.mxu0 0.0
      %525 = vmatpush2.msra.mxu0 0.0
      %526 = vmatprep.subr.mxu0 0.0
      %527 = vmatpush2.msra.mxu0 0.0
      %528 = vmatprep.subr.mxu0 0.0
      %529 = vmatpush2.msra.mxu0 0.0
      %530 = vmatprep.subr.mxu0 0.0
      %531 = vmatpush2.msra.mxu0 0.0
      %532 = vmatprep.subr.mxu0 %v465
      %533 = vmatpush2.msra.mxu0 %v464
      %534 = vmatprep.subr.mxu0 %v462
      %535 = vmatpush2.msra.mxu0 %v461
      %536 = vmatprep.mubr.f32.mxu0 %v470
      %537 = vmatmul.mubr.f32.gmra.mxu0 %v412
      %v538 = vpop.f32.mrf.mxu0
      %v539 = vadd.f32 0.0, %v538
      %v540 = vpop.f32.mrf.mxu0
      %v541 = vadd.f32 0.0, %v540
      %542 = vdwg.mxu0
      %543 = vmatprep.subr.mxu0 0.0
      %544 = vmatpush1.msra.mxu0 %v460
      %545 = vmatprep.subr.mxu0 0.0
      %546 = vmatpush1.msra.mxu0 %v457
      %547 = vmatprep.subr.mxu0 0.0
      %548 = vmatpush1.msra.mxu0 %v454
      %549 = vmatprep.subr.mxu0 0.0
      %550 = vmatpush1.msra.mxu0 %v451
      %551 = vmatprep.subr.mxu0 0.0
      %552 = vmatpush1.msra.mxu0 %v448
      %553 = vmatprep.subr.mxu0 0.0
      %554 = vmatpush1.msra.mxu0 %v445
      %555 = vmatprep.subr.mxu0 0.0
      %556 = vmatpush1.msra.mxu0 %v442
      %557 = vmatprep.subr.mxu0 0.0
      %558 = vmatpush1.msra.mxu0 %v439
      %559 = vmatprep.subr.mxu0 0.0
      %560 = vmatpush1.msra.mxu0 %v436
      %561 = vmatprep.subr.mxu0 0.0
      %562 = vmatpush1.msra.mxu0 %v433
      %563 = vmatprep.subr.mxu0 0.0
      %564 = vmatpush1.msra.mxu0 %v430
      %565 = vmatprep.subr.mxu0 0.0
      %566 = vmatpush1.msra.mxu0 %v427
      %567 = vmatprep.subr.mxu0 0.0
      %568 = vmatpush1.msra.mxu0 %v424
      %569 = vmatprep.subr.mxu0 0.0
      %570 = vmatpush1.msra.mxu0 %v421
      %571 = vmatprep.subr.mxu0 0.0
      %572 = vmatpush1.msra.mxu0 %v418
      %573 = vmatprep.subr.mxu0 0.0
      %574 = vmatpush1.msra.mxu0 %v415
      %575 = vmatprep.subr.mxu0 0.0
      %576 = vmatpush2.msra.mxu0 0.0
      %577 = vmatprep.subr.mxu0 0.0
      %578 = vmatpush2.msra.mxu0 0.0
      %579 = vmatprep.subr.mxu0 0.0
      %580 = vmatpush2.msra.mxu0 0.0
      %581 = vmatprep.subr.mxu0 0.0
      %582 = vmatpush2.msra.mxu0 0.0
      %583 = vmatprep.subr.mxu0 0.0
      %584 = vmatpush2.msra.mxu0 0.0
      %585 = vmatprep.subr.mxu0 0.0
      %586 = vmatpush2.msra.mxu0 0.0
      %587 = vmatprep.subr.mxu0 0.0
      %588 = vmatpush2.msra.mxu0 0.0
      %589 = vmatprep.subr.mxu0 0.0
      %590 = vmatpush2.msra.mxu0 0.0
      %591 = vmatprep.subr.mxu0 0.0
      %592 = vmatpush2.msra.mxu0 0.0
      %593 = vmatprep.subr.mxu0 0.0
      %594 = vmatpush2.msra.mxu0 0.0
      %595 = vmatprep.subr.mxu0 0.0
      %596 = vmatpush2.msra.mxu0 0.0
      %597 = vmatprep.subr.mxu0 0.0
      %598 = vmatpush2.msra.mxu0 0.0
      %599 = vmatprep.subr.mxu0 0.0
      %600 = vmatpush2.msra.mxu0 0.0
      %601 = vmatprep.subr.mxu0 0.0
      %602 = vmatpush2.msra.mxu0 0.0
      %603 = vmatprep.subr.mxu0 0.0
      %604 = vmatpush2.msra.mxu0 %v466
      %605 = vmatprep.subr.mxu0 0.0
      %606 = vmatpush2.msra.mxu0 %v463
      %607 = vmatprep.mubr.f32.mxu0 %v470
      %608 = vmatmul.mubr.f32.gmra.mxu0 %v412
      %v609 = vpop.f32.mrf.mxu0
      %v610 = vadd.f32 0.0, %v609
      %v611 = vpop.f32.mrf.mxu0
      %612 = vdwg.mxu0
      %vm613 = vcmask 1043456
      %v614 = vsel %vm613, %v539, 0.0
      %v615 = vrot.slane %v614, 4
      %v616 = vadd.f32 %v614, %v615
      %v617 = vrot.slane %v616, 2
      %v618 = vadd.f32 %v616, %v617
      %v619 = vrot.slane %v618, 1
      %v620 = vadd.f32 %v618, %v619
      %v621 = vsel %vm613, %v541, 0.0
      %v622 = vrot.slane %v621, 4
      %v623 = vadd.f32 %v621, %v622
      %v624 = vrot.slane %v623, 2
      %v625 = vadd.f32 %v623, %v624
      %v626 = vrot.slane %v625, 1
      %v627 = vadd.f32 %v625, %v626
      %v628 = vsel %vm613, %v610, 0.0
      %v629 = vrot.slane %v628, 4
      %v630 = vadd.f32 %v628, %v629
      %v631 = vrot.slane %v630, 2
      %v632 = vadd.f32 %v630, %v631
      %v633 = vrot.slane %v632, 1
      %v634 = vadd.f32 %v632, %v633
      %v635 = vmul.f32 %v620, 0.25
      %v636 = vmul.f32 %v627, 0.25
      %v637 = vmul.f32 %v634, 0.25
      %v638 = vsub.f32 %v539, %v635
      %v639 = vsub.f32 %v541, %v636
      %v640 = vsub.f32 %v610, %v637
      %v641 = vmul.f32 %v638, %v638
      %v642 = vmul.f32 %v639, %v639
      %v643 = vmul.f32 %v640, %v640
      %v644 = vsel %vm613, %v641, 0.0
      %v645 = vrot.slane %v644, 4
      %v646 = vadd.f32 %v644, %v645
      %v647 = vrot.slane %v646, 2
      %v648 = vadd.f32 %v646, %v647
      %v649 = vrot.slane %v648, 1
      %v650 = vadd.f32 %v648, %v649
      %v651 = vsel %vm613, %v642, 0.0
      %v652 = vrot.slane %v651, 4
      %v653 = vadd.f32 %v651, %v652
      %v654 = vrot.slane %v653, 2
      %v655 = vadd.f32 %v653, %v654
      %v656 = vrot.slane %v655, 1
      %v657 = vadd.f32 %v655, %v656
      %v658 = vsel %vm613, %v643, 0.0
      %v659 = vrot.slane %v658, 4
      %v660 = vadd.f32 %v658, %v659
      %v661 = vrot.slane %v660, 2
      %v662 = vadd.f32 %v660, %v661
      %v663 = vrot.slane %v662, 1
      %v664 = vadd.f32 %v662, %v663
      %v665 = vmul.f32 %v650, 0.25
      %v666 = vmul.f32 %v657, 0.25
      %v667 = vmul.f32 %v664, 0.25
      %v668 = vadd.f32 %v665, 1e-05
      %v669 = vadd.f32 %v666, 1e-05
      %v670 = vadd.f32 %v667, 1e-05
      %v671 = vrsqrt.pop %v668
      %v672 = vrsqrt.pop %v669
      %v673 = vrsqrt.pop %v670
      %v674 = vmul.f32 %v638, %v671
      %v675 = vmul.f32 %v639, %v672
      %v676 = vmul.f32 %v640, %v673
      %v677 = vld [vmem:[%s2] sm:$0xf]
      %679 = vset.pattern.permute.xlu0 0
      %680 = vperm.xlu0 %679, %v677
      %v681 = vpop.permute.xlu0 %680
      %v683 = vmul.f32 %v674, %v681
      %v684 = vmul.f32 %v675, %v681
      %v685 = vmul.f32 %v676, %v681
      %v686 = vld [vmem:[%s3] sm:$0xf]
      %688 = vset.pattern.permute.xlu0 0
      %689 = vperm.xlu0 %688, %v686
      %v690 = vpop.permute.xlu0 %689
      %v692 = vadd.f32 %v683, %v690
      %v693 = vadd.f32 %v684, %v690
      %v694 = vadd.f32 %v685, %v690
      %v695 = vadd.f32 %v692, 3.0
      %v696 = vadd.f32 %v693, 3.0
      %v697 = vadd.f32 %v694, 3.0
      %v698 = vmax.f32 %v695, 0.0
      %v699 = vmax.f32 %v696, 0.0
      %v700 = vmax.f32 %v697, 0.0
      %v701 = vmin.f32 %v698, 6.0
      %v702 = vmin.f32 %v699, 6.0
      %v703 = vmin.f32 %v700, 6.0
      %v704 = vmul.f32 %v692, %v701
      %v705 = vmul.f32 %v693, %v702
      %v706 = vmul.f32 %v694, %v703
      %v707 = vmul.f32 %v704, 0.16666667
      %v708 = vmul.f32 %v705, 0.16666667
      %v709 = vmul.f32 %v706, 0.16666667
      %v712 = vcombine.low %v707, %v708
      %714 = vst [vmem:[%s197] sm:$0xff] %v712
      %715 = vst [vmem:[%s197 + $0x8] sm:$0xf] %v709
      %p716 = scmp.lt.s32.totalorder %s15, 1
      %s717 = scalar_select %p716, %s15, 1
      %s718 = smul.addr %s717, 3
      %s719 = smul.addr %s718, 4
      %s720 = scalar_lea.vmem %s4, %s719
      // Predicated region
      $region37: #{aggregator_forward.3} parent=35 // pred_check
        %p721 = pneg %p122
      $region38: #{aggregator_forward.3} parent=35 // pred_check_branch
        %723 = sbr.rel (%p721) target = $region40
      $region39: #{aggregator_forward.3} parent=35 // pred_region
        _
      $region40: #{aggregator_forward.3} parent=35 // pred_fallthru
        _
    $region36: #{aggregator_forward.3} parent=5 // pred_fallthru
      _
    %p724 = scmp.le.s32.totalorder 2, %s10
    // Predicated region
    $region41: #{aggregator_forward.3} parent=5 // pred_check
      %p725 = pneg %p724
    $region42: #{aggregator_forward.3} parent=5 // pred_check_branch
      %727 = sbr.rel (%p725) target = $region44
    $region43: #{aggregator_forward.3} parent=5 // pred_region
      %s728 = ssub.s32 %s10, 2
      // Predicated region
      $region45: #{aggregator_forward.3} parent=43 // pred_check
        %p729 = pneg %p128
      $region46: #{aggregator_forward.3} parent=43 // pred_check_branch
        %731 = sbr.rel (%p729) target = $region48
      $region47: #{aggregator_forward.3} parent=43 // pred_region
        %p732 = scmp.lt.s32.totalorder %s16, 1
        %s733 = scalar_select %p732, %s16, 1
        %s734 = smul.addr %s733, 3
        %s735 = smul.addr %s734, 4
        %s736 = scalar_lea.vmem %s4, %s735
      $region48: #{aggregator_forward.3} parent=43 // pred_fallthru
        _
    $region44: #{aggregator_forward.3} parent=5 // pred_fallthru
      _
  $region6: #{aggregator_forward.3} parent=0 // loop_footer
    %s14 = sadd.s32 1, %s10
  $region7: #{aggregator_forward.3} parent=0 // loop_footer_branch
    %9 = sbr.rel target = $region3
  $region8: #{aggregator_forward.3} parent=0 // loop_exit
    _

</llo_original>
